<compile_context>
chip_gen: v7x
topology: tpu7x:2x2x1
jax: 0.10.0
libtpu: 0.0.40
codegen_flags: <defaults>
</compile_context>

<pallas_src>
import functools
import math

import jax
import jax.numpy as jnp
from jax import lax
from jax.experimental import pallas as pl
from jax.experimental.pallas import tpu as pltpu

NUM_HEADS = 12
COMPUTE_DTYPE = jnp.bfloat16     # MXU operand dtype (accumulation stays f32)


def _round_up(x, m):
    return (x + m - 1) // m * m


def _pick_tile(dim, candidates):
    """Largest candidate that evenly divides `dim`, else the full dim."""
    for c in candidates:
        if dim % c == 0:
            return c
    return dim


def _pick_q_tile(batch, sq):
    """Largest q tile (multiple of 8) dividing sq that still leaves >=2 grid
    steps over (batch, q-tiles) when possible — keeps both v7x TCs busy."""
    cands = [c for c in (128, 64, 32, 16, 8) if sq % c == 0]
    if not cands:
        return sq
    for c in cands:
        if batch * (sq // c) >= 2:
            return c
    return cands[-1]


# ----------------------------------------------------------------------------
# Kernel 1: tiled linear projection   out = x @ W + b   (W stored (Din, Dout))
# ----------------------------------------------------------------------------
def _linear_kernel(x_ref, w_ref, b_ref, o_ref, acc_ref):
    @pl.when(pl.program_id(2) == 0)
    def _init():
        acc_ref[...] = jnp.zeros_like(acc_ref)

    acc_ref[...] += jnp.dot(
        x_ref[...].astype(COMPUTE_DTYPE),
        w_ref[...].astype(COMPUTE_DTYPE),
        preferred_element_type=jnp.float32,
    )

    @pl.when(pl.program_id(2) == pl.num_programs(2) - 1)
    def _finalize():
        o_ref[...] = (acc_ref[...] + b_ref[...].astype(jnp.float32)).astype(o_ref.dtype)


def linear(x, w, b, out_dtype=None):
    """x: (..., Din), w: (Din, Dout), b: (Dout,) -> (..., Dout)."""
    lead = x.shape[:-1]
    din = x.shape[-1]
    dout = w.shape[-1]
    m = math.prod(lead) if lead else 1
    out_dtype = x.dtype if out_dtype is None else out_dtype

    # Tiles up to 512 per axis (~5 MiB VMEM working set, fits every generation's
    # scoped limit). Dims are zero-padded to tile multiples so every block is
    # (8,128)-aligned and lane-dense, and awkward shapes never fall back to a
    # single whole-array block.
    tm = min(512, _round_up(m, 8))
    tk = min(512, _round_up(din, 128))
    tn = min(512, _round_up(dout, 128))
    mp, kp, np_ = _round_up(m, tm), _round_up(din, tk), _round_up(dout, tn)

    x2 = x.reshape(m, din)
    if (mp, kp) != (m, din):
        x2 = jnp.pad(x2, ((0, mp - m), (0, kp - din)))
    w2 = jnp.pad(w, ((0, kp - din), (0, np_ - dout))) if (kp, np_) != (din, dout) else w
    b2 = (jnp.pad(b, (0, np_ - dout)) if np_ != dout else b).reshape(1, np_)

    grid = (mp // tm, np_ // tn, kp // tk)
    out = pl.pallas_call(
        _linear_kernel,
        out_shape=jax.ShapeDtypeStruct((mp, np_), out_dtype),
        grid_spec=pltpu.PrefetchScalarGridSpec(
            num_scalar_prefetch=0,
            grid=grid,
            in_specs=[
                pl.BlockSpec((tm, tk), lambda i, j, k: (i, k)),
                pl.BlockSpec((tk, tn), lambda i, j, k: (k, j)),
                pl.BlockSpec((1, tn), lambda i, j, k: (0, j)),
            ],
            out_specs=pl.BlockSpec((tm, tn), lambda i, j, k: (i, j)),
            scratch_shapes=[pltpu.VMEM((tm, tn), jnp.float32)],
        ),
        compiler_params=pltpu.CompilerParams(
            dimension_semantics=("parallel", "parallel", "arbitrary")),
    )(x2, w2, b2)
    if (mp, np_) != (m, dout):
        out = out[:m, :dout]
    return out.reshape(*lead, dout)


# ----------------------------------------------------------------------------
# Kernel 2: flash-style multi-head attention (head-batched, KV tiled)
# ----------------------------------------------------------------------------
def _flash_attention_kernel(q_ref, k_ref, v_ref, *rest, num_heads, has_mask):
    """One (batch, q-tile, kv-tile) grid step.

    q_ref:   (1, H, tq, Dh)  bf16, queries pre-scaled by 1/sqrt(Dh)
    k_ref:   (1, H, tkv, Dh) bf16
    v_ref:   (1, H, tkv, Dh) bf16
    mask_ref (optional): (1, 1|H, 1|tq, tkv) f32 additive mask
    o_ref:   (1, tq, H*Dh)   written once (lane-dense) at the last kv step
    m_sc, l_sc: (H, tq) f32; acc_sc: (H, tq, Dh) f32  — online-softmax state
    """
    if has_mask:
        mask_ref, o_ref, m_sc, l_sc, acc_sc = rest
    else:
        o_ref, m_sc, l_sc, acc_sc = rest

    kv_step = pl.program_id(2)

    @pl.when(kv_step == 0)
    def _init():
        m_sc[...] = jnp.full_like(m_sc, -jnp.inf)
        l_sc[...] = jnp.zeros_like(l_sc)
        acc_sc[...] = jnp.zeros_like(acc_sc)

    q = q_ref[0]                       # (H, tq, Dh)
    k = k_ref[0]                       # (H, tkv, Dh)
    v = v_ref[0]                       # (H, tkv, Dh)

    # Scores for all heads in one batched MXU dot (no per-head Python loop).
    s = jnp.einsum("hqd,hkd->hqk", q, k,
                   preferred_element_type=jnp.float32)     # (H, tq, tkv) f32
    if has_mask:
        s = s + mask_ref[0]            # single broadcast add over heads / rows

    m_prev = m_sc[...]                                     # (H, tq)
    m_new = jnp.maximum(m_prev, jnp.max(s, axis=-1))       # (H, tq)
    alpha = jnp.exp(m_prev - m_new)                        # (H, tq)
    p = jnp.exp(s - m_new[:, :, None])                     # (H, tq, tkv) f32
    l_sc[...] = alpha * l_sc[...] + jnp.sum(p, axis=-1)
    pv = jnp.einsum("hqk,hkd->hqd", p.astype(v.dtype), v,
                    preferred_element_type=jnp.float32)    # (H, tq, Dh) f32
    acc_sc[...] = alpha[:, :, None] * acc_sc[...] + pv
    m_sc[...] = m_new

    @pl.when(kv_step == pl.num_programs(2) - 1)
    def _finalize():
        inv_l = pl.reciprocal(l_sc[...], approx=True)      # (H, tq)
        ctx = acc_sc[...] * inv_l[:, :, None]              # (H, tq, Dh) f32
        # Merge heads in-register, then a single lane-dense store per q-tile.
        merged = jnp.concatenate([ctx[h] for h in range(num_heads)], axis=-1)
        o_ref[0] = merged.astype(o_ref.dtype)


def fused_attention(q_hm, k_hm, v_hm, mask, *, out_dtype):
    """q_hm: (B, H, Sq, Dh); k_hm/v_hm: (B, H, Sk, Dh);
    mask: (B, 1|H, 1|Sq, Sk) f32 or None  ->  (B, Sq, H*Dh)."""
    B, H, Sq, Dh = q_hm.shape
    Sk = k_hm.shape[2]
    hidden = H * Dh

    tq = _pick_q_tile(B, Sq)
    tkv = _pick_tile(Sk, (256, 128))   # KV tiled (flash) -> bounded working set
    grid = (B, Sq // tq, Sk // tkv)

    in_specs = [
        pl.BlockSpec((1, H, tq, Dh), lambda b, i, j: (b, 0, i, 0)),
        pl.BlockSpec((1, H, tkv, Dh), lambda b, i, j: (b, 0, j, 0)),
        pl.BlockSpec((1, H, tkv, Dh), lambda b, i, j: (b, 0, j, 0)),
    ]
    args = [q_hm, k_hm, v_hm]
    if mask is not None:
        mh, mq = mask.shape[1], mask.shape[2]
        if mq == 1:
            in_specs.append(pl.BlockSpec((1, mh, 1, tkv),
                                         lambda b, i, j: (b, 0, 0, j)))
        else:
            in_specs.append(pl.BlockSpec((1, mh, tq, tkv),
                                         lambda b, i, j: (b, 0, i, j)))
        args.append(mask)

    kernel = functools.partial(_flash_attention_kernel, num_heads=H,
                               has_mask=mask is not None)

    return pl.pallas_call(
        kernel,
        out_shape=jax.ShapeDtypeStruct((B, Sq, hidden), out_dtype),
        grid_spec=pltpu.PrefetchScalarGridSpec(
            num_scalar_prefetch=0,
            grid=grid,
            in_specs=in_specs,
            out_specs=pl.BlockSpec((1, tq, hidden), lambda b, i, j: (b, i, 0)),
            scratch_shapes=[
                pltpu.VMEM((H, tq), jnp.float32),        # running row max
                pltpu.VMEM((H, tq), jnp.float32),        # running softmax denom
                pltpu.VMEM((H, tq, Dh), jnp.float32),    # running weighted V sum
            ],
        ),
        compiler_params=pltpu.CompilerParams(
            dimension_semantics=("parallel", "parallel", "arbitrary")),
    )(*args)


# ----------------------------------------------------------------------------
# Module wrapper
# ----------------------------------------------------------------------------
def init_params(key, size, ctx_dim=None):
    if size % NUM_HEADS != 0:
        raise ValueError("hidden size must be a multiple of 12")
    if ctx_dim is None:
        ctx_dim = size
    ks = jax.random.split(key, 6)
    sq = 1.0 / math.sqrt(size)
    sk = 1.0 / math.sqrt(ctx_dim)
    # Weights stored (Din, Dout), i.e. transposed relative to torch nn.Linear.
    return {
        "wq": jax.random.uniform(ks[0], (size, size), jnp.float32, -sq, sq),
        "bq": jax.random.uniform(ks[1], (size,), jnp.float32, -sq, sq),
        "wk": jax.random.uniform(ks[2], (ctx_dim, size), jnp.float32, -sk, sk),
        "bk": jax.random.uniform(ks[3], (size,), jnp.float32, -sk, sk),
        "wv": jax.random.uniform(ks[4], (ctx_dim, size), jnp.float32, -sk, sk),
        "bv": jax.random.uniform(ks[5], (size,), jnp.float32, -sk, sk),
    }


def _split_heads(x, num_heads, head_dim):
    b, s, _ = x.shape
    return x.reshape(b, s, num_heads, head_dim).transpose(0, 2, 1, 3)


def bert_out_attention(params, hidden_states, context, attention_mask=None):
    B, Sq, size = hidden_states.shape
    Sk = context.shape[1]
    H = NUM_HEADS
    Dh = size // H

    # Fold 1/sqrt(head_dim) into the query projection; pre-cast weights to bf16.
    scale = 1.0 / math.sqrt(Dh)
    wq = (params["wq"] * scale).astype(COMPUTE_DTYPE)
    bq = params["bq"] * scale
    # Fuse the K and V projections (shared context reads, 2x wider N per step).
    wkv = jnp.concatenate([params["wk"], params["wv"]], axis=1).astype(COMPUTE_DTYPE)
    bkv = jnp.concatenate([params["bk"], params["bv"]])

    q = linear(hidden_states, wq, bq, out_dtype=COMPUTE_DTYPE)   # (B, Sq, size)
    kv = linear(context, wkv, bkv, out_dtype=COMPUTE_DTYPE)      # (B, Sk, 2*size)

    # One XLA reshape/transpose to head-major so the attention kernel only ever
    # does leading-index head access (no in-kernel lane-offset relayouts).
    q_hm = _split_heads(q, H, Dh)                    # (B, H, Sq, Dh)
    k_hm = _split_heads(kv[..., :size], H, Dh)       # (B, H, Sk, Dh)
    v_hm = _split_heads(kv[..., size:], H, Dh)       # (B, H, Sk, Dh)

    mask = None
    if attention_mask is not None:
        m = jnp.asarray(attention_mask, jnp.float32)
        if m.ndim == 2:      # (B, Sk)     -> (B, 1, 1, Sk)
            m = m[:, None, None, :]
        elif m.ndim == 3:    # (B, Sq, Sk) -> (B, 1, Sq, Sk)
            m = m[:, None, :, :]
        elif m.ndim != 4:
            raise ValueError("attention_mask must have 2 to 4 dimensions")
        mh = H if m.shape[1] == H else 1
        mq = Sq if m.shape[2] == Sq else 1
        # No head/query blow-up: broadcast happens inside the kernel.
        mask = jnp.broadcast_to(m, (B, mh, mq, Sk))

    return fused_attention(q_hm, k_hm, v_hm, mask,
                           out_dtype=hidden_states.dtype)


# ----------------------------------------------------------------------------
# Pure-JAX f32 reference for verification
# ----------------------------------------------------------------------------
def _reference(params, hidden_states, context, attention_mask=None):
    B, Sq, size = hidden_states.shape
    Sk = context.shape[1]
    H, Dh = NUM_HEADS, size // NUM_HEADS
    q = hidden_states @ params["wq"] + params["bq"]
    k = context @ params["wk"] + params["bk"]
    v = context @ params["wv"] + params["bv"]
    q = q.reshape(B, Sq, H, Dh).transpose(0, 2, 1, 3)
    k = k.reshape(B, Sk, H, Dh).transpose(0, 2, 1, 3)
    v = v.reshape(B, Sk, H, Dh).transpose(0, 2, 1, 3)
    s = jnp.einsum("bhqd,bhkd->bhqk", q, k) / math.sqrt(Dh)
    if attention_mask is not None:
        s = s + attention_mask
    p = jax.nn.softmax(s, axis=-1)
    c = jnp.einsum("bhqk,bhkd->bhqd", p, v)
    return c.transpose(0, 2, 1, 3).reshape(B, Sq, size)


if __name__ == "__main__":
    key = jax.random.PRNGKey(0)
    k_param, k_h, k_c, k_m = jax.random.split(key, 4)

    B, Sq, Sk = 2, 8, 16
    size, ctx_dim = 96, 64

    params = init_params(k_param, size, ctx_dim)
    hidden_states = jax.random.normal(k_h, (B, Sq, size), jnp.float32)
    context = jax.random.normal(k_c, (B, Sk, ctx_dim), jnp.float32)
    # Additive attention mask like BERT: (B, 1, 1, Sk) with 0 / -10000
    keep = (jax.random.uniform(k_m, (B, 1, 1, Sk)) > 0.2).astype(jnp.float32)
    attention_mask = (1.0 - keep) * -10000.0

    fwd = jax.jit(bert_out_attention)
    out = fwd(params, hidden_states, context, attention_mask)
    out = jax.block_until_ready(out)

    ref = _reference(params, hidden_states, context, attention_mask)
    # bf16 MXU operands + approx reciprocal -> relaxed tolerance vs exact f32 ref.
    if not jnp.allclose(out, ref, atol=3e-2, rtol=3e-2):
        raise AssertionError("Pallas output does not match reference")

    print("KERNEL_OK")
</pallas_src>

<mosaic_0001>
module attributes {stable_mosaic.version = 11 : i64} {
  func.func @_linear_kernel(%arg0: i32, %arg1: i32, %arg2: i32, %arg3: memref<16x128xf32, #tpu.memory_space<vmem>>, %arg4: memref<128x128xbf16, #tpu.memory_space<vmem>>, %arg5: memref<1x128xf32, #tpu.memory_space<vmem>>, %arg6: memref<16x128xbf16, #tpu.memory_space<vmem>>, %arg7: memref<16x128xf32, #tpu.memory_space<vmem>>) attributes {dimension_semantics = [#tpu.dimension_semantics<parallel>, #tpu.dimension_semantics<parallel>, #tpu.dimension_semantics<arbitrary>], iteration_bounds = array<i64: 1, 1, 1>, scalar_prefetch = 0 : i64, scratch_operands = 1 : i64, tpu.core_type = #tpu.core_type<tc>, window_params = [{transform_indices = @transform_0, window_bounds = array<i64: 16, 128>}, {transform_indices = @transform_1, window_bounds = array<i64: 128, 128>}, {transform_indices = @transform_2, window_bounds = array<i64: 1, 128>}, {transform_indices = @transform_3, window_bounds = array<i64: 16, 128>}]} {
    %c0_i32 = arith.constant 0 : i32
    %0 = arith.cmpi eq, %arg2, %c0_i32 : i32
    %1 = arith.extui %0 : i1 to i32
    %c0_i32_0 = arith.constant 0 : i32
    %2 = arith.cmpi ne, %1, %c0_i32_0 : i32
    scf.if %2 {
      %cst_10 = arith.constant 0.000000e+00 : f32
      %13 = vector.broadcast %cst_10 : f32 to vector<16x128xf32>
      %c0_11 = arith.constant 0 : index
      %c0_12 = arith.constant 0 : index
      %14 = vector.load %arg7[%c0_11, %c0_12] : memref<16x128xf32, #tpu.memory_space<vmem>>, vector<16x128xf32>
      tpu.vector_store %arg7[%c0_11, %c0_12], %13 {strides = array<i32>} : memref<16x128xf32, #tpu.memory_space<vmem>>, vector<16x128xf32>,
    } else {
    }
    %c0 = arith.constant 0 : index
    %c0_1 = arith.constant 0 : index
    %3 = vector.load %arg7[%c0, %c0_1] : memref<16x128xf32, #tpu.memory_space<vmem>>, vector<16x128xf32>
    %c0_2 = arith.constant 0 : index
    %c0_3 = arith.constant 0 : index
    %4 = vector.load %arg3[%c0_2, %c0_3] : memref<16x128xf32, #tpu.memory_space<vmem>>, vector<16x128xf32>
    %5 = arith.truncf %4 : vector<16x128xf32> to vector<16x128xbf16>
    %c0_4 = arith.constant 0 : index
    %c0_5 = arith.constant 0 : index
    %6 = vector.load %arg4[%c0_4, %c0_5] : memref<128x128xbf16, #tpu.memory_space<vmem>>, vector<128x128xbf16>
    %cst = arith.constant dense<0.000000e+00> : vector<16x128xf32>
    %7 = tpu.matmul %5, %6, %cst {dimension_numbers = #tpu.dot_dimension_numbers<[1], [0], [0], [1], [0, 0, 1, 1], [], []>} : vector<16x128xbf16>, vector<128x128xbf16>, vector<16x128xf32> -> vector<16x128xf32>
    %8 = arith.addf %3, %7 : vector<16x128xf32>
    %c0_6 = arith.constant 0 : index
    %c0_7 = arith.constant 0 : index
    %9 = vector.load %arg7[%c0_6, %c0_7] : memref<16x128xf32, #tpu.memory_space<vmem>>, vector<16x128xf32>
    tpu.vector_store %arg7[%c0_6, %c0_7], %8 {strides = array<i32>} : memref<16x128xf32, #tpu.memory_space<vmem>>, vector<16x128xf32>,
    %c0_i32_8 = arith.constant 0 : i32
    %10 = arith.cmpi eq, %arg2, %c0_i32_8 : i32
    %11 = arith.extui %10 : i1 to i32
    %c0_i32_9 = arith.constant 0 : i32
    %12 = arith.cmpi ne, %11, %c0_i32_9 : i32
    scf.if %12 {
      %c0_10 = arith.constant 0 : index
      %c0_11 = arith.constant 0 : index
      %13 = vector.load %arg7[%c0_10, %c0_11] : memref<16x128xf32, #tpu.memory_space<vmem>>, vector<16x128xf32>
      %c0_12 = arith.constant 0 : index
      %c0_13 = arith.constant 0 : index
      %14 = vector.load %arg5[%c0_12, %c0_13] : memref<1x128xf32, #tpu.memory_space<vmem>>, vector<1x128xf32>
      %15 = vector.broadcast %14 : vector<1x128xf32> to vector<16x128xf32>
      %16 = arith.addf %13, %15 : vector<16x128xf32>
      %17 = arith.truncf %16 : vector<16x128xf32> to vector<16x128xbf16>
      %c0_14 = arith.constant 0 : index
      %c0_15 = arith.constant 0 : index
      %18 = vector.load %arg6[%c0_14, %c0_15] : memref<16x128xbf16, #tpu.memory_space<vmem>>, vector<16x128xbf16>
      tpu.vector_store %arg6[%c0_14, %c0_15], %17 {strides = array<i32>} : memref<16x128xbf16, #tpu.memory_space<vmem>>, vector<16x128xbf16>,
    } else {
    }
    return
  }
  func.func @transform_0(%arg0: i32, %arg1: i32, %arg2: i32) -> (i32, i32) {
    %c0_i32 = arith.constant 0 : i32
    return %arg0, %arg2 : i32, i32
  }
  func.func @transform_1(%arg0: i32, %arg1: i32, %arg2: i32) -> (i32, i32) {
    %c0_i32 = arith.constant 0 : i32
    return %arg2, %arg1 : i32, i32
  }
  func.func @transform_2(%arg0: i32, %arg1: i32, %arg2: i32) -> (i32, i32) {
    %c0_i32 = arith.constant 0 : i32
    %c0_i32_0 = arith.constant 0 : i32
    return %c0_i32, %arg1 : i32, i32
  }
  func.func @transform_3(%arg0: i32, %arg1: i32, %arg2: i32) -> (i32, i32) {
    %c0_i32 = arith.constant 0 : i32
    return %arg0, %arg1 : i32, i32
  }
}

module attributes {stable_mosaic.version = 11 : i64} {
  func.func @_linear_kernel(%arg0: i32, %arg1: i32, %arg2: i32, %arg3: memref<32x128xf32, #tpu.memory_space<vmem>>, %arg4: memref<128x256xbf16, #tpu.memory_space<vmem>>, %arg5: memref<1x256xf32, #tpu.memory_space<vmem>>, %arg6: memref<32x256xbf16, #tpu.memory_space<vmem>>, %arg7: memref<32x256xf32, #tpu.memory_space<vmem>>) attributes {dimension_semantics = [#tpu.dimension_semantics<parallel>, #tpu.dimension_semantics<parallel>, #tpu.dimension_semantics<arbitrary>], iteration_bounds = array<i64: 1, 1, 1>, scalar_prefetch = 0 : i64, scratch_operands = 1 : i64, tpu.core_type = #tpu.core_type<tc>, window_params = [{transform_indices = @transform_0, window_bounds = array<i64: 32, 128>}, {transform_indices = @transform_1, window_bounds = array<i64: 128, 256>}, {transform_indices = @transform_2, window_bounds = array<i64: 1, 256>}, {transform_indices = @transform_3, window_bounds = array<i64: 32, 256>}]} {
    %c0_i32 = arith.constant 0 : i32
    %0 = arith.cmpi eq, %arg2, %c0_i32 : i32
    %1 = arith.extui %0 : i1 to i32
    %c0_i32_0 = arith.constant 0 : i32
    %2 = arith.cmpi ne, %1, %c0_i32_0 : i32
    scf.if %2 {
      %cst_10 = arith.constant 0.000000e+00 : f32
      %13 = vector.broadcast %cst_10 : f32 to vector<32x256xf32>
      %c0_11 = arith.constant 0 : index
      %c0_12 = arith.constant 0 : index
      %14 = vector.load %arg7[%c0_11, %c0_12] : memref<32x256xf32, #tpu.memory_space<vmem>>, vector<32x256xf32>
      tpu.vector_store %arg7[%c0_11, %c0_12], %13 {strides = array<i32>} : memref<32x256xf32, #tpu.memory_space<vmem>>, vector<32x256xf32>,
    } else {
    }
    %c0 = arith.constant 0 : index
    %c0_1 = arith.constant 0 : index
    %3 = vector.load %arg7[%c0, %c0_1] : memref<32x256xf32, #tpu.memory_space<vmem>>, vector<32x256xf32>
    %c0_2 = arith.constant 0 : index
    %c0_3 = arith.constant 0 : index
    %4 = vector.load %arg3[%c0_2, %c0_3] : memref<32x128xf32, #tpu.memory_space<vmem>>, vector<32x128xf32>
    %5 = arith.truncf %4 : vector<32x128xf32> to vector<32x128xbf16>
    %c0_4 = arith.constant 0 : index
    %c0_5 = arith.constant 0 : index
    %6 = vector.load %arg4[%c0_4, %c0_5] : memref<128x256xbf16, #tpu.memory_space<vmem>>, vector<128x256xbf16>
    %cst = arith.constant dense<0.000000e+00> : vector<32x256xf32>
    %7 = tpu.matmul %5, %6, %cst {dimension_numbers = #tpu.dot_dimension_numbers<[1], [0], [0], [1], [0, 0, 1, 1], [], []>} : vector<32x128xbf16>, vector<128x256xbf16>, vector<32x256xf32> -> vector<32x256xf32>
    %8 = arith.addf %3, %7 : vector<32x256xf32>
    %c0_6 = arith.constant 0 : index
    %c0_7 = arith.constant 0 : index
    %9 = vector.load %arg7[%c0_6, %c0_7] : memref<32x256xf32, #tpu.memory_space<vmem>>, vector<32x256xf32>
    tpu.vector_store %arg7[%c0_6, %c0_7], %8 {strides = array<i32>} : memref<32x256xf32, #tpu.memory_space<vmem>>, vector<32x256xf32>,
    %c0_i32_8 = arith.constant 0 : i32
    %10 = arith.cmpi eq, %arg2, %c0_i32_8 : i32
    %11 = arith.extui %10 : i1 to i32
    %c0_i32_9 = arith.constant 0 : i32
    %12 = arith.cmpi ne, %11, %c0_i32_9 : i32
    scf.if %12 {
      %c0_10 = arith.constant 0 : index
      %c0_11 = arith.constant 0 : index
      %13 = vector.load %arg7[%c0_10, %c0_11] : memref<32x256xf32, #tpu.memory_space<vmem>>, vector<32x256xf32>
      %c0_12 = arith.constant 0 : index
      %c0_13 = arith.constant 0 : index
      %14 = vector.load %arg5[%c0_12, %c0_13] : memref<1x256xf32, #tpu.memory_space<vmem>>, vector<1x256xf32>
      %15 = vector.broadcast %14 : vector<1x256xf32> to vector<32x256xf32>
      %16 = arith.addf %13, %15 : vector<32x256xf32>
      %17 = arith.truncf %16 : vector<32x256xf32> to vector<32x256xbf16>
      %c0_14 = arith.constant 0 : index
      %c0_15 = arith.constant 0 : index
      %18 = vector.load %arg6[%c0_14, %c0_15] : memref<32x256xbf16, #tpu.memory_space<vmem>>, vector<32x256xbf16>
      tpu.vector_store %arg6[%c0_14, %c0_15], %17 {strides = array<i32>} : memref<32x256xbf16, #tpu.memory_space<vmem>>, vector<32x256xbf16>,
    } else {
    }
    return
  }
  func.func @transform_0(%arg0: i32, %arg1: i32, %arg2: i32) -> (i32, i32) {
    %c0_i32 = arith.constant 0 : i32
    return %arg0, %arg2 : i32, i32
  }
  func.func @transform_1(%arg0: i32, %arg1: i32, %arg2: i32) -> (i32, i32) {
    %c0_i32 = arith.constant 0 : i32
    return %arg2, %arg1 : i32, i32
  }
  func.func @transform_2(%arg0: i32, %arg1: i32, %arg2: i32) -> (i32, i32) {
    %c0_i32 = arith.constant 0 : i32
    %c0_i32_0 = arith.constant 0 : i32
    return %c0_i32, %arg1 : i32, i32
  }
  func.func @transform_3(%arg0: i32, %arg1: i32, %arg2: i32) -> (i32, i32) {
    %c0_i32 = arith.constant 0 : i32
    return %arg0, %arg1 : i32, i32
  }
}

module attributes {stable_mosaic.version = 11 : i64} {
  func.func @_flash_attention_kernel(%arg0: i32, %arg1: i32, %arg2: i32, %arg3: memref<1x12x8x8xbf16, #tpu.memory_space<vmem>>, %arg4: memref<1x12x16x8xbf16, #tpu.memory_space<vmem>>, %arg5: memref<1x12x16x8xbf16, #tpu.memory_space<vmem>>, %arg6: memref<1x1x1x16xf32, #tpu.memory_space<vmem>>, %arg7: memref<1x8x96xf32, #tpu.memory_space<vmem>>, %arg8: memref<12x8xf32, #tpu.memory_space<vmem>>, %arg9: memref<12x8xf32, #tpu.memory_space<vmem>>, %arg10: memref<12x8x8xf32, #tpu.memory_space<vmem>>) attributes {dimension_semantics = [#tpu.dimension_semantics<parallel>, #tpu.dimension_semantics<parallel>, #tpu.dimension_semantics<arbitrary>], iteration_bounds = array<i64: 2, 1, 1>, scalar_prefetch = 0 : i64, scratch_operands = 3 : i64, tpu.core_type = #tpu.core_type<tc>, window_params = [{transform_indices = @transform_0, window_bounds = array<i64: 1, 12, 8, 8>}, {transform_indices = @transform_1, window_bounds = array<i64: 1, 12, 16, 8>}, {transform_indices = @transform_2, window_bounds = array<i64: 1, 12, 16, 8>}, {transform_indices = @transform_3, window_bounds = array<i64: 1, 1, 1, 16>}, {transform_indices = @transform_4, window_bounds = array<i64: 1, 8, 96>}]} {
    %c0_i32 = arith.constant 0 : i32
    %0 = arith.cmpi eq, %arg2, %c0_i32 : i32
    %1 = arith.extui %0 : i1 to i32
    %c0_i32_0 = arith.constant 0 : i32
    %2 = arith.cmpi ne, %1, %c0_i32_0 : i32
    scf.if %2 {
      %cst_35 = arith.constant 0xFF800000 : f32
      %40 = vector.broadcast %cst_35 : f32 to vector<12x8xf32>
      %c0_36 = arith.constant 0 : index
      %c0_37 = arith.constant 0 : index
      %41 = vector.load %arg8[%c0_36, %c0_37] : memref<12x8xf32, #tpu.memory_space<vmem>>, vector<12x8xf32>
      tpu.vector_store %arg8[%c0_36, %c0_37], %40 {strides = array<i32>} : memref<12x8xf32, #tpu.memory_space<vmem>>, vector<12x8xf32>,
      %cst_38 = arith.constant 0.000000e+00 : f32
      %42 = vector.broadcast %cst_38 : f32 to vector<12x8xf32>
      %c0_39 = arith.constant 0 : index
      %c0_40 = arith.constant 0 : index
      %43 = vector.load %arg9[%c0_39, %c0_40] : memref<12x8xf32, #tpu.memory_space<vmem>>, vector<12x8xf32>
      tpu.vector_store %arg9[%c0_39, %c0_40], %42 {strides = array<i32>} : memref<12x8xf32, #tpu.memory_space<vmem>>, vector<12x8xf32>,
      %cst_41 = arith.constant 0.000000e+00 : f32
      %44 = vector.broadcast %cst_41 : f32 to vector<12x8x8xf32>
      %c0_42 = arith.constant 0 : index
      %c0_43 = arith.constant 0 : index
      %c0_44 = arith.constant 0 : index
      %45 = vector.load %arg10[%c0_42, %c0_43, %c0_44] : memref<12x8x8xf32, #tpu.memory_space<vmem>>, vector<12x8x8xf32>
      tpu.vector_store %arg10[%c0_42, %c0_43, %c0_44], %44 {strides = array<i32>} : memref<12x8x8xf32, #tpu.memory_space<vmem>>, vector<12x8x8xf32>,
    } else {
    }
    %c0 = arith.constant 0 : index
    %c0_1 = arith.constant 0 : index
    %c0_2 = arith.constant 0 : index
    %c0_3 = arith.constant 0 : index
    %3 = vector.load %arg3[%c0, %c0_1, %c0_2, %c0_3] : memref<1x12x8x8xbf16, #tpu.memory_space<vmem>>, vector<1x12x8x8xbf16>
    %4 = vector.shape_cast %3 : vector<1x12x8x8xbf16> to vector<12x8x8xbf16>
    %c0_4 = arith.constant 0 : index
    %c0_5 = arith.constant 0 : index
    %c0_6 = arith.constant 0 : index
    %c0_7 = arith.constant 0 : index
    %5 = vector.load %arg4[%c0_4, %c0_5, %c0_6, %c0_7] : memref<1x12x16x8xbf16, #tpu.memory_space<vmem>>, vector<1x12x16x8xbf16>
    %6 = vector.shape_cast %5 : vector<1x12x16x8xbf16> to vector<12x16x8xbf16>
    %c0_8 = arith.constant 0 : index
    %c0_9 = arith.constant 0 : index
    %c0_10 = arith.constant 0 : index
    %c0_11 = arith.constant 0 : index
    %7 = vector.load %arg5[%c0_8, %c0_9, %c0_10, %c0_11] : memref<1x12x16x8xbf16, #tpu.memory_space<vmem>>, vector<1x12x16x8xbf16>
    %8 = vector.shape_cast %7 : vector<1x12x16x8xbf16> to vector<12x16x8xbf16>
    "tpu.trace_start"() <{level = 10 : i32, message = "hqd,hkd->hqk"}> : () -> ()
    %cst = arith.constant dense<0.000000e+00> : vector<12x8x16xf32>
    %9 = tpu.matmul %4, %6, %cst {dimension_numbers = #tpu.dot_dimension_numbers<[2], [2], [1], [1], [0, 0, 0, 1, 1, 1], [0], [0]>} : vector<12x8x8xbf16>, vector<12x16x8xbf16>, vector<12x8x16xf32> -> vector<12x8x16xf32>
    "tpu.trace_stop"() : () -> ()
    %c0_12 = arith.constant 0 : index
    %c0_13 = arith.constant 0 : index
    %c0_14 = arith.constant 0 : index
    %c0_15 = arith.constant 0 : index
    %10 = vector.load %arg6[%c0_12, %c0_13, %c0_14, %c0_15] : memref<1x1x1x16xf32, #tpu.memory_space<vmem>>, vector<1x1x1x16xf32>
    %11 = vector.shape_cast %10 : vector<1x1x1x16xf32> to vector<1x1x16xf32>
    %12 = vector.broadcast %11 : vector<1x1x16xf32> to vector<12x8x16xf32>
    %13 = arith.addf %9, %12 : vector<12x8x16xf32>
    %c0_16 = arith.constant 0 : index
    %c0_17 = arith.constant 0 : index
    %14 = vector.load %arg8[%c0_16, %c0_17] : memref<12x8xf32, #tpu.memory_space<vmem>>, vector<12x8xf32>
    %cst_18 = arith.constant dense<0xFF800000> : vector<12x8xf32>
    %15 = vector.multi_reduction <maximumf>, %13, %cst_18 [2] : vector<12x8x16xf32> to vector<12x8xf32>
    %16 = arith.maximumf %14, %15 : vector<12x8xf32>
    %17 = arith.subf %14, %16 : vector<12x8xf32>
    %18 = math.exp %17 : vector<12x8xf32>
    %19 = vector.shape_cast %16 : vector<12x8xf32> to vector<12x8x1xf32>
    %20 = vector.broadcast %19 : vector<12x8x1xf32> to vector<12x8x16xf32>
    %21 = arith.subf %13, %20 : vector<12x8x16xf32>
    %22 = math.exp %21 : vector<12x8x16xf32>
    %c0_19 = arith.constant 0 : index
    %c0_20 = arith.constant 0 : index
    %23 = vector.load %arg9[%c0_19, %c0_20] : memref<12x8xf32, #tpu.memory_space<vmem>>, vector<12x8xf32>
    %24 = arith.mulf %18, %23 : vector<12x8xf32>
    %cst_21 = arith.constant dense<0.000000e+00> : vector<12x8xf32>
    %25 = vector.multi_reduction <add>, %22, %cst_21 [2] : vector<12x8x16xf32> to vector<12x8xf32>
    %26 = arith.addf %24, %25 : vector<12x8xf32>
    %c0_22 = arith.constant 0 : index
    %c0_23 = arith.constant 0 : index
    %27 = vector.load %arg9[%c0_22, %c0_23] : memref<12x8xf32, #tpu.memory_space<vmem>>, vector<12x8xf32>
    tpu.vector_store %arg9[%c0_22, %c0_23], %26 {strides = array<i32>} : memref<12x8xf32, #tpu.memory_space<vmem>>, vector<12x8xf32>,
    %28 = arith.truncf %22 : vector<12x8x16xf32> to vector<12x8x16xbf16>
    "tpu.trace_start"() <{level = 10 : i32, message = "hqk,hkd->hqd"}> : () -> ()
    %cst_24 = arith.constant dense<0.000000e+00> : vector<12x8x8xf32>
    %29 = tpu.matmul %28, %8, %cst_24 {dimension_numbers = #tpu.dot_dimension_numbers<[2], [1], [1], [2], [0, 0, 0, 1, 1, 2], [0], [0]>} : vector<12x8x16xbf16>, vector<12x16x8xbf16>, vector<12x8x8xf32> -> vector<12x8x8xf32>
    "tpu.trace_stop"() : () -> ()
    %30 = vector.shape_cast %18 : vector<12x8xf32> to vector<12x8x1xf32>
    %c0_25 = arith.constant 0 : index
    %c0_26 = arith.constant 0 : index
    %c0_27 = arith.constant 0 : index
    %31 = vector.load %arg10[%c0_25, %c0_26, %c0_27] : memref<12x8x8xf32, #tpu.memory_space<vmem>>, vector<12x8x8xf32>
    %32 = vector.broadcast %30 : vector<12x8x1xf32> to vector<12x8x8xf32>
    %33 = arith.mulf %32, %31 : vector<12x8x8xf32>
    %34 = arith.addf %33, %29 : vector<12x8x8xf32>
    %c0_28 = arith.constant 0 : index
    %c0_29 = arith.constant 0 : index
    %c0_30 = arith.constant 0 : index
    %35 = vector.load %arg10[%c0_28, %c0_29, %c0_30] : memref<12x8x8xf32, #tpu.memory_space<vmem>>, vector<12x8x8xf32>
    tpu.vector_store %arg10[%c0_28, %c0_29, %c0_30], %34 {strides = array<i32>} : memref<12x8x8xf32, #tpu.memory_space<vmem>>, vector<12x8x8xf32>,
    %c0_31 = arith.constant 0 : index
    %c0_32 = arith.constant 0 : index
    %36 = vector.load %arg8[%c0_31, %c0_32] : memref<12x8xf32, #tpu.memory_space<vmem>>, vector<12x8xf32>
    tpu.vector_store %arg8[%c0_31, %c0_32], %16 {strides = array<i32>} : memref<12x8xf32, #tpu.memory_space<vmem>>, vector<12x8xf32>,
    %c0_i32_33 = arith.constant 0 : i32
    %37 = arith.cmpi eq, %arg2, %c0_i32_33 : i32
    %38 = arith.extui %37 : i1 to i32
    %c0_i32_34 = arith.constant 0 : i32
    %39 = arith.cmpi ne, %38, %c0_i32_34 : i32
    scf.if %39 {
      %c0_35 = arith.constant 0 : index
      %c0_36 = arith.constant 0 : index
      %40 = vector.load %arg9[%c0_35, %c0_36] : memref<12x8xf32, #tpu.memory_space<vmem>>, vector<12x8xf32>
      %41 = tpu.reciprocal %40 {approx = true} : vector<12x8xf32> -> vector<12x8xf32>
      %c0_37 = arith.constant 0 : index
      %c0_38 = arith.constant 0 : index
      %c0_39 = arith.constant 0 : index
      %42 = vector.load %arg10[%c0_37, %c0_38, %c0_39] : memref<12x8x8xf32, #tpu.memory_space<vmem>>, vector<12x8x8xf32>
      %43 = vector.shape_cast %41 : vector<12x8xf32> to vector<12x8x1xf32>
      %44 = vector.broadcast %43 : vector<12x8x1xf32> to vector<12x8x8xf32>
      %45 = arith.mulf %42, %44 : vector<12x8x8xf32>
      %46 = vector.extract_strided_slice %45 {offsets = [0, 0, 0], sizes = [1, 8, 8], strides = [1, 1, 1]} : vector<12x8x8xf32> to vector<1x8x8xf32>
      %47 = vector.shape_cast %46 : vector<1x8x8xf32> to vector<8x8xf32>
      %48 = vector.extract_strided_slice %45 {offsets = [1, 0, 0], sizes = [1, 8, 8], strides = [1, 1, 1]} : vector<12x8x8xf32> to vector<1x8x8xf32>
      %49 = vector.shape_cast %48 : vector<1x8x8xf32> to vector<8x8xf32>
      %50 = vector.extract_strided_slice %45 {offsets = [2, 0, 0], sizes = [1, 8, 8], strides = [1, 1, 1]} : vector<12x8x8xf32> to vector<1x8x8xf32>
      %51 = vector.shape_cast %50 : vector<1x8x8xf32> to vector<8x8xf32>
      %52 = vector.extract_strided_slice %45 {offsets = [3, 0, 0], sizes = [1, 8, 8], strides = [1, 1, 1]} : vector<12x8x8xf32> to vector<1x8x8xf32>
      %53 = vector.shape_cast %52 : vector<1x8x8xf32> to vector<8x8xf32>
      %54 = vector.extract_strided_slice %45 {offsets = [4, 0, 0], sizes = [1, 8, 8], strides = [1, 1, 1]} : vector<12x8x8xf32> to vector<1x8x8xf32>
      %55 = vector.shape_cast %54 : vector<1x8x8xf32> to vector<8x8xf32>
      %56 = vector.extract_strided_slice %45 {offsets = [5, 0, 0], sizes = [1, 8, 8], strides = [1, 1, 1]} : vector<12x8x8xf32> to vector<1x8x8xf32>
      %57 = vector.shape_cast %56 : vector<1x8x8xf32> to vector<8x8xf32>
      %58 = vector.extract_strided_slice %45 {offsets = [6, 0, 0], sizes = [1, 8, 8], strides = [1, 1, 1]} : vector<12x8x8xf32> to vector<1x8x8xf32>
      %59 = vector.shape_cast %58 : vector<1x8x8xf32> to vector<8x8xf32>
      %60 = vector.extract_strided_slice %45 {offsets = [7, 0, 0], sizes = [1, 8, 8], strides = [1, 1, 1]} : vector<12x8x8xf32> to vector<1x8x8xf32>
      %61 = vector.shape_cast %60 : vector<1x8x8xf32> to vector<8x8xf32>
      %62 = vector.extract_strided_slice %45 {offsets = [8, 0, 0], sizes = [1, 8, 8], strides = [1, 1, 1]} : vector<12x8x8xf32> to vector<1x8x8xf32>
      %63 = vector.shape_cast %62 : vector<1x8x8xf32> to vector<8x8xf32>
      %64 = vector.extract_strided_slice %45 {offsets = [9, 0, 0], sizes = [1, 8, 8], strides = [1, 1, 1]} : vector<12x8x8xf32> to vector<1x8x8xf32>
      %65 = vector.shape_cast %64 : vector<1x8x8xf32> to vector<8x8xf32>
      %66 = vector.extract_strided_slice %45 {offsets = [10, 0, 0], sizes = [1, 8, 8], strides = [1, 1, 1]} : vector<12x8x8xf32> to vector<1x8x8xf32>
      %67 = vector.shape_cast %66 : vector<1x8x8xf32> to vector<8x8xf32>
      %68 = vector.extract_strided_slice %45 {offsets = [11, 0, 0], sizes = [1, 8, 8], strides = [1, 1, 1]} : vector<12x8x8xf32> to vector<1x8x8xf32>
      %69 = vector.shape_cast %68 : vector<1x8x8xf32> to vector<8x8xf32>
      %70 = tpu.concatenate %47, %49, %51, %53, %55, %57, %59, %61, %63, %65, %67, %69 in 1 : vector<8x8xf32>, vector<8x8xf32>, vector<8x8xf32>, vector<8x8xf32>, vector<8x8xf32>, vector<8x8xf32>, vector<8x8xf32>, vector<8x8xf32>, vector<8x8xf32>, vector<8x8xf32>, vector<8x8xf32>, vector<8x8xf32> -> vector<8x96xf32>
      %c0_40 = arith.constant 0 : index
      %c0_41 = arith.constant 0 : index
      %c0_42 = arith.constant 0 : index
      %71 = vector.load %arg7[%c0_40, %c0_41, %c0_42] : memref<1x8x96xf32, #tpu.memory_space<vmem>>, vector<1x8x96xf32>
      %72 = vector.shape_cast %71 : vector<1x8x96xf32> to vector<8x96xf32>
      %73 = vector.shape_cast %70 : vector<8x96xf32> to vector<1x8x96xf32>
      tpu.vector_store %arg7[%c0_40, %c0_41, %c0_42], %73 {strides = array<i32>} : memref<1x8x96xf32, #tpu.memory_space<vmem>>, vector<1x8x96xf32>,
    } else {
    }
    return
  }
  func.func @transform_0(%arg0: i32, %arg1: i32, %arg2: i32) -> (i32, i32, i32, i32) {
    %c0_i32 = arith.constant 0 : i32
    %c0_i32_0 = arith.constant 0 : i32
    %c0_i32_1 = arith.constant 0 : i32
    return %arg0, %c0_i32, %arg1, %c0_i32_0 : i32, i32, i32, i32
  }
  func.func @transform_1(%arg0: i32, %arg1: i32, %arg2: i32) -> (i32, i32, i32, i32) {
    %c0_i32 = arith.constant 0 : i32
    %c0_i32_0 = arith.constant 0 : i32
    %c0_i32_1 = arith.constant 0 : i32
    return %arg0, %c0_i32, %arg2, %c0_i32_0 : i32, i32, i32, i32
  }
  func.func @transform_2(%arg0: i32, %arg1: i32, %arg2: i32) -> (i32, i32, i32, i32) {
    %c0_i32 = arith.constant 0 : i32
    %c0_i32_0 = arith.constant 0 : i32
    %c0_i32_1 = arith.constant 0 : i32
    return %arg0, %c0_i32, %arg2, %c0_i32_0 : i32, i32, i32, i32
  }
  func.func @transform_3(%arg0: i32, %arg1: i32, %arg2: i32) -> (i32, i32, i32, i32) {
    %c0_i32 = arith.constant 0 : i32
    %c0_i32_0 = arith.constant 0 : i32
    %c0_i32_1 = arith.constant 0 : i32
    return %arg0, %c0_i32, %c0_i32_0, %arg2 : i32, i32, i32, i32
  }
  func.func @transform_4(%arg0: i32, %arg1: i32, %arg2: i32) -> (i32, i32, i32) {
    %c0_i32 = arith.constant 0 : i32
    %c0_i32_0 = arith.constant 0 : i32
    return %arg0, %arg1, %c0_i32 : i32, i32, i32
  }
}

</mosaic_0001>

<llo_original>
// kernel: bert_out_attention.3
$region0: #{bert_out_attention.3}
  #allocation0 [shape = 'u32[]', space=smem, size = 0x4, offset = 0x4, fixed_abs, tag = 'smem constant byte address 0x4 - core index']
  #allocation1 [shape = 'u32[144,128]{1,0:T(1,128)}', space=vmem, size = 0x12000, scoped, tag = 'internal scratch']
  #allocation2 [shape = 'f32[16,128]{1,0:T(8,128)}', space=vmem, size = 0x2000, scoped, tag = 'scratch operand']
  %s0 = inlined_call_operand.vmem [shape: f32[16,128], index: 0, kind: input, shape index: {}]
  %s1 = inlined_call_operand.vmem [shape: bf16[128,128], index: 1, kind: input, shape index: {}]
  %s2 = inlined_call_operand.vmem [shape: f32[1,128], index: 2, kind: input, shape index: {}]
  %s3 = inlined_call_operand.vmem [shape: bf16[16,128], index: 3, kind: output, shape index: {}]
  %s4 = sld [smem:[#allocation0]]
  $region30: #{bert_out_attention.3} parent=0
    _
  %s6 = ssub.s32 1, %s4
  %s7 = scalar_select 0, %s6, %s4
  // Predicated region
  $region2: #{bert_out_attention.3} parent=0 // pred_check
    _
  $region3: #{bert_out_attention.3} parent=0 // pred_check_branch
    %9 = sbr.rel (0) target = $region5
  $region4: #{bert_out_attention.3} parent=0 // pred_region
    _
  $region5: #{bert_out_attention.3} parent=0 // pred_fallthru
    _
  // Predicated region
  $region6: #{bert_out_attention.3} parent=0 // pred_check
    _
  $region7: #{bert_out_attention.3} parent=0 // pred_check_branch
    %11 = sbr.rel (0) target = $region9
  $region8: #{bert_out_attention.3} parent=0 // pred_region
    _
  $region9: #{bert_out_attention.3} parent=0 // pred_fallthru
    _
  // Predicated region
  $region10: #{bert_out_attention.3} parent=0 // pred_check
    _
  $region11: #{bert_out_attention.3} parent=0 // pred_check_branch
    %13 = sbr.rel (0) target = $region13
  $region12: #{bert_out_attention.3} parent=0 // pred_region
    _
  $region13: #{bert_out_attention.3} parent=0 // pred_fallthru
    _
  %p15 = scmp.eq.s32.totalorder 0, 0
  // Predicated region
  $region14: #{bert_out_attention.3} parent=0 // pred_check
    %p16 = pneg %p15
  $region15: #{bert_out_attention.3} parent=0 // pred_check_branch
    %18 = sbr.rel (%p16) target = $region17
  $region16: #{bert_out_attention.3} parent=0 // pred_region
    %19 = vst [vmem:[#allocation2] sm:$0xff] 0.0
    %20 = vst [vmem:[#allocation2 + $0x8] sm:$0xff] 0.0
  $region17: #{bert_out_attention.3} parent=0 // pred_fallthru
    _
  %v21 = vld [vmem:[#allocation2] sm:$0xff]
  %v22 = vld [vmem:[#allocation2 + $0x8] sm:$0xff]
  %v23 = vld [vmem:[%s0] sm:$0xff]
  %v24 = vld [vmem:[%s0 + $0x8] sm:$0xff]
  %v25 = vpack.c.bf16 %v24, %v23
  %v26 = vld [vmem:[%s1] sm:$0xf]
  %v27 = vld [vmem:[%s1 + $0x4] sm:$0xf]
  %v28 = vld [vmem:[%s1 + $0x8] sm:$0xf]
  %v29 = vld [vmem:[%s1 + $0xc] sm:$0xf]
  %v30 = vld [vmem:[%s1 + $0x10] sm:$0xf]
  %v31 = vld [vmem:[%s1 + $0x14] sm:$0xf]
  %v32 = vld [vmem:[%s1 + $0x18] sm:$0xf]
  %v33 = vld [vmem:[%s1 + $0x1c] sm:$0xf]
  %v34 = vld [vmem:[%s1 + $0x20] sm:$0xf]
  %v35 = vld [vmem:[%s1 + $0x24] sm:$0xf]
  %v36 = vld [vmem:[%s1 + $0x28] sm:$0xf]
  %v37 = vld [vmem:[%s1 + $0x2c] sm:$0xf]
  %v38 = vld [vmem:[%s1 + $0x30] sm:$0xf]
  %v39 = vld [vmem:[%s1 + $0x34] sm:$0xf]
  %v40 = vld [vmem:[%s1 + $0x38] sm:$0xf]
  %v41 = vld [vmem:[%s1 + $0x3c] sm:$0xf]
  %v58 = vunpack.c.l.b16 %v26
  %v59 = vunpack.c.l.b16 %v27
  %v60 = vunpack.c.l.b16 %v28
  %v61 = vunpack.c.l.b16 %v29
  %v62 = vunpack.c.l.b16 %v30
  %v63 = vunpack.c.l.b16 %v31
  %v64 = vunpack.c.l.b16 %v32
  %v65 = vunpack.c.l.b16 %v33
  %v66 = vunpack.c.l.b16 %v34
  %v67 = vunpack.c.l.b16 %v35
  %v68 = vunpack.c.l.b16 %v36
  %v69 = vunpack.c.l.b16 %v37
  %v70 = vunpack.c.l.b16 %v38
  %v71 = vunpack.c.l.b16 %v39
  %v72 = vunpack.c.l.b16 %v40
  %v73 = vunpack.c.l.b16 %v41
  %v74 = vpack.c.b16 %v59, %v58
  %v75 = vpack.c.b16 %v61, %v60
  %v76 = vpack.c.b16 %v63, %v62
  %v77 = vpack.c.b16 %v65, %v64
  %v78 = vpack.c.b16 %v67, %v66
  %v79 = vpack.c.b16 %v69, %v68
  %v80 = vpack.c.b16 %v71, %v70
  %v81 = vpack.c.b16 %v73, %v72
  %90 = vmatprep.subr.bf16.mxu0 0
  %91 = vmatpush1.bf16.msra.mxu0 %v74
  %92 = vmatprep.subr.bf16.mxu0 0
  %93 = vmatpush1.bf16.msra.mxu0 %v75
  %94 = vmatprep.subr.bf16.mxu0 0
  %95 = vmatpush1.bf16.msra.mxu0 %v76
  %96 = vmatprep.subr.bf16.mxu0 0
  %97 = vmatpush1.bf16.msra.mxu0 %v77
  %98 = vmatprep.subr.bf16.mxu0 0
  %99 = vmatpush1.bf16.msra.mxu0 %v78
  %100 = vmatprep.subr.bf16.mxu0 0
  %101 = vmatpush1.bf16.msra.mxu0 %v79
  %102 = vmatprep.subr.bf16.mxu0 0
  %103 = vmatpush1.bf16.msra.mxu0 %v80
  %104 = vmatprep.subr.bf16.mxu0 0
  %105 = vmatpush1.bf16.msra.mxu0 %v81
  %106 = vmatprep.subr.bf16.mxu0 0
  %107 = vmatpush1.bf16.msra.mxu0 0
  %108 = vmatprep.subr.bf16.mxu0 0
  %109 = vmatpush1.bf16.msra.mxu0 0
  %110 = vmatprep.subr.bf16.mxu0 0
  %111 = vmatpush1.bf16.msra.mxu0 0
  %112 = vmatprep.subr.bf16.mxu0 0
  %113 = vmatpush1.bf16.msra.mxu0 0
  %114 = vmatprep.subr.bf16.mxu0 0
  %115 = vmatpush1.bf16.msra.mxu0 0
  %116 = vmatprep.subr.bf16.mxu0 0
  %117 = vmatpush1.bf16.msra.mxu0 0
  %118 = vmatprep.subr.bf16.mxu0 0
  %119 = vmatpush1.bf16.msra.mxu0 0
  %120 = vmatprep.subr.bf16.mxu0 0
  %121 = vmatpush1.bf16.msra.mxu0 0
  %122 = vmatprep.mubr.bf16.mxu0 0
  %123 = vmatmul.mubr.bf16.gmra.mrb[0].mxu0 %v25
  %v124 = vpop.f32.mrb[0].mxu0
  %v125 = vadd.f32 0.0, %v124
  %v126 = vpop.f32.mrb[0].mxu0
  %v127 = vpop.f32.mrb[0].mxu0
  %v128 = vadd.f32 0.0, %v127
  %v129 = vpop.f32.mrb[0].mxu0
  %130 = vdwg.mxu0
  %v131 = vadd.f32 %v21, %v125
  %v132 = vadd.f32 %v22, %v128
  %133 = vst [vmem:[#allocation2] sm:$0xff] %v131
  %134 = vst [vmem:[#allocation2 + $0x8] sm:$0xff] %v132
  // Predicated region
  $region18: #{bert_out_attention.3} parent=0 // pred_check
    %p135 = pneg %p15
  $region19: #{bert_out_attention.3} parent=0 // pred_check_branch
    %137 = sbr.rel (%p135) target = $region21
  $region20: #{bert_out_attention.3} parent=0 // pred_region
    %v138 = vld [vmem:[#allocation2] sm:$0xff]
    %v139 = vld [vmem:[#allocation2 + $0x8] sm:$0xff]
    %v140 = vld [vmem:[%s2] sm:$0x1]
    %v142 = vlaneseq
    %v143 = vshrl.u32 %v142, 7
    %v144 = vsub.s32 0, %v143
    %v145 = vrot.slane %v140, %v144
    %v147 = vadd.f32 %v138, %v145
    %v148 = vadd.f32 %v139, %v145
    %v149 = vpack.c.bf16 %v148, %v147
    %v151 = vunpack.c.l.b16 %v149
    %v152 = vunpack.c.h.b16 %v149
    %v153 = vpack.c.b16 %v151, %v151
    %v154 = vpack.c.b16 %v152, %v152
    %157 = vst [vmem:[%s3] sm:$0xf] %v153
    %158 = vst [vmem:[%s3 + $0x4] sm:$0xf] %v154
  $region21: #{bert_out_attention.3} parent=0 // pred_fallthru
    _
  // Predicated region
  $region22: #{bert_out_attention.3} parent=0 // pred_check
    _
  $region23: #{bert_out_attention.3} parent=0 // pred_check_branch
    %160 = sbr.rel (0) target = $region25
  $region24: #{bert_out_attention.3} parent=0 // pred_region
    _
  $region25: #{bert_out_attention.3} parent=0 // pred_fallthru
    _
  // Predicated region
  $region26: #{bert_out_attention.3} parent=0 // pred_check
    _
  $region27: #{bert_out_attention.3} parent=0 // pred_check_branch
    %162 = sbr.rel (0) target = $region29
  $region28: #{bert_out_attention.3} parent=0 // pred_region
    _
  $region29: #{bert_out_attention.3} parent=0 // pred_fallthru
    _

// kernel: bert_out_attention.4
$region0: #{bert_out_attention.4}
  #allocation0 [shape = 'u32[]', space=smem, size = 0x4, offset = 0x4, fixed_abs, tag = 'smem constant byte address 0x4 - core index']
  #allocation1 [shape = 'u32[144,128]{1,0:T(1,128)}', space=vmem, size = 0x12000, scoped, tag = 'internal scratch']
  #allocation2 [shape = 'f32[32,256]{1,0:T(8,128)}', space=vmem, size = 0x8000, scoped, tag = 'scratch operand']
  %s0 = inlined_call_operand.vmem [shape: f32[32,128], index: 0, kind: input, shape index: {}]
  %s1 = inlined_call_operand.vmem [shape: bf16[128,256], index: 1, kind: input, shape index: {}]
  %s2 = inlined_call_operand.vmem [shape: f32[1,256], index: 2, kind: input, shape index: {}]
  %s3 = inlined_call_operand.vmem [shape: bf16[32,256], index: 3, kind: output, shape index: {}]
  %s4 = sld [smem:[#allocation0]]
  $region30: #{bert_out_attention.4} parent=0
    _
  %s6 = ssub.s32 1, %s4
  %s7 = scalar_select 0, %s6, %s4
  // Predicated region
  $region2: #{bert_out_attention.4} parent=0 // pred_check
    _
  $region3: #{bert_out_attention.4} parent=0 // pred_check_branch
    %9 = sbr.rel (0) target = $region5
  $region4: #{bert_out_attention.4} parent=0 // pred_region
    _
  $region5: #{bert_out_attention.4} parent=0 // pred_fallthru
    _
  // Predicated region
  $region6: #{bert_out_attention.4} parent=0 // pred_check
    _
  $region7: #{bert_out_attention.4} parent=0 // pred_check_branch
    %11 = sbr.rel (0) target = $region9
  $region8: #{bert_out_attention.4} parent=0 // pred_region
    _
  $region9: #{bert_out_attention.4} parent=0 // pred_fallthru
    _
  // Predicated region
  $region10: #{bert_out_attention.4} parent=0 // pred_check
    _
  $region11: #{bert_out_attention.4} parent=0 // pred_check_branch
    %13 = sbr.rel (0) target = $region13
  $region12: #{bert_out_attention.4} parent=0 // pred_region
    _
  $region13: #{bert_out_attention.4} parent=0 // pred_fallthru
    _
  %p15 = scmp.eq.s32.totalorder 0, 0
  // Predicated region
  $region14: #{bert_out_attention.4} parent=0 // pred_check
    %p16 = pneg %p15
  $region15: #{bert_out_attention.4} parent=0 // pred_check_branch
    %18 = sbr.rel (%p16) target = $region17
  $region16: #{bert_out_attention.4} parent=0 // pred_region
    %19 = vst [vmem:[#allocation2] sm:$0xff] 0.0
    %20 = vst [vmem:[#allocation2 + $0x8] sm:$0xff] 0.0
    %21 = vst [vmem:[#allocation2 + $0x10] sm:$0xff] 0.0
    %22 = vst [vmem:[#allocation2 + $0x18] sm:$0xff] 0.0
    %23 = vst [vmem:[#allocation2 + $0x20] sm:$0xff] 0.0
    %24 = vst [vmem:[#allocation2 + $0x28] sm:$0xff] 0.0
    %25 = vst [vmem:[#allocation2 + $0x30] sm:$0xff] 0.0
    %26 = vst [vmem:[#allocation2 + $0x38] sm:$0xff] 0.0
  $region17: #{bert_out_attention.4} parent=0 // pred_fallthru
    _
  %v27 = vld [vmem:[#allocation2] sm:$0xff]
  %v28 = vld [vmem:[#allocation2 + $0x8] sm:$0xff]
  %v29 = vld [vmem:[#allocation2 + $0x10] sm:$0xff]
  %v30 = vld [vmem:[#allocation2 + $0x18] sm:$0xff]
  %v31 = vld [vmem:[#allocation2 + $0x20] sm:$0xff]
  %v32 = vld [vmem:[#allocation2 + $0x28] sm:$0xff]
  %v33 = vld [vmem:[#allocation2 + $0x30] sm:$0xff]
  %v34 = vld [vmem:[#allocation2 + $0x38] sm:$0xff]
  %v35 = vld [vmem:[%s0] sm:$0xff]
  %v36 = vld [vmem:[%s0 + $0x8] sm:$0xff]
  %v37 = vld [vmem:[%s0 + $0x10] sm:$0xff]
  %v38 = vld [vmem:[%s0 + $0x18] sm:$0xff]
  %v39 = vpack.c.bf16 %v36, %v35
  %v40 = vpack.c.bf16 %v38, %v37
  %v41 = vld [vmem:[%s1] sm:$0xff]
  %v42 = vld [vmem:[%s1 + $0x8] sm:$0xff]
  %v43 = vld [vmem:[%s1 + $0x10] sm:$0xff]
  %v44 = vld [vmem:[%s1 + $0x18] sm:$0xff]
  %v45 = vld [vmem:[%s1 + $0x20] sm:$0xff]
  %v46 = vld [vmem:[%s1 + $0x28] sm:$0xff]
  %v47 = vld [vmem:[%s1 + $0x30] sm:$0xff]
  %v48 = vld [vmem:[%s1 + $0x38] sm:$0xff]
  %v49 = vld [vmem:[%s1 + $0x40] sm:$0xff]
  %v50 = vld [vmem:[%s1 + $0x48] sm:$0xff]
  %v51 = vld [vmem:[%s1 + $0x50] sm:$0xff]
  %v52 = vld [vmem:[%s1 + $0x58] sm:$0xff]
  %v53 = vld [vmem:[%s1 + $0x60] sm:$0xff]
  %v54 = vld [vmem:[%s1 + $0x68] sm:$0xff]
  %v55 = vld [vmem:[%s1 + $0x70] sm:$0xff]
  %v56 = vld [vmem:[%s1 + $0x78] sm:$0xff]
  %v73 = vunpack.c.l.b16 %v41
  %v74 = vunpack.c.h.b16 %v41
  %v75 = vunpack.c.l.b16 %v42
  %v76 = vunpack.c.h.b16 %v42
  %v77 = vunpack.c.l.b16 %v43
  %v78 = vunpack.c.h.b16 %v43
  %v79 = vunpack.c.l.b16 %v44
  %v80 = vunpack.c.h.b16 %v44
  %v81 = vunpack.c.l.b16 %v45
  %v82 = vunpack.c.h.b16 %v45
  %v83 = vunpack.c.l.b16 %v46
  %v84 = vunpack.c.h.b16 %v46
  %v85 = vunpack.c.l.b16 %v47
  %v86 = vunpack.c.h.b16 %v47
  %v87 = vunpack.c.l.b16 %v48
  %v88 = vunpack.c.h.b16 %v48
  %v89 = vunpack.c.l.b16 %v49
  %v90 = vunpack.c.h.b16 %v49
  %v91 = vunpack.c.l.b16 %v50
  %v92 = vunpack.c.h.b16 %v50
  %v93 = vunpack.c.l.b16 %v51
  %v94 = vunpack.c.h.b16 %v51
  %v95 = vunpack.c.l.b16 %v52
  %v96 = vunpack.c.h.b16 %v52
  %v97 = vunpack.c.l.b16 %v53
  %v98 = vunpack.c.h.b16 %v53
  %v99 = vunpack.c.l.b16 %v54
  %v100 = vunpack.c.h.b16 %v54
  %v101 = vunpack.c.l.b16 %v55
  %v102 = vunpack.c.h.b16 %v55
  %v103 = vunpack.c.l.b16 %v56
  %v104 = vunpack.c.h.b16 %v56
  %v105 = vpack.c.b16 %v75, %v73
  %v106 = vpack.c.b16 %v76, %v74
  %v107 = vpack.c.b16 %v79, %v77
  %v108 = vpack.c.b16 %v80, %v78
  %v109 = vpack.c.b16 %v83, %v81
  %v110 = vpack.c.b16 %v84, %v82
  %v111 = vpack.c.b16 %v87, %v85
  %v112 = vpack.c.b16 %v88, %v86
  %v113 = vpack.c.b16 %v91, %v89
  %v114 = vpack.c.b16 %v92, %v90
  %v115 = vpack.c.b16 %v95, %v93
  %v116 = vpack.c.b16 %v96, %v94
  %v117 = vpack.c.b16 %v99, %v97
  %v118 = vpack.c.b16 %v100, %v98
  %v119 = vpack.c.b16 %v103, %v101
  %v120 = vpack.c.b16 %v104, %v102
  %137 = vmatprep.subr.bf16.mxu0 %v106
  %138 = vmatpush1.bf16.msra.mxu0 %v105
  %139 = vmatprep.subr.bf16.mxu0 %v108
  %140 = vmatpush1.bf16.msra.mxu0 %v107
  %141 = vmatprep.subr.bf16.mxu0 %v110
  %142 = vmatpush1.bf16.msra.mxu0 %v109
  %143 = vmatprep.subr.bf16.mxu0 %v112
  %144 = vmatpush1.bf16.msra.mxu0 %v111
  %145 = vmatprep.subr.bf16.mxu0 %v114
  %146 = vmatpush1.bf16.msra.mxu0 %v113
  %147 = vmatprep.subr.bf16.mxu0 %v116
  %148 = vmatpush1.bf16.msra.mxu0 %v115
  %149 = vmatprep.subr.bf16.mxu0 %v118
  %150 = vmatpush1.bf16.msra.mxu0 %v117
  %151 = vmatprep.subr.bf16.mxu0 %v120
  %152 = vmatpush1.bf16.msra.mxu0 %v119
  %153 = vmatprep.subr.bf16.mxu0 0
  %154 = vmatpush1.bf16.msra.mxu0 0
  %155 = vmatprep.subr.bf16.mxu0 0
  %156 = vmatpush1.bf16.msra.mxu0 0
  %157 = vmatprep.subr.bf16.mxu0 0
  %158 = vmatpush1.bf16.msra.mxu0 0
  %159 = vmatprep.subr.bf16.mxu0 0
  %160 = vmatpush1.bf16.msra.mxu0 0
  %161 = vmatprep.subr.bf16.mxu0 0
  %162 = vmatpush1.bf16.msra.mxu0 0
  %163 = vmatprep.subr.bf16.mxu0 0
  %164 = vmatpush1.bf16.msra.mxu0 0
  %165 = vmatprep.subr.bf16.mxu0 0
  %166 = vmatpush1.bf16.msra.mxu0 0
  %167 = vmatprep.subr.bf16.mxu0 0
  %168 = vmatpush1.bf16.msra.mxu0 0
  %169 = vmatprep.mubr.bf16.mxu0 0
  %170 = vmatmul.mubr.bf16.gmra.mrb[0].mxu0 %v39
  %v171 = vpop.f32.mrb[0].mxu0
  %v172 = vadd.f32 0.0, %v171
  %v173 = vpop.f32.mrb[0].mxu0
  %v174 = vadd.f32 0.0, %v173
  %v175 = vpop.f32.mrb[0].mxu0
  %v176 = vadd.f32 0.0, %v175
  %v177 = vpop.f32.mrb[0].mxu0
  %v178 = vadd.f32 0.0, %v177
  %179 = vmatprep.mubr.bf16.mxu0 0
  %180 = vmatmul.mubr.bf16.gmra.mrb[0].mxu0 %v40
  %v181 = vpop.f32.mrb[0].mxu0
  %v182 = vadd.f32 0.0, %v181
  %v183 = vpop.f32.mrb[0].mxu0
  %v184 = vadd.f32 0.0, %v183
  %v185 = vpop.f32.mrb[0].mxu0
  %v186 = vadd.f32 0.0, %v185
  %v187 = vpop.f32.mrb[0].mxu0
  %v188 = vadd.f32 0.0, %v187
  %189 = vdwg.mxu0
  %v190 = vadd.f32 %v27, %v172
  %v191 = vadd.f32 %v28, %v174
  %v192 = vadd.f32 %v29, %v176
  %v193 = vadd.f32 %v30, %v178
  %v194 = vadd.f32 %v31, %v182
  %v195 = vadd.f32 %v32, %v184
  %v196 = vadd.f32 %v33, %v186
  %v197 = vadd.f32 %v34, %v188
  %198 = vst [vmem:[#allocation2] sm:$0xff] %v190
  %199 = vst [vmem:[#allocation2 + $0x8] sm:$0xff] %v191
  %200 = vst [vmem:[#allocation2 + $0x10] sm:$0xff] %v192
  %201 = vst [vmem:[#allocation2 + $0x18] sm:$0xff] %v193
  %202 = vst [vmem:[#allocation2 + $0x20] sm:$0xff] %v194
  %203 = vst [vmem:[#allocation2 + $0x28] sm:$0xff] %v195
  %204 = vst [vmem:[#allocation2 + $0x30] sm:$0xff] %v196
  %205 = vst [vmem:[#allocation2 + $0x38] sm:$0xff] %v197
  // Predicated region
  $region18: #{bert_out_attention.4} parent=0 // pred_check
    %p206 = pneg %p15
  $region19: #{bert_out_attention.4} parent=0 // pred_check_branch
    %208 = sbr.rel (%p206) target = $region21
  $region20: #{bert_out_attention.4} parent=0 // pred_region
    %v209 = vld [vmem:[#allocation2] sm:$0xff]
    %v210 = vld [vmem:[#allocation2 + $0x8] sm:$0xff]
    %v211 = vld [vmem:[#allocation2 + $0x10] sm:$0xff]
    %v212 = vld [vmem:[#allocation2 + $0x18] sm:$0xff]
    %v213 = vld [vmem:[#allocation2 + $0x20] sm:$0xff]
    %v214 = vld [vmem:[#allocation2 + $0x28] sm:$0xff]
    %v215 = vld [vmem:[#allocation2 + $0x30] sm:$0xff]
    %v216 = vld [vmem:[#allocation2 + $0x38] sm:$0xff]
    %v217 = vld [vmem:[%s2] sm:$0x3]
    %v219 = vlaneseq
    %v220 = vshrl.u32 %v219, 7
    %v221 = vsub.s32 0, %v220
    %v222 = vrot.slane %v217, %v221
    %v223 = vlaneseq
    %v224 = vshrl.u32 %v223, 7
    %v225 = vsub.s32 1, %v224
    %v226 = vrot.slane %v217, %v225
    %v229 = vadd.f32 %v209, %v222
    %v230 = vadd.f32 %v210, %v226
    %v231 = vadd.f32 %v211, %v222
    %v232 = vadd.f32 %v212, %v226
    %v233 = vadd.f32 %v213, %v222
    %v234 = vadd.f32 %v214, %v226
    %v235 = vadd.f32 %v215, %v222
    %v236 = vadd.f32 %v216, %v226
    %v237 = vpack.c.bf16 %v231, %v229
    %v238 = vpack.c.bf16 %v232, %v230
    %v239 = vpack.c.bf16 %v235, %v233
    %v240 = vpack.c.bf16 %v236, %v234
    %v245 = vunpack.c.l.b16 %v237
    %v246 = vunpack.c.l.b16 %v238
    %v247 = vunpack.c.h.b16 %v237
    %v248 = vunpack.c.h.b16 %v238
    %v249 = vunpack.c.l.b16 %v239
    %v250 = vunpack.c.l.b16 %v240
    %v251 = vunpack.c.h.b16 %v239
    %v252 = vunpack.c.h.b16 %v240
    %v253 = vpack.c.b16 %v246, %v245
    %v254 = vpack.c.b16 %v248, %v247
    %v255 = vpack.c.b16 %v250, %v249
    %v256 = vpack.c.b16 %v252, %v251
    %261 = vst [vmem:[%s3] sm:$0xff] %v253
    %262 = vst [vmem:[%s3 + $0x8] sm:$0xff] %v254
    %263 = vst [vmem:[%s3 + $0x10] sm:$0xff] %v255
    %264 = vst [vmem:[%s3 + $0x18] sm:$0xff] %v256
  $region21: #{bert_out_attention.4} parent=0 // pred_fallthru
    _
  // Predicated region
  $region22: #{bert_out_attention.4} parent=0 // pred_check
    _
  $region23: #{bert_out_attention.4} parent=0 // pred_check_branch
    %266 = sbr.rel (0) target = $region25
  $region24: #{bert_out_attention.4} parent=0 // pred_region
    _
  $region25: #{bert_out_attention.4} parent=0 // pred_fallthru
    _
  // Predicated region
  $region26: #{bert_out_attention.4} parent=0 // pred_check
    _
  $region27: #{bert_out_attention.4} parent=0 // pred_check_branch
    %268 = sbr.rel (0) target = $region29
  $region28: #{bert_out_attention.4} parent=0 // pred_region
    _
  $region29: #{bert_out_attention.4} parent=0 // pred_fallthru
    _

// kernel: bert_out_attention.5
$region0: #{bert_out_attention.5}
  #allocation0 [shape = 'u32[]', space=smem, size = 0x4, offset = 0x4, fixed_abs, tag = 'smem constant byte address 0x4 - core index']
  #allocation1 [shape = 'u32[144,128]{1,0:T(1,128)}', space=vmem, size = 0x12000, scoped, tag = 'internal scratch']
  #allocation2 [shape = 'f32[12,8]{1,0:T(8,128)}', space=vmem, size = 0x2000, scoped, tag = 'scratch operand']
  #allocation3 [shape = 'f32[12,8]{1,0:T(8,128)}', space=vmem, size = 0x2000, scoped, tag = 'scratch operand']
  #allocation4 [shape = 'f32[12,8,8]{2,1,0:T(8,128)}', space=vmem, size = 0xc000, scoped, tag = 'scratch operand']
  %s0 = inlined_call_operand.vmem [shape: bf16[2,12,8,8], index: 0, kind: input, shape index: {}]
  %s1 = inlined_call_operand.vmem [shape: bf16[2,12,16,8], index: 1, kind: input, shape index: {}]
  %s2 = inlined_call_operand.vmem [shape: bf16[2,12,16,8], index: 2, kind: input, shape index: {}]
  %s3 = inlined_call_operand.vmem [shape: f32[2,1,1,16], index: 3, kind: input, shape index: {}]
  %s4 = inlined_call_operand.hbm [shape: f32[2,8,96], index: 4, kind: output, shape index: {}]
  %s5 = sld [smem:[#allocation0]]
  $region57: #{bert_out_attention.5} parent=0
    _
  %s7 = ssub.s32 1, %s5
  %s8 = scalar_select 0, %s7, %s5
  $region1: #{bert_out_attention.5} parent=0
    #allocation5 [shape = 'u8[8192]{0}', space=vmem, size = 0x2000, scoped, tag = 'output window, operand 0']
    #allocation6 [shape = 's32[2]{0}', space=sflag, size = 0x8, scoped, tag = 'scoped memory for bert_out_attention.5']
    %9 = vsyncpa [#allocation6], 0
    %s10 = scalar_lea.sflag [#allocation6], 1
    %11 = vsyncpa %s10, 0
    loop: start=0, step=1, limit=4
    $region2: #{bert_out_attention.5} parent=1 // loop_pre_header
      _
    $region3: #{bert_out_attention.5} parent=1 // loop_header
      %s13 = sphi 0, %s17
      %p14 = scmp.ge.s32.totalorder %s13, 4
      %s20 = sphi 0, %s39
      %s21 = sphi 0, %s35
      %s22 = sphi 0, %s31
      %s23 = sphi 0, %s20
      %s24 = sphi 0, %s21
      %s25 = sphi 0, %s22
      %s26 = sphi 0, %s23
      %s27 = sphi 0, %s24
      %s28 = sphi 0, %s25
      %s44 = sphi 0, %s46
      %s47 = sphi 0, %s44
      %s48 = sphi 0, %s47
      %s64 = sphi 0, %s48
      %s72 = sphi 0, %s74
      %s75 = sphi 0, %s72
      %s76 = sphi 0, %s75
      %s92 = sphi 0, %s76
      %s100 = sphi 0, %s102
      %s103 = sphi 0, %s100
      %s104 = sphi 0, %s103
      %s120 = sphi 0, %s104
      %s128 = sphi 0, %s130
      %s131 = sphi 0, %s128
      %s132 = sphi 0, %s131
      %s148 = sphi 0, %s132
      %s156 = sphi 0, %s158
      %s159 = sphi 0, %s156
      %s160 = sphi 0, %s159
      %s176 = sphi 0, %s160
    $region4: #{bert_out_attention.5} parent=1 // loop_header_branch
      %16 = sbr.rel (%p14) target = $region8
    $region5: #{bert_out_attention.5} parent=1 // loop_body
      %s18 = ssub.s32 %s13, 1
      %s19 = ssub.s32 %s13, 2
      %s29 = sadd.s32 1, %s22
      %p30 = scmp.ge.s32.totalorder %s29, 1
      %s31 = scalar_select %p30, 0, %s29
      %s32 = sadd.s32 1, %s21
      %s33 = scalar_select %p30, %s32, %s21
      %p34 = scmp.ge.s32.totalorder %s33, 1
      %s35 = scalar_select %p34, 0, %s33
      %s36 = sadd.s32 1, %s20
      %s37 = scalar_select %p34, %s36, %s20
      %p38 = scmp.ge.s32.totalorder %s37, 2
      %s39 = scalar_select %p38, 0, %s37
      %s40 = ssub.s32 %s20, %s39
      %s41 = ssub.s32 %s21, %s35
      %s42 = sor.u32 %s40, %s41
      %p43 = scmp.eq.s32.totalorder %s42, 0
      %s45 = sadd.s32 %s44, 1
      %s46 = scalar_select %p43, %s44, %s45
      %p49 = pneg %p43
      %p50 = scmp.eq.s32.totalorder %s13, 1
      %p51 = por %p49, %p50
      %p52 = scmp.ne.s32.totalorder %s44, %s47
      %p53 = scmp.eq.s32.totalorder %s13, 0
      %p54 = por %p52, %p53
      %p55 = scmp.ne.s32.totalorder %s44, %s47
      %p56 = scmp.eq.s32.totalorder %s18, 1
      %p57 = por %p55, %p56
      %p58 = scmp.ne.s32.totalorder %s47, %s48
      %p59 = scmp.eq.s32.totalorder %s18, 0
      %p60 = por %p58, %p59
      %p61 = scmp.ne.s32.totalorder %s47, %s48
      %p62 = scmp.eq.s32.totalorder %s19, 1
      %p63 = por %p61, %p62
      %p65 = scmp.ne.s32.totalorder %s48, %s64
      %p66 = scmp.eq.s32.totalorder %s19, 0
      %p67 = por %p65, %p66
      %s68 = ssub.s32 %s20, %s39
      %s69 = ssub.s32 %s22, %s31
      %s70 = sor.u32 %s68, %s69
      %p71 = scmp.eq.s32.totalorder %s70, 0
      %s73 = sadd.s32 %s72, 1
      %s74 = scalar_select %p71, %s72, %s73
      %p77 = pneg %p71
      %p78 = scmp.eq.s32.totalorder %s13, 1
      %p79 = por %p77, %p78
      %p80 = scmp.ne.s32.totalorder %s72, %s75
      %p81 = scmp.eq.s32.totalorder %s13, 0
      %p82 = por %p80, %p81
      %p83 = scmp.ne.s32.totalorder %s72, %s75
      %p84 = scmp.eq.s32.totalorder %s18, 1
      %p85 = por %p83, %p84
      %p86 = scmp.ne.s32.totalorder %s75, %s76
      %p87 = scmp.eq.s32.totalorder %s18, 0
      %p88 = por %p86, %p87
      %p89 = scmp.ne.s32.totalorder %s75, %s76
      %p90 = scmp.eq.s32.totalorder %s19, 1
      %p91 = por %p89, %p90
      %p93 = scmp.ne.s32.totalorder %s76, %s92
      %p94 = scmp.eq.s32.totalorder %s19, 0
      %p95 = por %p93, %p94
      %s96 = ssub.s32 %s20, %s39
      %s97 = ssub.s32 %s22, %s31
      %s98 = sor.u32 %s96, %s97
      %p99 = scmp.eq.s32.totalorder %s98, 0
      %s101 = sadd.s32 %s100, 1
      %s102 = scalar_select %p99, %s100, %s101
      %p105 = pneg %p99
      %p106 = scmp.eq.s32.totalorder %s13, 1
      %p107 = por %p105, %p106
      %p108 = scmp.ne.s32.totalorder %s100, %s103
      %p109 = scmp.eq.s32.totalorder %s13, 0
      %p110 = por %p108, %p109
      %p111 = scmp.ne.s32.totalorder %s100, %s103
      %p112 = scmp.eq.s32.totalorder %s18, 1
      %p113 = por %p111, %p112
      %p114 = scmp.ne.s32.totalorder %s103, %s104
      %p115 = scmp.eq.s32.totalorder %s18, 0
      %p116 = por %p114, %p115
      %p117 = scmp.ne.s32.totalorder %s103, %s104
      %p118 = scmp.eq.s32.totalorder %s19, 1
      %p119 = por %p117, %p118
      %p121 = scmp.ne.s32.totalorder %s104, %s120
      %p122 = scmp.eq.s32.totalorder %s19, 0
      %p123 = por %p121, %p122
      %s124 = ssub.s32 %s20, %s39
      %s125 = ssub.s32 %s22, %s31
      %s126 = sor.u32 %s124, %s125
      %p127 = scmp.eq.s32.totalorder %s126, 0
      %s129 = sadd.s32 %s128, 1
      %s130 = scalar_select %p127, %s128, %s129
      %p133 = pneg %p127
      %p134 = scmp.eq.s32.totalorder %s13, 1
      %p135 = por %p133, %p134
      %p136 = scmp.ne.s32.totalorder %s128, %s131
      %p137 = scmp.eq.s32.totalorder %s13, 0
      %p138 = por %p136, %p137
      %p139 = scmp.ne.s32.totalorder %s128, %s131
      %p140 = scmp.eq.s32.totalorder %s18, 1
      %p141 = por %p139, %p140
      %p142 = scmp.ne.s32.totalorder %s131, %s132
      %p143 = scmp.eq.s32.totalorder %s18, 0
      %p144 = por %p142, %p143
      %p145 = scmp.ne.s32.totalorder %s131, %s132
      %p146 = scmp.eq.s32.totalorder %s19, 1
      %p147 = por %p145, %p146
      %p149 = scmp.ne.s32.totalorder %s132, %s148
      %p150 = scmp.eq.s32.totalorder %s19, 0
      %p151 = por %p149, %p150
      %s152 = ssub.s32 %s20, %s39
      %s153 = ssub.s32 %s21, %s35
      %s154 = sor.u32 %s152, %s153
      %p155 = scmp.eq.s32.totalorder %s154, 0
      %s157 = sadd.s32 %s156, 1
      %s158 = scalar_select %p155, %s156, %s157
      %p161 = pneg %p155
      %p162 = scmp.eq.s32.totalorder %s13, 1
      %p163 = por %p161, %p162
      %p164 = scmp.ne.s32.totalorder %s156, %s159
      %p165 = scmp.eq.s32.totalorder %s13, 0
      %p166 = por %p164, %p165
      %p167 = scmp.ne.s32.totalorder %s156, %s159
      %p168 = scmp.eq.s32.totalorder %s18, 1
      %p169 = por %p167, %p168
      %p170 = scmp.ne.s32.totalorder %s159, %s160
      %p171 = scmp.eq.s32.totalorder %s18, 0
      %p172 = por %p170, %p171
      %p173 = scmp.ne.s32.totalorder %s159, %s160
      %p174 = scmp.eq.s32.totalorder %s19, 1
      %p175 = por %p173, %p174
      %p177 = scmp.ne.s32.totalorder %s160, %s176
      %p178 = scmp.eq.s32.totalorder %s19, 0
      %p179 = por %p177, %p178
      %p180 = scmp.le.s32.totalorder 1, %s13
      %p181 = scmp.lt.s32.totalorder %s13, 3
      %p182 = pnand %p180, %p181
      %p183 = pneg %p182
      // Predicated region
      $region9: #{bert_out_attention.5} parent=5 // pred_check
        _
      $region10: #{bert_out_attention.5} parent=5 // pred_check_branch
        %185 = sbr.rel (%p182) target = $region12
      $region11: #{bert_out_attention.5} parent=5 // pred_region
        %s186 = ssub.s32 %s13, 1
      $region12: #{bert_out_attention.5} parent=5 // pred_fallthru
        _
      %p187 = scmp.lt.s32.totalorder %s13, 2
      // Predicated region
      $region13: #{bert_out_attention.5} parent=5 // pred_check
        %p188 = pneg %p187
      $region14: #{bert_out_attention.5} parent=5 // pred_check_branch
        %190 = sbr.rel (%p188) target = $region16
      $region15: #{bert_out_attention.5} parent=5 // pred_region
        // Predicated region
        $region17: #{bert_out_attention.5} parent=15 // pred_check
          %p191 = pneg %p54
        $region18: #{bert_out_attention.5} parent=15 // pred_check_branch
          %193 = sbr.rel (%p191) target = $region20
        $region19: #{bert_out_attention.5} parent=15 // pred_region
          %p194 = scmp.lt.s32.totalorder %s20, 1
          %s195 = scalar_select %p194, %s20, 1
          %p196 = scmp.lt.s32.totalorder %s21, 0
          %s197 = scalar_select %p196, %s21, 0
          %s198 = smul.addr %s195, 12
          %s199 = sadd.s32 %s197, %s198
          %s200 = smul.addr %s199, 4
          %s201 = scalar_lea.vmem %s0, %s200
        $region20: #{bert_out_attention.5} parent=15 // pred_fallthru
          _
        // Predicated region
        $region21: #{bert_out_attention.5} parent=15 // pred_check
          %p202 = pneg %p82
        $region22: #{bert_out_attention.5} parent=15 // pred_check_branch
          %204 = sbr.rel (%p202) target = $region24
        $region23: #{bert_out_attention.5} parent=15 // pred_region
          %s205 = smul.u32 2, %s22
          %p206 = scmp.lt.s32.totalorder %s20, 1
          %s207 = scalar_select %p206, %s20, 1
          %p208 = scmp.lt.s32.totalorder %s205, 1
          %s209 = scalar_select %p208, %s205, 1
          %s210 = smul.addr %s207, 24
          %s211 = sadd.s32 %s209, %s210
          %s212 = smul.addr %s211, 4
          %s213 = scalar_lea.vmem %s1, %s212
          %s214 = smul.u32 2, %s22
        $region24: #{bert_out_attention.5} parent=15 // pred_fallthru
          _
        // Predicated region
        $region25: #{bert_out_attention.5} parent=15 // pred_check
          %p215 = pneg %p110
        $region26: #{bert_out_attention.5} parent=15 // pred_check_branch
          %217 = sbr.rel (%p215) target = $region28
        $region27: #{bert_out_attention.5} parent=15 // pred_region
          %s218 = smul.u32 2, %s22
          %p219 = scmp.lt.s32.totalorder %s20, 1
          %s220 = scalar_select %p219, %s20, 1
          %p221 = scmp.lt.s32.totalorder %s218, 1
          %s222 = scalar_select %p221, %s218, 1
          %s223 = smul.addr %s220, 24
          %s224 = sadd.s32 %s222, %s223
          %s225 = smul.addr %s224, 4
          %s226 = scalar_lea.vmem %s2, %s225
          %s227 = smul.u32 2, %s22
        $region28: #{bert_out_attention.5} parent=15 // pred_fallthru
          _
        // Predicated region
        $region29: #{bert_out_attention.5} parent=15 // pred_check
          %p228 = pneg %p138
        $region30: #{bert_out_attention.5} parent=15 // pred_check_branch
          %230 = sbr.rel (%p228) target = $region32
        $region31: #{bert_out_attention.5} parent=15 // pred_region
          %p231 = scmp.lt.s32.totalorder %s20, 1
          %s232 = scalar_select %p231, %s20, 1
          %p233 = scmp.lt.s32.totalorder %s22, 0
          %s234 = scalar_select %p233, %s22, 0
          %s235 = sadd.s32 %s234, %s232
          %s236 = scalar_lea.vmem %s3, %s235
        $region32: #{bert_out_attention.5} parent=15 // pred_fallthru
          _
      $region16: #{bert_out_attention.5} parent=5 // pred_fallthru
        _
      %p237 = scmp.le.s32.totalorder 1, %s13
      %p238 = scmp.lt.s32.totalorder %s13, 3
      %p239 = pnand %p237, %p238
      %p240 = pneg %p239
      // Predicated region
      $region33: #{bert_out_attention.5} parent=5 // pred_check
        _
      $region34: #{bert_out_attention.5} parent=5 // pred_check_branch
        %242 = sbr.rel (%p239) target = $region36
      $region35: #{bert_out_attention.5} parent=5 // pred_region
        %s243 = ssub.s32 %s13, 1
        %p244 = scmp.lt.s32.totalorder %s23, 1
        %s245 = scalar_select %p244, %s23, 1
        %p246 = scmp.lt.s32.totalorder %s24, 0
        %s247 = scalar_select %p246, %s24, 0
        %s248 = smul.addr %s245, 12
        %s249 = sadd.s32 %s247, %s248
        %s250 = smul.addr %s249, 4
        %s251 = scalar_lea.vmem %s0, %s250
        %p252 = pneg %p60
        %p253 = pneg %p57
        %s254 = smul.u32 2, %s25
        %p255 = scmp.lt.s32.totalorder %s23, 1
        %s256 = scalar_select %p255, %s23, 1
        %p257 = scmp.lt.s32.totalorder %s254, 1
        %s258 = scalar_select %p257, %s254, 1
        %s259 = smul.addr %s256, 24
        %s260 = sadd.s32 %s258, %s259
        %s261 = smul.addr %s260, 4
        %s262 = scalar_lea.vmem %s1, %s261
        %p263 = pneg %p88
        %p264 = pneg %p85
        %s265 = smul.u32 2, %s25
        %p266 = scmp.lt.s32.totalorder %s23, 1
        %s267 = scalar_select %p266, %s23, 1
        %p268 = scmp.lt.s32.totalorder %s265, 1
        %s269 = scalar_select %p268, %s265, 1
        %s270 = smul.addr %s267, 24
        %s271 = sadd.s32 %s269, %s270
        %s272 = smul.addr %s271, 4
        %s273 = scalar_lea.vmem %s2, %s272
        %p274 = pneg %p116
        %p275 = pneg %p113
        %p276 = scmp.lt.s32.totalorder %s23, 1
        %s277 = scalar_select %p276, %s23, 1
        %p278 = scmp.lt.s32.totalorder %s25, 0
        %s279 = scalar_select %p278, %s25, 0
        %s280 = sadd.s32 %s279, %s277
        %s281 = scalar_lea.vmem %s3, %s280
        %p282 = pneg %p144
        %p283 = pneg %p141
        %p284 = pneg %p172
        %p285 = pneg %p169
        %s286 = sand.u32 %s159, 1
        %s287 = scalar_lea.sflag [#allocation6], %s286
        %s288 = sand.u32 %s159, 1
        %s289 = smul.addr %s288, 8
        %s290 = scalar_lea.vmem [#allocation5], %s289
        %p291 = scmp.lt.s32.totalorder %s23, 1
        %s292 = scalar_select %p291, %s23, 1
        %p293 = scmp.lt.s32.totalorder %s24, 0
        %s294 = scalar_select %p293, %s24, 0
        %s295 = smul.addr %s292, 12
        %s296 = sadd.s32 %s294, %s295
        %s297 = smul.addr %s296, 4
        %s298 = scalar_lea.vmem %s0, %s297
        %s299 = smul.u32 2, %s25
        %p300 = scmp.lt.s32.totalorder %s23, 1
        %s301 = scalar_select %p300, %s23, 1
        %p302 = scmp.lt.s32.totalorder %s299, 1
        %s303 = scalar_select %p302, %s299, 1
        %s304 = smul.addr %s301, 24
        %s305 = sadd.s32 %s303, %s304
        %s306 = smul.addr %s305, 4
        %s307 = scalar_lea.vmem %s1, %s306
        %s308 = smul.u32 2, %s25
        %s309 = smul.u32 2, %s25
        %p310 = scmp.lt.s32.totalorder %s23, 1
        %s311 = scalar_select %p310, %s23, 1
        %p312 = scmp.lt.s32.totalorder %s309, 1
        %s313 = scalar_select %p312, %s309, 1
        %s314 = smul.addr %s311, 24
        %s315 = sadd.s32 %s313, %s314
        %s316 = smul.addr %s315, 4
        %s317 = scalar_lea.vmem %s2, %s316
        %s318 = smul.u32 2, %s25
        %p319 = scmp.lt.s32.totalorder %s23, 1
        %s320 = scalar_select %p319, %s23, 1
        %p321 = scmp.lt.s32.totalorder %s25, 0
        %s322 = scalar_select %p321, %s25, 0
        %s323 = sadd.s32 %s322, %s320
        %s324 = scalar_lea.vmem %s3, %s323
        %p326 = scmp.eq.s32.totalorder %s25, 0
        // Predicated region
        $region37: #{bert_out_attention.5} parent=35 // pred_check
          %p327 = pneg %p326
        $region38: #{bert_out_attention.5} parent=35 // pred_check_branch
          %329 = sbr.rel (%p327) target = $region40
        $region39: #{bert_out_attention.5} parent=35 // pred_region
          %vm330 = vcmask 64512
          %331 = vst.msk [vmem:[#allocation2] sm:$0xff] %vm330, -inf
          %vm332 = vcmask 60416
          %333 = vst.msk [vmem:[#allocation2 + $0x8] sm:$0xf] %vm332, -inf
          %334 = vst.msk [vmem:[#allocation3] sm:$0xff] %vm330, 0.0
          %335 = vst.msk [vmem:[#allocation3 + $0x8] sm:$0xf] %vm332, 0.0
          %336 = vst.msk [vmem:[#allocation4] sm:$0xff] %vm330, 0.0
          %337 = vst.msk [vmem:[#allocation4 + $0x8] sm:$0xff] %vm330, 0.0
          %338 = vst.msk [vmem:[#allocation4 + $0x10] sm:$0xff] %vm330, 0.0
          %339 = vst.msk [vmem:[#allocation4 + $0x18] sm:$0xff] %vm330, 0.0
          %340 = vst.msk [vmem:[#allocation4 + $0x20] sm:$0xff] %vm330, 0.0
          %341 = vst.msk [vmem:[#allocation4 + $0x28] sm:$0xff] %vm330, 0.0
          %342 = vst.msk [vmem:[#allocation4 + $0x30] sm:$0xff] %vm330, 0.0
          %343 = vst.msk [vmem:[#allocation4 + $0x38] sm:$0xff] %vm330, 0.0
          %344 = vst.msk [vmem:[#allocation4 + $0x40] sm:$0xff] %vm330, 0.0
          %345 = vst.msk [vmem:[#allocation4 + $0x48] sm:$0xff] %vm330, 0.0
          %346 = vst.msk [vmem:[#allocation4 + $0x50] sm:$0xff] %vm330, 0.0
          %347 = vst.msk [vmem:[#allocation4 + $0x58] sm:$0xff] %vm330, 0.0
        $region40: #{bert_out_attention.5} parent=35 // pred_fallthru
          _
        %v348 = vld [vmem:[%s298] sm:$0xf]
        %v349 = vld [vmem:[%s298 + $0x4] sm:$0xf]
        %v350 = vld [vmem:[%s298 + $0x8] sm:$0xf]
        %v351 = vld [vmem:[%s298 + $0xc] sm:$0xf]
        %v352 = vld [vmem:[%s298 + $0x10] sm:$0xf]
        %v353 = vld [vmem:[%s298 + $0x14] sm:$0xf]
        %v354 = vld [vmem:[%s298 + $0x18] sm:$0xf]
        %v355 = vld [vmem:[%s298 + $0x1c] sm:$0xf]
        %v356 = vld [vmem:[%s298 + $0x20] sm:$0xf]
        %v357 = vld [vmem:[%s298 + $0x24] sm:$0xf]
        %v358 = vld [vmem:[%s298 + $0x28] sm:$0xf]
        %v359 = vld [vmem:[%s298 + $0x2c] sm:$0xf]
        %v360 = vld [vmem:[%s307] sm:$0xf]
        %v361 = vld [vmem:[%s307 + $0x4] sm:$0xf]
        %v362 = vld [vmem:[%s307 + $0x8] sm:$0xf]
        %v363 = vld [vmem:[%s307 + $0xc] sm:$0xf]
        %v364 = vld [vmem:[%s307 + $0x10] sm:$0xf]
        %v365 = vld [vmem:[%s307 + $0x14] sm:$0xf]
        %v366 = vld [vmem:[%s307 + $0x18] sm:$0xf]
        %v367 = vld [vmem:[%s307 + $0x1c] sm:$0xf]
        %v368 = vld [vmem:[%s307 + $0x20] sm:$0xf]
        %v369 = vld [vmem:[%s307 + $0x24] sm:$0xf]
        %v370 = vld [vmem:[%s307 + $0x28] sm:$0xf]
        %v371 = vld [vmem:[%s307 + $0x2c] sm:$0xf]
        %v372 = vld [vmem:[%s307 + $0x30] sm:$0xf]
        %v373 = vld [vmem:[%s307 + $0x34] sm:$0xf]
        %v374 = vld [vmem:[%s307 + $0x38] sm:$0xf]
        %v375 = vld [vmem:[%s307 + $0x3c] sm:$0xf]
        %v376 = vld [vmem:[%s307 + $0x40] sm:$0xf]
        %v377 = vld [vmem:[%s307 + $0x44] sm:$0xf]
        %v378 = vld [vmem:[%s307 + $0x48] sm:$0xf]
        %v379 = vld [vmem:[%s307 + $0x4c] sm:$0xf]
        %v380 = vld [vmem:[%s307 + $0x50] sm:$0xf]
        %v381 = vld [vmem:[%s307 + $0x54] sm:$0xf]
        %v382 = vld [vmem:[%s307 + $0x58] sm:$0xf]
        %v383 = vld [vmem:[%s307 + $0x5c] sm:$0xf]
        %v384 = vld [vmem:[%s317] sm:$0xf]
        %v385 = vld [vmem:[%s317 + $0x4] sm:$0xf]
        %v386 = vld [vmem:[%s317 + $0x8] sm:$0xf]
        %v387 = vld [vmem:[%s317 + $0xc] sm:$0xf]
        %v388 = vld [vmem:[%s317 + $0x10] sm:$0xf]
        %v389 = vld [vmem:[%s317 + $0x14] sm:$0xf]
        %v390 = vld [vmem:[%s317 + $0x18] sm:$0xf]
        %v391 = vld [vmem:[%s317 + $0x1c] sm:$0xf]
        %v392 = vld [vmem:[%s317 + $0x20] sm:$0xf]
        %v393 = vld [vmem:[%s317 + $0x24] sm:$0xf]
        %v394 = vld [vmem:[%s317 + $0x28] sm:$0xf]
        %v395 = vld [vmem:[%s317 + $0x2c] sm:$0xf]
        %v396 = vld [vmem:[%s317 + $0x30] sm:$0xf]
        %v397 = vld [vmem:[%s317 + $0x34] sm:$0xf]
        %v398 = vld [vmem:[%s317 + $0x38] sm:$0xf]
        %v399 = vld [vmem:[%s317 + $0x3c] sm:$0xf]
        %v400 = vld [vmem:[%s317 + $0x40] sm:$0xf]
        %v401 = vld [vmem:[%s317 + $0x44] sm:$0xf]
        %v402 = vld [vmem:[%s317 + $0x48] sm:$0xf]
        %v403 = vld [vmem:[%s317 + $0x4c] sm:$0xf]
        %v404 = vld [vmem:[%s317 + $0x50] sm:$0xf]
        %v405 = vld [vmem:[%s317 + $0x54] sm:$0xf]
        %v406 = vld [vmem:[%s317 + $0x58] sm:$0xf]
        %v407 = vld [vmem:[%s317 + $0x5c] sm:$0xf]
        %v408 = vld [vmem:[%s324] sm:$0x1]
        %v410 = vlaneseq
        %v411 = vshrl.u32 %v410, 7
        %v412 = vsub.s32 0, %v411
        %v413 = vrot.slane %v408, %v412
        %v417 = vunpack.c.l.b16 %v360
        %v418 = vunpack.c.l.b16 %v361
        %v419 = vpack.c.b16 %v418, %v417
        %vm420 = vcmask 64512
        %v422 = vsel %vm420, %v348, 0
        %v425 = vsel %vm420, %v419, 0
        %427 = vmatprep.subr.bf16.mxu0 0
        %428 = vmatpush1.bf16.xpose.msra.mxu0 %v425
        %429 = vmatprep.subr.bf16.mxu0 0
        %430 = vmatpush1.bf16.xpose.msra.mxu0 0
        %431 = vmatprep.subr.bf16.mxu0 0
        %432 = vmatpush1.bf16.xpose.msra.mxu0 0
        %433 = vmatprep.subr.bf16.mxu0 0
        %434 = vmatpush1.bf16.xpose.msra.mxu0 0
        %435 = vmatprep.subr.bf16.mxu0 0
        %436 = vmatpush1.bf16.xpose.msra.mxu0 0
        %437 = vmatprep.subr.bf16.mxu0 0
        %438 = vmatpush1.bf16.xpose.msra.mxu0 0
        %439 = vmatprep.subr.bf16.mxu0 0
        %440 = vmatpush1.bf16.xpose.msra.mxu0 0
        %441 = vmatprep.subr.bf16.mxu0 0
        %442 = vmatpush1.bf16.xpose.msra.mxu0 0
        %443 = vmatprep.subr.bf16.mxu0 0
        %444 = vmatpush1.bf16.xpose.msra.mxu0 0
        %445 = vmatprep.subr.bf16.mxu0 0
        %446 = vmatpush1.bf16.xpose.msra.mxu0 0
        %447 = vmatprep.subr.bf16.mxu0 0
        %448 = vmatpush1.bf16.xpose.msra.mxu0 0
        %449 = vmatprep.subr.bf16.mxu0 0
        %450 = vmatpush1.bf16.xpose.msra.mxu0 0
        %451 = vmatprep.subr.bf16.mxu0 0
        %452 = vmatpush1.bf16.xpose.msra.mxu0 0
        %453 = vmatprep.subr.bf16.mxu0 0
        %454 = vmatpush1.bf16.xpose.msra.mxu0 0
        %455 = vmatprep.subr.bf16.mxu0 0
        %456 = vmatpush1.bf16.xpose.msra.mxu0 0
        %457 = vmatprep.subr.bf16.mxu0 0
        %458 = vmatpush1.bf16.xpose.msra.mxu0 0
        %459 = vmatprep.mubr.bf16.mxu0 0
        %460 = vmatmul.mubr.bf16.gmra.mrb[0].mxu0 %v422
        %v461 = vpop.f32.mrb[0].mxu0
        %v462 = vadd.f32 %v413, %v461
        %v463 = vpop.f32.mrb[0].mxu0
        %v464 = vpop.f32.mrb[0].mxu0
        %v465 = vpop.f32.mrb[0].mxu0
        %466 = vdwg.mxu0
        %v469 = vunpack.c.l.b16 %v362
        %v470 = vunpack.c.l.b16 %v363
        %v471 = vpack.c.b16 %v470, %v469
        %v473 = vsel %vm420, %v349, 0
        %v476 = vsel %vm420, %v471, 0
        %478 = vmatprep.subr.bf16.mxu0 0
        %479 = vmatpush1.bf16.xpose.msra.mxu0 %v476
        %480 = vmatprep.subr.bf16.mxu0 0
        %481 = vmatpush1.bf16.xpose.msra.mxu0 0
        %482 = vmatprep.subr.bf16.mxu0 0
        %483 = vmatpush1.bf16.xpose.msra.mxu0 0
        %484 = vmatprep.subr.bf16.mxu0 0
        %485 = vmatpush1.bf16.xpose.msra.mxu0 0
        %486 = vmatprep.subr.bf16.mxu0 0
        %487 = vmatpush1.bf16.xpose.msra.mxu0 0
        %488 = vmatprep.subr.bf16.mxu0 0
        %489 = vmatpush1.bf16.xpose.msra.mxu0 0
        %490 = vmatprep.subr.bf16.mxu0 0
        %491 = vmatpush1.bf16.xpose.msra.mxu0 0
        %492 = vmatprep.subr.bf16.mxu0 0
        %493 = vmatpush1.bf16.xpose.msra.mxu0 0
        %494 = vmatprep.subr.bf16.mxu0 0
        %495 = vmatpush1.bf16.xpose.msra.mxu0 0
        %496 = vmatprep.subr.bf16.mxu0 0
        %497 = vmatpush1.bf16.xpose.msra.mxu0 0
        %498 = vmatprep.subr.bf16.mxu0 0
        %499 = vmatpush1.bf16.xpose.msra.mxu0 0
        %500 = vmatprep.subr.bf16.mxu0 0
        %501 = vmatpush1.bf16.xpose.msra.mxu0 0
        %502 = vmatprep.subr.bf16.mxu0 0
        %503 = vmatpush1.bf16.xpose.msra.mxu0 0
        %504 = vmatprep.subr.bf16.mxu0 0
        %505 = vmatpush1.bf16.xpose.msra.mxu0 0
        %506 = vmatprep.subr.bf16.mxu0 0
        %507 = vmatpush1.bf16.xpose.msra.mxu0 0
        %508 = vmatprep.subr.bf16.mxu0 0
        %509 = vmatpush1.bf16.xpose.msra.mxu0 0
        %510 = vmatprep.mubr.bf16.mxu0 0
        %511 = vmatmul.mubr.bf16.gmra.mrb[0].mxu0 %v473
        %v512 = vpop.f32.mrb[0].mxu0
        %v513 = vadd.f32 %v413, %v512
        %v514 = vpop.f32.mrb[0].mxu0
        %v515 = vpop.f32.mrb[0].mxu0
        %v516 = vpop.f32.mrb[0].mxu0
        %517 = vdwg.mxu0
        %v520 = vunpack.c.l.b16 %v364
        %v521 = vunpack.c.l.b16 %v365
        %v522 = vpack.c.b16 %v521, %v520
        %v524 = vsel %vm420, %v350, 0
        %v527 = vsel %vm420, %v522, 0
        %529 = vmatprep.subr.bf16.mxu0 0
        %530 = vmatpush1.bf16.xpose.msra.mxu0 %v527
        %531 = vmatprep.subr.bf16.mxu0 0
        %532 = vmatpush1.bf16.xpose.msra.mxu0 0
        %533 = vmatprep.subr.bf16.mxu0 0
        %534 = vmatpush1.bf16.xpose.msra.mxu0 0
        %535 = vmatprep.subr.bf16.mxu0 0
        %536 = vmatpush1.bf16.xpose.msra.mxu0 0
        %537 = vmatprep.subr.bf16.mxu0 0
        %538 = vmatpush1.bf16.xpose.msra.mxu0 0
        %539 = vmatprep.subr.bf16.mxu0 0
        %540 = vmatpush1.bf16.xpose.msra.mxu0 0
        %541 = vmatprep.subr.bf16.mxu0 0
        %542 = vmatpush1.bf16.xpose.msra.mxu0 0
        %543 = vmatprep.subr.bf16.mxu0 0
        %544 = vmatpush1.bf16.xpose.msra.mxu0 0
        %545 = vmatprep.subr.bf16.mxu0 0
        %546 = vmatpush1.bf16.xpose.msra.mxu0 0
        %547 = vmatprep.subr.bf16.mxu0 0
        %548 = vmatpush1.bf16.xpose.msra.mxu0 0
        %549 = vmatprep.subr.bf16.mxu0 0
        %550 = vmatpush1.bf16.xpose.msra.mxu0 0
        %551 = vmatprep.subr.bf16.mxu0 0
        %552 = vmatpush1.bf16.xpose.msra.mxu0 0
        %553 = vmatprep.subr.bf16.mxu0 0
        %554 = vmatpush1.bf16.xpose.msra.mxu0 0
        %555 = vmatprep.subr.bf16.mxu0 0
        %556 = vmatpush1.bf16.xpose.msra.mxu0 0
        %557 = vmatprep.subr.bf16.mxu0 0
        %558 = vmatpush1.bf16.xpose.msra.mxu0 0
        %559 = vmatprep.subr.bf16.mxu0 0
        %560 = vmatpush1.bf16.xpose.msra.mxu0 0
        %561 = vmatprep.mubr.bf16.mxu0 0
        %562 = vmatmul.mubr.bf16.gmra.mrb[0].mxu0 %v524
        %v563 = vpop.f32.mrb[0].mxu0
        %v564 = vadd.f32 %v413, %v563
        %v565 = vpop.f32.mrb[0].mxu0
        %v566 = vpop.f32.mrb[0].mxu0
        %v567 = vpop.f32.mrb[0].mxu0
        %568 = vdwg.mxu0
        %v571 = vunpack.c.l.b16 %v366
        %v572 = vunpack.c.l.b16 %v367
        %v573 = vpack.c.b16 %v572, %v571
        %v575 = vsel %vm420, %v351, 0
        %v578 = vsel %vm420, %v573, 0
        %580 = vmatprep.subr.bf16.mxu0 0
        %581 = vmatpush1.bf16.xpose.msra.mxu0 %v578
        %582 = vmatprep.subr.bf16.mxu0 0
        %583 = vmatpush1.bf16.xpose.msra.mxu0 0
        %584 = vmatprep.subr.bf16.mxu0 0
        %585 = vmatpush1.bf16.xpose.msra.mxu0 0
        %586 = vmatprep.subr.bf16.mxu0 0
        %587 = vmatpush1.bf16.xpose.msra.mxu0 0
        %588 = vmatprep.subr.bf16.mxu0 0
        %589 = vmatpush1.bf16.xpose.msra.mxu0 0
        %590 = vmatprep.subr.bf16.mxu0 0
        %591 = vmatpush1.bf16.xpose.msra.mxu0 0
        %592 = vmatprep.subr.bf16.mxu0 0
        %593 = vmatpush1.bf16.xpose.msra.mxu0 0
        %594 = vmatprep.subr.bf16.mxu0 0
        %595 = vmatpush1.bf16.xpose.msra.mxu0 0
        %596 = vmatprep.subr.bf16.mxu0 0
        %597 = vmatpush1.bf16.xpose.msra.mxu0 0
        %598 = vmatprep.subr.bf16.mxu0 0
        %599 = vmatpush1.bf16.xpose.msra.mxu0 0
        %600 = vmatprep.subr.bf16.mxu0 0
        %601 = vmatpush1.bf16.xpose.msra.mxu0 0
        %602 = vmatprep.subr.bf16.mxu0 0
        %603 = vmatpush1.bf16.xpose.msra.mxu0 0
        %604 = vmatprep.subr.bf16.mxu0 0
        %605 = vmatpush1.bf16.xpose.msra.mxu0 0
        %606 = vmatprep.subr.bf16.mxu0 0
        %607 = vmatpush1.bf16.xpose.msra.mxu0 0
        %608 = vmatprep.subr.bf16.mxu0 0
        %609 = vmatpush1.bf16.xpose.msra.mxu0 0
        %610 = vmatprep.subr.bf16.mxu0 0
        %611 = vmatpush1.bf16.xpose.msra.mxu0 0
        %612 = vmatprep.mubr.bf16.mxu0 0
        %613 = vmatmul.mubr.bf16.gmra.mrb[0].mxu0 %v575
        %v614 = vpop.f32.mrb[0].mxu0
        %v615 = vadd.f32 %v413, %v614
        %v616 = vpop.f32.mrb[0].mxu0
        %v617 = vpop.f32.mrb[0].mxu0
        %v618 = vpop.f32.mrb[0].mxu0
        %619 = vdwg.mxu0
        %v622 = vunpack.c.l.b16 %v368
        %v623 = vunpack.c.l.b16 %v369
        %v624 = vpack.c.b16 %v623, %v622
        %v626 = vsel %vm420, %v352, 0
        %v629 = vsel %vm420, %v624, 0
        %631 = vmatprep.subr.bf16.mxu0 0
        %632 = vmatpush1.bf16.xpose.msra.mxu0 %v629
        %633 = vmatprep.subr.bf16.mxu0 0
        %634 = vmatpush1.bf16.xpose.msra.mxu0 0
        %635 = vmatprep.subr.bf16.mxu0 0
        %636 = vmatpush1.bf16.xpose.msra.mxu0 0
        %637 = vmatprep.subr.bf16.mxu0 0
        %638 = vmatpush1.bf16.xpose.msra.mxu0 0
        %639 = vmatprep.subr.bf16.mxu0 0
        %640 = vmatpush1.bf16.xpose.msra.mxu0 0
        %641 = vmatprep.subr.bf16.mxu0 0
        %642 = vmatpush1.bf16.xpose.msra.mxu0 0
        %643 = vmatprep.subr.bf16.mxu0 0
        %644 = vmatpush1.bf16.xpose.msra.mxu0 0
        %645 = vmatprep.subr.bf16.mxu0 0
        %646 = vmatpush1.bf16.xpose.msra.mxu0 0
        %647 = vmatprep.subr.bf16.mxu0 0
        %648 = vmatpush1.bf16.xpose.msra.mxu0 0
        %649 = vmatprep.subr.bf16.mxu0 0
        %650 = vmatpush1.bf16.xpose.msra.mxu0 0
        %651 = vmatprep.subr.bf16.mxu0 0
        %652 = vmatpush1.bf16.xpose.msra.mxu0 0
        %653 = vmatprep.subr.bf16.mxu0 0
        %654 = vmatpush1.bf16.xpose.msra.mxu0 0
        %655 = vmatprep.subr.bf16.mxu0 0
        %656 = vmatpush1.bf16.xpose.msra.mxu0 0
        %657 = vmatprep.subr.bf16.mxu0 0
        %658 = vmatpush1.bf16.xpose.msra.mxu0 0
        %659 = vmatprep.subr.bf16.mxu0 0
        %660 = vmatpush1.bf16.xpose.msra.mxu0 0
        %661 = vmatprep.subr.bf16.mxu0 0
        %662 = vmatpush1.bf16.xpose.msra.mxu0 0
        %663 = vmatprep.mubr.bf16.mxu0 0
        %664 = vmatmul.mubr.bf16.gmra.mrb[0].mxu0 %v626
        %v665 = vpop.f32.mrb[0].mxu0
        %v666 = vadd.f32 %v413, %v665
        %v667 = vpop.f32.mrb[0].mxu0
        %v668 = vpop.f32.mrb[0].mxu0
        %v669 = vpop.f32.mrb[0].mxu0
        %670 = vdwg.mxu0
        %v673 = vunpack.c.l.b16 %v370
        %v674 = vunpack.c.l.b16 %v371
        %v675 = vpack.c.b16 %v674, %v673
        %v677 = vsel %vm420, %v353, 0
        %v680 = vsel %vm420, %v675, 0
        %682 = vmatprep.subr.bf16.mxu0 0
        %683 = vmatpush1.bf16.xpose.msra.mxu0 %v680
        %684 = vmatprep.subr.bf16.mxu0 0
        %685 = vmatpush1.bf16.xpose.msra.mxu0 0
        %686 = vmatprep.subr.bf16.mxu0 0
        %687 = vmatpush1.bf16.xpose.msra.mxu0 0
        %688 = vmatprep.subr.bf16.mxu0 0
        %689 = vmatpush1.bf16.xpose.msra.mxu0 0
        %690 = vmatprep.subr.bf16.mxu0 0
        %691 = vmatpush1.bf16.xpose.msra.mxu0 0
        %692 = vmatprep.subr.bf16.mxu0 0
        %693 = vmatpush1.bf16.xpose.msra.mxu0 0
        %694 = vmatprep.subr.bf16.mxu0 0
        %695 = vmatpush1.bf16.xpose.msra.mxu0 0
        %696 = vmatprep.subr.bf16.mxu0 0
        %697 = vmatpush1.bf16.xpose.msra.mxu0 0
        %698 = vmatprep.subr.bf16.mxu0 0
        %699 = vmatpush1.bf16.xpose.msra.mxu0 0
        %700 = vmatprep.subr.bf16.mxu0 0
        %701 = vmatpush1.bf16.xpose.msra.mxu0 0
        %702 = vmatprep.subr.bf16.mxu0 0
        %703 = vmatpush1.bf16.xpose.msra.mxu0 0
        %704 = vmatprep.subr.bf16.mxu0 0
        %705 = vmatpush1.bf16.xpose.msra.mxu0 0
        %706 = vmatprep.subr.bf16.mxu0 0
        %707 = vmatpush1.bf16.xpose.msra.mxu0 0
        %708 = vmatprep.subr.bf16.mxu0 0
        %709 = vmatpush1.bf16.xpose.msra.mxu0 0
        %710 = vmatprep.subr.bf16.mxu0 0
        %711 = vmatpush1.bf16.xpose.msra.mxu0 0
        %712 = vmatprep.subr.bf16.mxu0 0
        %713 = vmatpush1.bf16.xpose.msra.mxu0 0
        %714 = vmatprep.mubr.bf16.mxu0 0
        %715 = vmatmul.mubr.bf16.gmra.mrb[0].mxu0 %v677
        %v716 = vpop.f32.mrb[0].mxu0
        %v717 = vadd.f32 %v413, %v716
        %v718 = vpop.f32.mrb[0].mxu0
        %v719 = vpop.f32.mrb[0].mxu0
        %v720 = vpop.f32.mrb[0].mxu0
        %721 = vdwg.mxu0
        %v724 = vunpack.c.l.b16 %v372
        %v725 = vunpack.c.l.b16 %v373
        %v726 = vpack.c.b16 %v725, %v724
        %v728 = vsel %vm420, %v354, 0
        %v731 = vsel %vm420, %v726, 0
        %733 = vmatprep.subr.bf16.mxu0 0
        %734 = vmatpush1.bf16.xpose.msra.mxu0 %v731
        %735 = vmatprep.subr.bf16.mxu0 0
        %736 = vmatpush1.bf16.xpose.msra.mxu0 0
        %737 = vmatprep.subr.bf16.mxu0 0
        %738 = vmatpush1.bf16.xpose.msra.mxu0 0
        %739 = vmatprep.subr.bf16.mxu0 0
        %740 = vmatpush1.bf16.xpose.msra.mxu0 0
        %741 = vmatprep.subr.bf16.mxu0 0
        %742 = vmatpush1.bf16.xpose.msra.mxu0 0
        %743 = vmatprep.subr.bf16.mxu0 0
        %744 = vmatpush1.bf16.xpose.msra.mxu0 0
        %745 = vmatprep.subr.bf16.mxu0 0
        %746 = vmatpush1.bf16.xpose.msra.mxu0 0
        %747 = vmatprep.subr.bf16.mxu0 0
        %748 = vmatpush1.bf16.xpose.msra.mxu0 0
        %749 = vmatprep.subr.bf16.mxu0 0
        %750 = vmatpush1.bf16.xpose.msra.mxu0 0
        %751 = vmatprep.subr.bf16.mxu0 0
        %752 = vmatpush1.bf16.xpose.msra.mxu0 0
        %753 = vmatprep.subr.bf16.mxu0 0
        %754 = vmatpush1.bf16.xpose.msra.mxu0 0
        %755 = vmatprep.subr.bf16.mxu0 0
        %756 = vmatpush1.bf16.xpose.msra.mxu0 0
        %757 = vmatprep.subr.bf16.mxu0 0
        %758 = vmatpush1.bf16.xpose.msra.mxu0 0
        %759 = vmatprep.subr.bf16.mxu0 0
        %760 = vmatpush1.bf16.xpose.msra.mxu0 0
        %761 = vmatprep.subr.bf16.mxu0 0
        %762 = vmatpush1.bf16.xpose.msra.mxu0 0
        %763 = vmatprep.subr.bf16.mxu0 0
        %764 = vmatpush1.bf16.xpose.msra.mxu0 0
        %765 = vmatprep.mubr.bf16.mxu0 0
        %766 = vmatmul.mubr.bf16.gmra.mrb[0].mxu0 %v728
        %v767 = vpop.f32.mrb[0].mxu0
        %v768 = vadd.f32 %v413, %v767
        %v769 = vpop.f32.mrb[0].mxu0
        %v770 = vpop.f32.mrb[0].mxu0
        %v771 = vpop.f32.mrb[0].mxu0
        %772 = vdwg.mxu0
        %v775 = vunpack.c.l.b16 %v374
        %v776 = vunpack.c.l.b16 %v375
        %v777 = vpack.c.b16 %v776, %v775
        %v779 = vsel %vm420, %v355, 0
        %v782 = vsel %vm420, %v777, 0
        %784 = vmatprep.subr.bf16.mxu0 0
        %785 = vmatpush1.bf16.xpose.msra.mxu0 %v782
        %786 = vmatprep.subr.bf16.mxu0 0
        %787 = vmatpush1.bf16.xpose.msra.mxu0 0
        %788 = vmatprep.subr.bf16.mxu0 0
        %789 = vmatpush1.bf16.xpose.msra.mxu0 0
        %790 = vmatprep.subr.bf16.mxu0 0
        %791 = vmatpush1.bf16.xpose.msra.mxu0 0
        %792 = vmatprep.subr.bf16.mxu0 0
        %793 = vmatpush1.bf16.xpose.msra.mxu0 0
        %794 = vmatprep.subr.bf16.mxu0 0
        %795 = vmatpush1.bf16.xpose.msra.mxu0 0
        %796 = vmatprep.subr.bf16.mxu0 0
        %797 = vmatpush1.bf16.xpose.msra.mxu0 0
        %798 = vmatprep.subr.bf16.mxu0 0
        %799 = vmatpush1.bf16.xpose.msra.mxu0 0
        %800 = vmatprep.subr.bf16.mxu0 0
        %801 = vmatpush1.bf16.xpose.msra.mxu0 0
        %802 = vmatprep.subr.bf16.mxu0 0
        %803 = vmatpush1.bf16.xpose.msra.mxu0 0
        %804 = vmatprep.subr.bf16.mxu0 0
        %805 = vmatpush1.bf16.xpose.msra.mxu0 0
        %806 = vmatprep.subr.bf16.mxu0 0
        %807 = vmatpush1.bf16.xpose.msra.mxu0 0
        %808 = vmatprep.subr.bf16.mxu0 0
        %809 = vmatpush1.bf16.xpose.msra.mxu0 0
        %810 = vmatprep.subr.bf16.mxu0 0
        %811 = vmatpush1.bf16.xpose.msra.mxu0 0
        %812 = vmatprep.subr.bf16.mxu0 0
        %813 = vmatpush1.bf16.xpose.msra.mxu0 0
        %814 = vmatprep.subr.bf16.mxu0 0
        %815 = vmatpush1.bf16.xpose.msra.mxu0 0
        %816 = vmatprep.mubr.bf16.mxu0 0
        %817 = vmatmul.mubr.bf16.gmra.mrb[0].mxu0 %v779
        %v818 = vpop.f32.mrb[0].mxu0
        %v819 = vadd.f32 %v413, %v818
        %v820 = vpop.f32.mrb[0].mxu0
        %v821 = vpop.f32.mrb[0].mxu0
        %v822 = vpop.f32.mrb[0].mxu0
        %823 = vdwg.mxu0
        %v826 = vunpack.c.l.b16 %v376
        %v827 = vunpack.c.l.b16 %v377
        %v828 = vpack.c.b16 %v827, %v826
        %v830 = vsel %vm420, %v356, 0
        %v833 = vsel %vm420, %v828, 0
        %835 = vmatprep.subr.bf16.mxu0 0
        %836 = vmatpush1.bf16.xpose.msra.mxu0 %v833
        %837 = vmatprep.subr.bf16.mxu0 0
        %838 = vmatpush1.bf16.xpose.msra.mxu0 0
        %839 = vmatprep.subr.bf16.mxu0 0
        %840 = vmatpush1.bf16.xpose.msra.mxu0 0
        %841 = vmatprep.subr.bf16.mxu0 0
        %842 = vmatpush1.bf16.xpose.msra.mxu0 0
        %843 = vmatprep.subr.bf16.mxu0 0
        %844 = vmatpush1.bf16.xpose.msra.mxu0 0
        %845 = vmatprep.subr.bf16.mxu0 0
        %846 = vmatpush1.bf16.xpose.msra.mxu0 0
        %847 = vmatprep.subr.bf16.mxu0 0
        %848 = vmatpush1.bf16.xpose.msra.mxu0 0
        %849 = vmatprep.subr.bf16.mxu0 0
        %850 = vmatpush1.bf16.xpose.msra.mxu0 0
        %851 = vmatprep.subr.bf16.mxu0 0
        %852 = vmatpush1.bf16.xpose.msra.mxu0 0
        %853 = vmatprep.subr.bf16.mxu0 0
        %854 = vmatpush1.bf16.xpose.msra.mxu0 0
        %855 = vmatprep.subr.bf16.mxu0 0
        %856 = vmatpush1.bf16.xpose.msra.mxu0 0
        %857 = vmatprep.subr.bf16.mxu0 0
        %858 = vmatpush1.bf16.xpose.msra.mxu0 0
        %859 = vmatprep.subr.bf16.mxu0 0
        %860 = vmatpush1.bf16.xpose.msra.mxu0 0
        %861 = vmatprep.subr.bf16.mxu0 0
        %862 = vmatpush1.bf16.xpose.msra.mxu0 0
        %863 = vmatprep.subr.bf16.mxu0 0
        %864 = vmatpush1.bf16.xpose.msra.mxu0 0
        %865 = vmatprep.subr.bf16.mxu0 0
        %866 = vmatpush1.bf16.xpose.msra.mxu0 0
        %867 = vmatprep.mubr.bf16.mxu0 0
        %868 = vmatmul.mubr.bf16.gmra.mrb[0].mxu0 %v830
        %v869 = vpop.f32.mrb[0].mxu0
        %v870 = vadd.f32 %v413, %v869
        %v871 = vpop.f32.mrb[0].mxu0
        %v872 = vpop.f32.mrb[0].mxu0
        %v873 = vpop.f32.mrb[0].mxu0
        %874 = vdwg.mxu0
        %v877 = vunpack.c.l.b16 %v378
        %v878 = vunpack.c.l.b16 %v379
        %v879 = vpack.c.b16 %v878, %v877
        %v881 = vsel %vm420, %v357, 0
        %v884 = vsel %vm420, %v879, 0
        %886 = vmatprep.subr.bf16.mxu0 0
        %887 = vmatpush1.bf16.xpose.msra.mxu0 %v884
        %888 = vmatprep.subr.bf16.mxu0 0
        %889 = vmatpush1.bf16.xpose.msra.mxu0 0
        %890 = vmatprep.subr.bf16.mxu0 0
        %891 = vmatpush1.bf16.xpose.msra.mxu0 0
        %892 = vmatprep.subr.bf16.mxu0 0
        %893 = vmatpush1.bf16.xpose.msra.mxu0 0
        %894 = vmatprep.subr.bf16.mxu0 0
        %895 = vmatpush1.bf16.xpose.msra.mxu0 0
        %896 = vmatprep.subr.bf16.mxu0 0
        %897 = vmatpush1.bf16.xpose.msra.mxu0 0
        %898 = vmatprep.subr.bf16.mxu0 0
        %899 = vmatpush1.bf16.xpose.msra.mxu0 0
        %900 = vmatprep.subr.bf16.mxu0 0
        %901 = vmatpush1.bf16.xpose.msra.mxu0 0
        %902 = vmatprep.subr.bf16.mxu0 0
        %903 = vmatpush1.bf16.xpose.msra.mxu0 0
        %904 = vmatprep.subr.bf16.mxu0 0
        %905 = vmatpush1.bf16.xpose.msra.mxu0 0
        %906 = vmatprep.subr.bf16.mxu0 0
        %907 = vmatpush1.bf16.xpose.msra.mxu0 0
        %908 = vmatprep.subr.bf16.mxu0 0
        %909 = vmatpush1.bf16.xpose.msra.mxu0 0
        %910 = vmatprep.subr.bf16.mxu0 0
        %911 = vmatpush1.bf16.xpose.msra.mxu0 0
        %912 = vmatprep.subr.bf16.mxu0 0
        %913 = vmatpush1.bf16.xpose.msra.mxu0 0
        %914 = vmatprep.subr.bf16.mxu0 0
        %915 = vmatpush1.bf16.xpose.msra.mxu0 0
        %916 = vmatprep.subr.bf16.mxu0 0
        %917 = vmatpush1.bf16.xpose.msra.mxu0 0
        %918 = vmatprep.mubr.bf16.mxu0 0
        %919 = vmatmul.mubr.bf16.gmra.mrb[0].mxu0 %v881
        %v920 = vpop.f32.mrb[0].mxu0
        %v921 = vadd.f32 %v413, %v920
        %v922 = vpop.f32.mrb[0].mxu0
        %v923 = vpop.f32.mrb[0].mxu0
        %v924 = vpop.f32.mrb[0].mxu0
        %925 = vdwg.mxu0
        %v928 = vunpack.c.l.b16 %v380
        %v929 = vunpack.c.l.b16 %v381
        %v930 = vpack.c.b16 %v929, %v928
        %v932 = vsel %vm420, %v358, 0
        %v935 = vsel %vm420, %v930, 0
        %937 = vmatprep.subr.bf16.mxu0 0
        %938 = vmatpush1.bf16.xpose.msra.mxu0 %v935
        %939 = vmatprep.subr.bf16.mxu0 0
        %940 = vmatpush1.bf16.xpose.msra.mxu0 0
        %941 = vmatprep.subr.bf16.mxu0 0
        %942 = vmatpush1.bf16.xpose.msra.mxu0 0
        %943 = vmatprep.subr.bf16.mxu0 0
        %944 = vmatpush1.bf16.xpose.msra.mxu0 0
        %945 = vmatprep.subr.bf16.mxu0 0
        %946 = vmatpush1.bf16.xpose.msra.mxu0 0
        %947 = vmatprep.subr.bf16.mxu0 0
        %948 = vmatpush1.bf16.xpose.msra.mxu0 0
        %949 = vmatprep.subr.bf16.mxu0 0
        %950 = vmatpush1.bf16.xpose.msra.mxu0 0
        %951 = vmatprep.subr.bf16.mxu0 0
        %952 = vmatpush1.bf16.xpose.msra.mxu0 0
        %953 = vmatprep.subr.bf16.mxu0 0
        %954 = vmatpush1.bf16.xpose.msra.mxu0 0
        %955 = vmatprep.subr.bf16.mxu0 0
        %956 = vmatpush1.bf16.xpose.msra.mxu0 0
        %957 = vmatprep.subr.bf16.mxu0 0
        %958 = vmatpush1.bf16.xpose.msra.mxu0 0
        %959 = vmatprep.subr.bf16.mxu0 0
        %960 = vmatpush1.bf16.xpose.msra.mxu0 0
        %961 = vmatprep.subr.bf16.mxu0 0
        %962 = vmatpush1.bf16.xpose.msra.mxu0 0
        %963 = vmatprep.subr.bf16.mxu0 0
        %964 = vmatpush1.bf16.xpose.msra.mxu0 0
        %965 = vmatprep.subr.bf16.mxu0 0
        %966 = vmatpush1.bf16.xpose.msra.mxu0 0
        %967 = vmatprep.subr.bf16.mxu0 0
        %968 = vmatpush1.bf16.xpose.msra.mxu0 0
        %969 = vmatprep.mubr.bf16.mxu0 0
        %970 = vmatmul.mubr.bf16.gmra.mrb[0].mxu0 %v932
        %v971 = vpop.f32.mrb[0].mxu0
        %v972 = vadd.f32 %v413, %v971
        %v973 = vpop.f32.mrb[0].mxu0
        %v974 = vpop.f32.mrb[0].mxu0
        %v975 = vpop.f32.mrb[0].mxu0
        %976 = vdwg.mxu0
        %v979 = vunpack.c.l.b16 %v382
        %v980 = vunpack.c.l.b16 %v383
        %v981 = vpack.c.b16 %v980, %v979
        %v983 = vsel %vm420, %v359, 0
        %v986 = vsel %vm420, %v981, 0
        %988 = vmatprep.subr.bf16.mxu0 0
        %989 = vmatpush1.bf16.xpose.msra.mxu0 %v986
        %990 = vmatprep.subr.bf16.mxu0 0
        %991 = vmatpush1.bf16.xpose.msra.mxu0 0
        %992 = vmatprep.subr.bf16.mxu0 0
        %993 = vmatpush1.bf16.xpose.msra.mxu0 0
        %994 = vmatprep.subr.bf16.mxu0 0
        %995 = vmatpush1.bf16.xpose.msra.mxu0 0
        %996 = vmatprep.subr.bf16.mxu0 0
        %997 = vmatpush1.bf16.xpose.msra.mxu0 0
        %998 = vmatprep.subr.bf16.mxu0 0
        %999 = vmatpush1.bf16.xpose.msra.mxu0 0
        %1000 = vmatprep.subr.bf16.mxu0 0
        %1001 = vmatpush1.bf16.xpose.msra.mxu0 0
        %1002 = vmatprep.subr.bf16.mxu0 0
        %1003 = vmatpush1.bf16.xpose.msra.mxu0 0
        %1004 = vmatprep.subr.bf16.mxu0 0
        %1005 = vmatpush1.bf16.xpose.msra.mxu0 0
        %1006 = vmatprep.subr.bf16.mxu0 0
        %1007 = vmatpush1.bf16.xpose.msra.mxu0 0
        %1008 = vmatprep.subr.bf16.mxu0 0
        %1009 = vmatpush1.bf16.xpose.msra.mxu0 0
        %1010 = vmatprep.subr.bf16.mxu0 0
        %1011 = vmatpush1.bf16.xpose.msra.mxu0 0
        %1012 = vmatprep.subr.bf16.mxu0 0
        %1013 = vmatpush1.bf16.xpose.msra.mxu0 0
        %1014 = vmatprep.subr.bf16.mxu0 0
        %1015 = vmatpush1.bf16.xpose.msra.mxu0 0
        %1016 = vmatprep.subr.bf16.mxu0 0
        %1017 = vmatpush1.bf16.xpose.msra.mxu0 0
        %1018 = vmatprep.subr.bf16.mxu0 0
        %1019 = vmatpush1.bf16.xpose.msra.mxu0 0
        %1020 = vmatprep.mubr.bf16.mxu0 0
        %1021 = vmatmul.mubr.bf16.gmra.mrb[0].mxu0 %v983
        %v1022 = vpop.f32.mrb[0].mxu0
        %v1023 = vadd.f32 %v413, %v1022
        %v1024 = vpop.f32.mrb[0].mxu0
        %v1025 = vpop.f32.mrb[0].mxu0
        %v1026 = vpop.f32.mrb[0].mxu0
        %1027 = vdwg.mxu0
        %v1028 = vld [vmem:[#allocation2] sm:$0xff]
        %v1029 = vld [vmem:[#allocation2 + $0x8] sm:$0xf]
        %vm1030 = vcmask 130048
        %v1031 = vsel %vm1030, %v462, -inf
        %1032 = vmax.xlane.f32.xlu0 %v1031
        %v1033 = vpop.xlane.xlu0 %1032
        %v1034 = vsel %vm1030, %v513, -inf
        %1035 = vmax.xlane.f32.xlu0 %v1034
        %v1036 = vpop.xlane.xlu0 %1035
        %v1037 = vsel %vm1030, %v564, -inf
        %1038 = vmax.xlane.f32.xlu0 %v1037
        %v1039 = vpop.xlane.xlu0 %1038
        %v1040 = vsel %vm1030, %v615, -inf
        %1041 = vmax.xlane.f32.xlu0 %v1040
        %v1042 = vpop.xlane.xlu0 %1041
        %v1043 = vsel %vm1030, %v666, -inf
        %1044 = vmax.xlane.f32.xlu0 %v1043
        %v1045 = vpop.xlane.xlu0 %1044
        %v1046 = vsel %vm1030, %v717, -inf
        %1047 = vmax.xlane.f32.xlu0 %v1046
        %v1048 = vpop.xlane.xlu0 %1047
        %v1049 = vsel %vm1030, %v768, -inf
        %1050 = vmax.xlane.f32.xlu0 %v1049
        %v1051 = vpop.xlane.xlu0 %1050
        %v1052 = vsel %vm1030, %v819, -inf
        %1053 = vmax.xlane.f32.xlu0 %v1052
        %v1054 = vpop.xlane.xlu0 %1053
        %v1055 = vsel %vm1030, %v870, -inf
        %1056 = vmax.xlane.f32.xlu0 %v1055
        %v1057 = vpop.xlane.xlu0 %1056
        %v1058 = vsel %vm1030, %v921, -inf
        %1059 = vmax.xlane.f32.xlu0 %v1058
        %v1060 = vpop.xlane.xlu0 %1059
        %v1061 = vsel %vm1030, %v972, -inf
        %1062 = vmax.xlane.f32.xlu0 %v1061
        %v1063 = vpop.xlane.xlu0 %1062
        %v1064 = vsel %vm1030, %v1023, -inf
        %1065 = vmax.xlane.f32.xlu0 %v1064
        %v1066 = vpop.xlane.xlu0 %1065
        %v1079 = vlaneseq
        %v1080 = vand.u32 %v1079, 127
        %v1081 = vlaneseq
        %v1082 = vshrl.u32 %v1081, 7
        %v1083 = vsub.s32 %v1080, %v1082
        %v1084 = vrot.slane %v1033, %v1083
        %v1085 = vlaneseq
        %v1086 = vshrl.u32 %v1085, 7
        %v1087 = vsub.s32 %v1080, %v1086
        %v1088 = vrot.slane %v1036, %v1087
        %v1089 = vlaneseq
        %v1090 = vshrl.u32 %v1089, 7
        %v1091 = vsub.s32 %v1080, %v1090
        %v1092 = vrot.slane %v1039, %v1091
        %v1093 = vlaneseq
        %v1094 = vshrl.u32 %v1093, 7
        %v1095 = vsub.s32 %v1080, %v1094
        %v1096 = vrot.slane %v1042, %v1095
        %v1097 = vlaneseq
        %v1098 = vshrl.u32 %v1097, 7
        %v1099 = vsub.s32 %v1080, %v1098
        %v1100 = vrot.slane %v1045, %v1099
        %v1101 = vlaneseq
        %v1102 = vshrl.u32 %v1101, 7
        %v1103 = vsub.s32 %v1080, %v1102
        %v1104 = vrot.slane %v1048, %v1103
        %v1105 = vlaneseq
        %v1106 = vshrl.u32 %v1105, 7
        %v1107 = vsub.s32 %v1080, %v1106
        %v1108 = vrot.slane %v1051, %v1107
        %v1109 = vlaneseq
        %v1110 = vshrl.u32 %v1109, 7
        %v1111 = vsub.s32 %v1080, %v1110
        %v1112 = vrot.slane %v1054, %v1111
        %v1113 = vlaneseq
        %v1114 = vshrl.u32 %v1113, 7
        %v1115 = vsub.s32 %v1080, %v1114
        %v1116 = vrot.slane %v1057, %v1115
        %v1117 = vlaneseq
        %v1118 = vshrl.u32 %v1117, 7
        %v1119 = vsub.s32 %v1080, %v1118
        %v1120 = vrot.slane %v1060, %v1119
        %v1121 = vlaneseq
        %v1122 = vshrl.u32 %v1121, 7
        %v1123 = vsub.s32 %v1080, %v1122
        %v1124 = vrot.slane %v1063, %v1123
        %v1125 = vlaneseq
        %v1126 = vshrl.u32 %v1125, 7
        %v1127 = vsub.s32 %v1080, %v1126
        %v1128 = vrot.slane %v1066, %v1127
        %vm1129 = vcmask 1041409
        %v1130 = vsel %vm1129, %v1088, %v1084
        %vm1131 = vcmask 1042434
        %v1132 = vsel %vm1131, %v1092, %v1130
        %vm1133 = vcmask 1043459
        %v1134 = vsel %vm1133, %v1096, %v1132
        %vm1135 = vcmask 1044484
        %v1136 = vsel %vm1135, %v1100, %v1134
        %vm1137 = vcmask 1045509
        %v1138 = vsel %vm1137, %v1104, %v1136
        %vm1139 = vcmask 1046534
        %v1140 = vsel %vm1139, %v1108, %v1138
        %vm1141 = vcmask 1047559
        %v1142 = vsel %vm1141, %v1112, %v1140
        %v1143 = vsel %vm1129, %v1120, %v1116
        %v1144 = vsel %vm1131, %v1124, %v1143
        %v1145 = vsel %vm1133, %v1128, %v1144
        %v1148 = vmax.f32 %v1028, %v1142
        %v1149 = vmax.f32 %v1029, %v1145
        %v1150 = vsub.f32 %v1028, %v1148
        %v1151 = vsub.f32 %v1029, %v1149
        %v1152 = vmul.f32 %v1150, 1.442695
        %v1153 = vpow.pop %v1152
        %v1154 = vmul.f32 %v1151, 1.442695
        %v1155 = vpow.pop %v1154
        %v1156 = vlaneseq
        %v1157 = vshrl.u32 %v1156, 7
        %v1158 = vsub.s32 0, %v1157
        %v1159 = vrot.slane %v1148, %v1158
        %1161 = vbcast.lane.b32.xlu0 %v1159, 256
        %v1162 = vpop.permute.xlu0 %1161
        %v1163 = vlaneseq
        %v1164 = vshrl.u32 %v1163, 7
        %v1165 = vsub.s32 1, %v1164
        %v1166 = vrot.slane %v1148, %v1165
        %1168 = vbcast.lane.b32.xlu0 %v1166, 256
        %v1169 = vpop.permute.xlu0 %1168
        %v1170 = vlaneseq
        %v1171 = vshrl.u32 %v1170, 7
        %v1172 = vsub.s32 2, %v1171
        %v1173 = vrot.slane %v1148, %v1172
        %1175 = vbcast.lane.b32.xlu0 %v1173, 256
        %v1176 = vpop.permute.xlu0 %1175
        %v1177 = vlaneseq
        %v1178 = vshrl.u32 %v1177, 7
        %v1179 = vsub.s32 3, %v1178
        %v1180 = vrot.slane %v1148, %v1179
        %1182 = vbcast.lane.b32.xlu0 %v1180, 256
        %v1183 = vpop.permute.xlu0 %1182
        %v1184 = vlaneseq
        %v1185 = vshrl.u32 %v1184, 7
        %v1186 = vsub.s32 4, %v1185
        %v1187 = vrot.slane %v1148, %v1186
        %1189 = vbcast.lane.b32.xlu0 %v1187, 256
        %v1190 = vpop.permute.xlu0 %1189
        %v1191 = vlaneseq
        %v1192 = vshrl.u32 %v1191, 7
        %v1193 = vsub.s32 5, %v1192
        %v1194 = vrot.slane %v1148, %v1193
        %1196 = vbcast.lane.b32.xlu0 %v1194, 256
        %v1197 = vpop.permute.xlu0 %1196
        %v1198 = vlaneseq
        %v1199 = vshrl.u32 %v1198, 7
        %v1200 = vsub.s32 6, %v1199
        %v1201 = vrot.slane %v1148, %v1200
        %1203 = vbcast.lane.b32.xlu0 %v1201, 256
        %v1204 = vpop.permute.xlu0 %1203
        %v1205 = vlaneseq
        %v1206 = vshrl.u32 %v1205, 7
        %v1207 = vsub.s32 7, %v1206
        %v1208 = vrot.slane %v1148, %v1207
        %1210 = vbcast.lane.b32.xlu0 %v1208, 256
        %v1211 = vpop.permute.xlu0 %1210
        %v1212 = vlaneseq
        %v1213 = vshrl.u32 %v1212, 7
        %v1214 = vsub.s32 0, %v1213
        %v1215 = vrot.slane %v1149, %v1214
        %1217 = vbcast.lane.b32.xlu0 %v1215, 256
        %v1218 = vpop.permute.xlu0 %1217
        %v1219 = vlaneseq
        %v1220 = vshrl.u32 %v1219, 7
        %v1221 = vsub.s32 1, %v1220
        %v1222 = vrot.slane %v1149, %v1221
        %1224 = vbcast.lane.b32.xlu0 %v1222, 256
        %v1225 = vpop.permute.xlu0 %1224
        %v1226 = vlaneseq
        %v1227 = vshrl.u32 %v1226, 7
        %v1228 = vsub.s32 2, %v1227
        %v1229 = vrot.slane %v1149, %v1228
        %1231 = vbcast.lane.b32.xlu0 %v1229, 256
        %v1232 = vpop.permute.xlu0 %1231
        %v1233 = vlaneseq
        %v1234 = vshrl.u32 %v1233, 7
        %v1235 = vsub.s32 3, %v1234
        %v1236 = vrot.slane %v1149, %v1235
        %1238 = vbcast.lane.b32.xlu0 %v1236, 256
        %v1239 = vpop.permute.xlu0 %1238
        %v1240 = vsub.f32 %v462, %v1162
        %v1241 = vsub.f32 %v513, %v1169
        %v1242 = vsub.f32 %v564, %v1176
        %v1243 = vsub.f32 %v615, %v1183
        %v1244 = vsub.f32 %v666, %v1190
        %v1245 = vsub.f32 %v717, %v1197
        %v1246 = vsub.f32 %v768, %v1204
        %v1247 = vsub.f32 %v819, %v1211
        %v1248 = vsub.f32 %v870, %v1218
        %v1249 = vsub.f32 %v921, %v1225
        %v1250 = vsub.f32 %v972, %v1232
        %v1251 = vsub.f32 %v1023, %v1239
        %v1252 = vmul.f32 %v1240, 1.442695
        %v1253 = vpow.pop %v1252
        %v1254 = vmul.f32 %v1241, 1.442695
        %v1255 = vpow.pop %v1254
        %v1256 = vmul.f32 %v1242, 1.442695
        %v1257 = vpow.pop %v1256
        %v1258 = vmul.f32 %v1243, 1.442695
        %v1259 = vpow.pop %v1258
        %v1260 = vmul.f32 %v1244, 1.442695
        %v1261 = vpow.pop %v1260
        %v1262 = vmul.f32 %v1245, 1.442695
        %v1263 = vpow.pop %v1262
        %v1264 = vmul.f32 %v1246, 1.442695
        %v1265 = vpow.pop %v1264
        %v1266 = vmul.f32 %v1247, 1.442695
        %v1267 = vpow.pop %v1266
        %v1268 = vmul.f32 %v1248, 1.442695
        %v1269 = vpow.pop %v1268
        %v1270 = vmul.f32 %v1249, 1.442695
        %v1271 = vpow.pop %v1270
        %v1272 = vmul.f32 %v1250, 1.442695
        %v1273 = vpow.pop %v1272
        %v1274 = vmul.f32 %v1251, 1.442695
        %v1275 = vpow.pop %v1274
        %v1276 = vld [vmem:[#allocation3] sm:$0xff]
        %v1277 = vld [vmem:[#allocation3 + $0x8] sm:$0xf]
        %v1278 = vmul.f32 %v1153, %v1276
        %v1279 = vmul.f32 %v1155, %v1277
        %v1280 = vsel %vm1030, %v1253, 0.0
        %1281 = vadd.xlane.f32.xlu0 %v1280
        %v1282 = vpop.xlane.xlu0 %1281
        %v1283 = vsel %vm1030, %v1255, 0.0
        %1284 = vadd.xlane.f32.xlu0 %v1283
        %v1285 = vpop.xlane.xlu0 %1284
        %v1286 = vsel %vm1030, %v1257, 0.0
        %1287 = vadd.xlane.f32.xlu0 %v1286
        %v1288 = vpop.xlane.xlu0 %1287
        %v1289 = vsel %vm1030, %v1259, 0.0
        %1290 = vadd.xlane.f32.xlu0 %v1289
        %v1291 = vpop.xlane.xlu0 %1290
        %v1292 = vsel %vm1030, %v1261, 0.0
        %1293 = vadd.xlane.f32.xlu0 %v1292
        %v1294 = vpop.xlane.xlu0 %1293
        %v1295 = vsel %vm1030, %v1263, 0.0
        %1296 = vadd.xlane.f32.xlu0 %v1295
        %v1297 = vpop.xlane.xlu0 %1296
        %v1298 = vsel %vm1030, %v1265, 0.0
        %1299 = vadd.xlane.f32.xlu0 %v1298
        %v1300 = vpop.xlane.xlu0 %1299
        %v1301 = vsel %vm1030, %v1267, 0.0
        %1302 = vadd.xlane.f32.xlu0 %v1301
        %v1303 = vpop.xlane.xlu0 %1302
        %v1304 = vsel %vm1030, %v1269, 0.0
        %1305 = vadd.xlane.f32.xlu0 %v1304
        %v1306 = vpop.xlane.xlu0 %1305
        %v1307 = vsel %vm1030, %v1271, 0.0
        %1308 = vadd.xlane.f32.xlu0 %v1307
        %v1309 = vpop.xlane.xlu0 %1308
        %v1310 = vsel %vm1030, %v1273, 0.0
        %1311 = vadd.xlane.f32.xlu0 %v1310
        %v1312 = vpop.xlane.xlu0 %1311
        %v1313 = vsel %vm1030, %v1275, 0.0
        %1314 = vadd.xlane.f32.xlu0 %v1313
        %v1315 = vpop.xlane.xlu0 %1314
        %v1328 = vlaneseq
        %v1329 = vshrl.u32 %v1328, 7
        %v1330 = vsub.s32 %v1080, %v1329
        %v1331 = vrot.slane %v1282, %v1330
        %v1332 = vlaneseq
        %v1333 = vshrl.u32 %v1332, 7
        %v1334 = vsub.s32 %v1080, %v1333
        %v1335 = vrot.slane %v1285, %v1334
        %v1336 = vlaneseq
        %v1337 = vshrl.u32 %v1336, 7
        %v1338 = vsub.s32 %v1080, %v1337
        %v1339 = vrot.slane %v1288, %v1338
        %v1340 = vlaneseq
        %v1341 = vshrl.u32 %v1340, 7
        %v1342 = vsub.s32 %v1080, %v1341
        %v1343 = vrot.slane %v1291, %v1342
        %v1344 = vlaneseq
        %v1345 = vshrl.u32 %v1344, 7
        %v1346 = vsub.s32 %v1080, %v1345
        %v1347 = vrot.slane %v1294, %v1346
        %v1348 = vlaneseq
        %v1349 = vshrl.u32 %v1348, 7
        %v1350 = vsub.s32 %v1080, %v1349
        %v1351 = vrot.slane %v1297, %v1350
        %v1352 = vlaneseq
        %v1353 = vshrl.u32 %v1352, 7
        %v1354 = vsub.s32 %v1080, %v1353
        %v1355 = vrot.slane %v1300, %v1354
        %v1356 = vlaneseq
        %v1357 = vshrl.u32 %v1356, 7
        %v1358 = vsub.s32 %v1080, %v1357
        %v1359 = vrot.slane %v1303, %v1358
        %v1360 = vlaneseq
        %v1361 = vshrl.u32 %v1360, 7
        %v1362 = vsub.s32 %v1080, %v1361
        %v1363 = vrot.slane %v1306, %v1362
        %v1364 = vlaneseq
        %v1365 = vshrl.u32 %v1364, 7
        %v1366 = vsub.s32 %v1080, %v1365
        %v1367 = vrot.slane %v1309, %v1366
        %v1368 = vlaneseq
        %v1369 = vshrl.u32 %v1368, 7
        %v1370 = vsub.s32 %v1080, %v1369
        %v1371 = vrot.slane %v1312, %v1370
        %v1372 = vlaneseq
        %v1373 = vshrl.u32 %v1372, 7
        %v1374 = vsub.s32 %v1080, %v1373
        %v1375 = vrot.slane %v1315, %v1374
        %v1376 = vsel %vm1129, %v1335, %v1331
        %v1377 = vsel %vm1131, %v1339, %v1376
        %v1378 = vsel %vm1133, %v1343, %v1377
        %v1379 = vsel %vm1135, %v1347, %v1378
        %v1380 = vsel %vm1137, %v1351, %v1379
        %v1381 = vsel %vm1139, %v1355, %v1380
        %v1382 = vsel %vm1141, %v1359, %v1381
        %v1383 = vsel %vm1129, %v1367, %v1363
        %v1384 = vsel %vm1131, %v1371, %v1383
        %v1385 = vsel %vm1133, %v1375, %v1384
        %v1388 = vadd.f32 %v1278, %v1382
        %v1389 = vadd.f32 %v1279, %v1385
        %1390 = vst.msk [vmem:[#allocation3] sm:$0xff] %vm420, %v1388
        %vm1391 = vcmask 60416
        %1392 = vst.msk [vmem:[#allocation3 + $0x8] sm:$0xf] %vm1391, %v1389
        %v1393 = vpack.c.bf16 %v1253, %v1253
        %v1394 = vpack.c.bf16 %v1255, %v1255
        %v1395 = vpack.c.bf16 %v1257, %v1257
        %v1396 = vpack.c.bf16 %v1259, %v1259
        %v1397 = vpack.c.bf16 %v1261, %v1261
        %v1398 = vpack.c.bf16 %v1263, %v1263
        %v1399 = vpack.c.bf16 %v1265, %v1265
        %v1400 = vpack.c.bf16 %v1267, %v1267
        %v1401 = vpack.c.bf16 %v1269, %v1269
        %v1402 = vpack.c.bf16 %v1271, %v1271
        %v1403 = vpack.c.bf16 %v1273, %v1273
        %v1404 = vpack.c.bf16 %v1275, %v1275
        %v1407 = vunpack.c.l.b16 %v384
        %v1408 = vunpack.c.l.b16 %v385
        %v1409 = vpack.c.b16 %v1408, %v1407
        %v1412 = vsel %vm1030, %v1393, 0
        %1414 = vmatprep.subr.bf16.mxu0 0
        %1415 = vmatpush1.bf16.msra.mxu0 %v1409
        %1416 = vmatprep.subr.bf16.mxu0 0
        %1417 = vmatpush1.bf16.msra.mxu0 0
        %1418 = vmatprep.subr.bf16.mxu0 0
        %1419 = vmatpush1.bf16.msra.mxu0 0
        %1420 = vmatprep.subr.bf16.mxu0 0
        %1421 = vmatpush1.bf16.msra.mxu0 0
        %1422 = vmatprep.subr.bf16.mxu0 0
        %1423 = vmatpush1.bf16.msra.mxu0 0
        %1424 = vmatprep.subr.bf16.mxu0 0
        %1425 = vmatpush1.bf16.msra.mxu0 0
        %1426 = vmatprep.subr.bf16.mxu0 0
        %1427 = vmatpush1.bf16.msra.mxu0 0
        %1428 = vmatprep.subr.bf16.mxu0 0
        %1429 = vmatpush1.bf16.msra.mxu0 0
        %1430 = vmatprep.subr.bf16.mxu0 0
        %1431 = vmatpush1.bf16.msra.mxu0 0
        %1432 = vmatprep.subr.bf16.mxu0 0
        %1433 = vmatpush1.bf16.msra.mxu0 0
        %1434 = vmatprep.subr.bf16.mxu0 0
        %1435 = vmatpush1.bf16.msra.mxu0 0
        %1436 = vmatprep.subr.bf16.mxu0 0
        %1437 = vmatpush1.bf16.msra.mxu0 0
        %1438 = vmatprep.subr.bf16.mxu0 0
        %1439 = vmatpush1.bf16.msra.mxu0 0
        %1440 = vmatprep.subr.bf16.mxu0 0
        %1441 = vmatpush1.bf16.msra.mxu0 0
        %1442 = vmatprep.subr.bf16.mxu0 0
        %1443 = vmatpush1.bf16.msra.mxu0 0
        %1444 = vmatprep.subr.bf16.mxu0 0
        %1445 = vmatpush1.bf16.msra.mxu0 0
        %1446 = vmatprep.mubr.bf16.mxu0 0
        %1447 = vmatmul.mubr.bf16.gmra.mrb[0].mxu0 %v1412
        %v1448 = vpop.f32.mrb[0].mxu0
        %v1449 = vadd.f32 0.0, %v1448
        %v1450 = vpop.f32.mrb[0].mxu0
        %v1451 = vpop.f32.mrb[0].mxu0
        %v1452 = vpop.f32.mrb[0].mxu0
        %1453 = vdwg.mxu0
        %v1456 = vunpack.c.l.b16 %v386
        %v1457 = vunpack.c.l.b16 %v387
        %v1458 = vpack.c.b16 %v1457, %v1456
        %v1461 = vsel %vm1030, %v1394, 0
        %1463 = vmatprep.subr.bf16.mxu0 0
        %1464 = vmatpush1.bf16.msra.mxu0 %v1458
        %1465 = vmatprep.subr.bf16.mxu0 0
        %1466 = vmatpush1.bf16.msra.mxu0 0
        %1467 = vmatprep.subr.bf16.mxu0 0
        %1468 = vmatpush1.bf16.msra.mxu0 0
        %1469 = vmatprep.subr.bf16.mxu0 0
        %1470 = vmatpush1.bf16.msra.mxu0 0
        %1471 = vmatprep.subr.bf16.mxu0 0
        %1472 = vmatpush1.bf16.msra.mxu0 0
        %1473 = vmatprep.subr.bf16.mxu0 0
        %1474 = vmatpush1.bf16.msra.mxu0 0
        %1475 = vmatprep.subr.bf16.mxu0 0
        %1476 = vmatpush1.bf16.msra.mxu0 0
        %1477 = vmatprep.subr.bf16.mxu0 0
        %1478 = vmatpush1.bf16.msra.mxu0 0
        %1479 = vmatprep.subr.bf16.mxu0 0
        %1480 = vmatpush1.bf16.msra.mxu0 0
        %1481 = vmatprep.subr.bf16.mxu0 0
        %1482 = vmatpush1.bf16.msra.mxu0 0
        %1483 = vmatprep.subr.bf16.mxu0 0
        %1484 = vmatpush1.bf16.msra.mxu0 0
        %1485 = vmatprep.subr.bf16.mxu0 0
        %1486 = vmatpush1.bf16.msra.mxu0 0
        %1487 = vmatprep.subr.bf16.mxu0 0
        %1488 = vmatpush1.bf16.msra.mxu0 0
        %1489 = vmatprep.subr.bf16.mxu0 0
        %1490 = vmatpush1.bf16.msra.mxu0 0
        %1491 = vmatprep.subr.bf16.mxu0 0
        %1492 = vmatpush1.bf16.msra.mxu0 0
        %1493 = vmatprep.subr.bf16.mxu0 0
        %1494 = vmatpush1.bf16.msra.mxu0 0
        %1495 = vmatprep.mubr.bf16.mxu0 0
        %1496 = vmatmul.mubr.bf16.gmra.mrb[0].mxu0 %v1461
        %v1497 = vpop.f32.mrb[0].mxu0
        %v1498 = vadd.f32 0.0, %v1497
        %v1499 = vpop.f32.mrb[0].mxu0
        %v1500 = vpop.f32.mrb[0].mxu0
        %v1501 = vpop.f32.mrb[0].mxu0
        %1502 = vdwg.mxu0
        %v1505 = vunpack.c.l.b16 %v388
        %v1506 = vunpack.c.l.b16 %v389
        %v1507 = vpack.c.b16 %v1506, %v1505
        %v1510 = vsel %vm1030, %v1395, 0
        %1512 = vmatprep.subr.bf16.mxu0 0
        %1513 = vmatpush1.bf16.msra.mxu0 %v1507
        %1514 = vmatprep.subr.bf16.mxu0 0
        %1515 = vmatpush1.bf16.msra.mxu0 0
        %1516 = vmatprep.subr.bf16.mxu0 0
        %1517 = vmatpush1.bf16.msra.mxu0 0
        %1518 = vmatprep.subr.bf16.mxu0 0
        %1519 = vmatpush1.bf16.msra.mxu0 0
        %1520 = vmatprep.subr.bf16.mxu0 0
        %1521 = vmatpush1.bf16.msra.mxu0 0
        %1522 = vmatprep.subr.bf16.mxu0 0
        %1523 = vmatpush1.bf16.msra.mxu0 0
        %1524 = vmatprep.subr.bf16.mxu0 0
        %1525 = vmatpush1.bf16.msra.mxu0 0
        %1526 = vmatprep.subr.bf16.mxu0 0
        %1527 = vmatpush1.bf16.msra.mxu0 0
        %1528 = vmatprep.subr.bf16.mxu0 0
        %1529 = vmatpush1.bf16.msra.mxu0 0
        %1530 = vmatprep.subr.bf16.mxu0 0
        %1531 = vmatpush1.bf16.msra.mxu0 0
        %1532 = vmatprep.subr.bf16.mxu0 0
        %1533 = vmatpush1.bf16.msra.mxu0 0
        %1534 = vmatprep.subr.bf16.mxu0 0
        %1535 = vmatpush1.bf16.msra.mxu0 0
        %1536 = vmatprep.subr.bf16.mxu0 0
        %1537 = vmatpush1.bf16.msra.mxu0 0
        %1538 = vmatprep.subr.bf16.mxu0 0
        %1539 = vmatpush1.bf16.msra.mxu0 0
        %1540 = vmatprep.subr.bf16.mxu0 0
        %1541 = vmatpush1.bf16.msra.mxu0 0
        %1542 = vmatprep.subr.bf16.mxu0 0
        %1543 = vmatpush1.bf16.msra.mxu0 0
        %1544 = vmatprep.mubr.bf16.mxu0 0
        %1545 = vmatmul.mubr.bf16.gmra.mrb[0].mxu0 %v1510
        %v1546 = vpop.f32.mrb[0].mxu0
        %v1547 = vadd.f32 0.0, %v1546
        %v1548 = vpop.f32.mrb[0].mxu0
        %v1549 = vpop.f32.mrb[0].mxu0
        %v1550 = vpop.f32.mrb[0].mxu0
        %1551 = vdwg.mxu0
        %v1554 = vunpack.c.l.b16 %v390
        %v1555 = vunpack.c.l.b16 %v391
        %v1556 = vpack.c.b16 %v1555, %v1554
        %v1559 = vsel %vm1030, %v1396, 0
        %1561 = vmatprep.subr.bf16.mxu0 0
        %1562 = vmatpush1.bf16.msra.mxu0 %v1556
        %1563 = vmatprep.subr.bf16.mxu0 0
        %1564 = vmatpush1.bf16.msra.mxu0 0
        %1565 = vmatprep.subr.bf16.mxu0 0
        %1566 = vmatpush1.bf16.msra.mxu0 0
        %1567 = vmatprep.subr.bf16.mxu0 0
        %1568 = vmatpush1.bf16.msra.mxu0 0
        %1569 = vmatprep.subr.bf16.mxu0 0
        %1570 = vmatpush1.bf16.msra.mxu0 0
        %1571 = vmatprep.subr.bf16.mxu0 0
        %1572 = vmatpush1.bf16.msra.mxu0 0
        %1573 = vmatprep.subr.bf16.mxu0 0
        %1574 = vmatpush1.bf16.msra.mxu0 0
        %1575 = vmatprep.subr.bf16.mxu0 0
        %1576 = vmatpush1.bf16.msra.mxu0 0
        %1577 = vmatprep.subr.bf16.mxu0 0
        %1578 = vmatpush1.bf16.msra.mxu0 0
        %1579 = vmatprep.subr.bf16.mxu0 0
        %1580 = vmatpush1.bf16.msra.mxu0 0
        %1581 = vmatprep.subr.bf16.mxu0 0
        %1582 = vmatpush1.bf16.msra.mxu0 0
        %1583 = vmatprep.subr.bf16.mxu0 0
        %1584 = vmatpush1.bf16.msra.mxu0 0
        %1585 = vmatprep.subr.bf16.mxu0 0
        %1586 = vmatpush1.bf16.msra.mxu0 0
        %1587 = vmatprep.subr.bf16.mxu0 0
        %1588 = vmatpush1.bf16.msra.mxu0 0
        %1589 = vmatprep.subr.bf16.mxu0 0
        %1590 = vmatpush1.bf16.msra.mxu0 0
        %1591 = vmatprep.subr.bf16.mxu0 0
        %1592 = vmatpush1.bf16.msra.mxu0 0
        %1593 = vmatprep.mubr.bf16.mxu0 0
        %1594 = vmatmul.mubr.bf16.gmra.mrb[0].mxu0 %v1559
        %v1595 = vpop.f32.mrb[0].mxu0
        %v1596 = vadd.f32 0.0, %v1595
        %v1597 = vpop.f32.mrb[0].mxu0
        %v1598 = vpop.f32.mrb[0].mxu0
        %v1599 = vpop.f32.mrb[0].mxu0
        %1600 = vdwg.mxu0
        %v1603 = vunpack.c.l.b16 %v392
        %v1604 = vunpack.c.l.b16 %v393
        %v1605 = vpack.c.b16 %v1604, %v1603
        %v1608 = vsel %vm1030, %v1397, 0
        %1610 = vmatprep.subr.bf16.mxu0 0
        %1611 = vmatpush1.bf16.msra.mxu0 %v1605
        %1612 = vmatprep.subr.bf16.mxu0 0
        %1613 = vmatpush1.bf16.msra.mxu0 0
        %1614 = vmatprep.subr.bf16.mxu0 0
        %1615 = vmatpush1.bf16.msra.mxu0 0
        %1616 = vmatprep.subr.bf16.mxu0 0
        %1617 = vmatpush1.bf16.msra.mxu0 0
        %1618 = vmatprep.subr.bf16.mxu0 0
        %1619 = vmatpush1.bf16.msra.mxu0 0
        %1620 = vmatprep.subr.bf16.mxu0 0
        %1621 = vmatpush1.bf16.msra.mxu0 0
        %1622 = vmatprep.subr.bf16.mxu0 0
        %1623 = vmatpush1.bf16.msra.mxu0 0
        %1624 = vmatprep.subr.bf16.mxu0 0
        %1625 = vmatpush1.bf16.msra.mxu0 0
        %1626 = vmatprep.subr.bf16.mxu0 0
        %1627 = vmatpush1.bf16.msra.mxu0 0
        %1628 = vmatprep.subr.bf16.mxu0 0
        %1629 = vmatpush1.bf16.msra.mxu0 0
        %1630 = vmatprep.subr.bf16.mxu0 0
        %1631 = vmatpush1.bf16.msra.mxu0 0
        %1632 = vmatprep.subr.bf16.mxu0 0
        %1633 = vmatpush1.bf16.msra.mxu0 0
        %1634 = vmatprep.subr.bf16.mxu0 0
        %1635 = vmatpush1.bf16.msra.mxu0 0
        %1636 = vmatprep.subr.bf16.mxu0 0
        %1637 = vmatpush1.bf16.msra.mxu0 0
        %1638 = vmatprep.subr.bf16.mxu0 0
        %1639 = vmatpush1.bf16.msra.mxu0 0
        %1640 = vmatprep.subr.bf16.mxu0 0
        %1641 = vmatpush1.bf16.msra.mxu0 0
        %1642 = vmatprep.mubr.bf16.mxu0 0
        %1643 = vmatmul.mubr.bf16.gmra.mrb[0].mxu0 %v1608
        %v1644 = vpop.f32.mrb[0].mxu0
        %v1645 = vadd.f32 0.0, %v1644
        %v1646 = vpop.f32.mrb[0].mxu0
        %v1647 = vpop.f32.mrb[0].mxu0
        %v1648 = vpop.f32.mrb[0].mxu0
        %1649 = vdwg.mxu0
        %v1652 = vunpack.c.l.b16 %v394
        %v1653 = vunpack.c.l.b16 %v395
        %v1654 = vpack.c.b16 %v1653, %v1652
        %v1657 = vsel %vm1030, %v1398, 0
        %1659 = vmatprep.subr.bf16.mxu0 0
        %1660 = vmatpush1.bf16.msra.mxu0 %v1654
        %1661 = vmatprep.subr.bf16.mxu0 0
        %1662 = vmatpush1.bf16.msra.mxu0 0
        %1663 = vmatprep.subr.bf16.mxu0 0
        %1664 = vmatpush1.bf16.msra.mxu0 0
        %1665 = vmatprep.subr.bf16.mxu0 0
        %1666 = vmatpush1.bf16.msra.mxu0 0
        %1667 = vmatprep.subr.bf16.mxu0 0
        %1668 = vmatpush1.bf16.msra.mxu0 0
        %1669 = vmatprep.subr.bf16.mxu0 0
        %1670 = vmatpush1.bf16.msra.mxu0 0
        %1671 = vmatprep.subr.bf16.mxu0 0
        %1672 = vmatpush1.bf16.msra.mxu0 0
        %1673 = vmatprep.subr.bf16.mxu0 0
        %1674 = vmatpush1.bf16.msra.mxu0 0
        %1675 = vmatprep.subr.bf16.mxu0 0
        %1676 = vmatpush1.bf16.msra.mxu0 0
        %1677 = vmatprep.subr.bf16.mxu0 0
        %1678 = vmatpush1.bf16.msra.mxu0 0
        %1679 = vmatprep.subr.bf16.mxu0 0
        %1680 = vmatpush1.bf16.msra.mxu0 0
        %1681 = vmatprep.subr.bf16.mxu0 0
        %1682 = vmatpush1.bf16.msra.mxu0 0
        %1683 = vmatprep.subr.bf16.mxu0 0
        %1684 = vmatpush1.bf16.msra.mxu0 0
        %1685 = vmatprep.subr.bf16.mxu0 0
        %1686 = vmatpush1.bf16.msra.mxu0 0
        %1687 = vmatprep.subr.bf16.mxu0 0
        %1688 = vmatpush1.bf16.msra.mxu0 0
        %1689 = vmatprep.subr.bf16.mxu0 0
        %1690 = vmatpush1.bf16.msra.mxu0 0
        %1691 = vmatprep.mubr.bf16.mxu0 0
        %1692 = vmatmul.mubr.bf16.gmra.mrb[0].mxu0 %v1657
        %v1693 = vpop.f32.mrb[0].mxu0
        %v1694 = vadd.f32 0.0, %v1693
        %v1695 = vpop.f32.mrb[0].mxu0
        %v1696 = vpop.f32.mrb[0].mxu0
        %v1697 = vpop.f32.mrb[0].mxu0
        %1698 = vdwg.mxu0
        %v1701 = vunpack.c.l.b16 %v396
        %v1702 = vunpack.c.l.b16 %v397
        %v1703 = vpack.c.b16 %v1702, %v1701
        %v1706 = vsel %vm1030, %v1399, 0
        %1708 = vmatprep.subr.bf16.mxu0 0
        %1709 = vmatpush1.bf16.msra.mxu0 %v1703
        %1710 = vmatprep.subr.bf16.mxu0 0
        %1711 = vmatpush1.bf16.msra.mxu0 0
        %1712 = vmatprep.subr.bf16.mxu0 0
        %1713 = vmatpush1.bf16.msra.mxu0 0
        %1714 = vmatprep.subr.bf16.mxu0 0
        %1715 = vmatpush1.bf16.msra.mxu0 0
        %1716 = vmatprep.subr.bf16.mxu0 0
        %1717 = vmatpush1.bf16.msra.mxu0 0
        %1718 = vmatprep.subr.bf16.mxu0 0
        %1719 = vmatpush1.bf16.msra.mxu0 0
        %1720 = vmatprep.subr.bf16.mxu0 0
        %1721 = vmatpush1.bf16.msra.mxu0 0
        %1722 = vmatprep.subr.bf16.mxu0 0
        %1723 = vmatpush1.bf16.msra.mxu0 0
        %1724 = vmatprep.subr.bf16.mxu0 0
        %1725 = vmatpush1.bf16.msra.mxu0 0
        %1726 = vmatprep.subr.bf16.mxu0 0
        %1727 = vmatpush1.bf16.msra.mxu0 0
        %1728 = vmatprep.subr.bf16.mxu0 0
        %1729 = vmatpush1.bf16.msra.mxu0 0
        %1730 = vmatprep.subr.bf16.mxu0 0
        %1731 = vmatpush1.bf16.msra.mxu0 0
        %1732 = vmatprep.subr.bf16.mxu0 0
        %1733 = vmatpush1.bf16.msra.mxu0 0
        %1734 = vmatprep.subr.bf16.mxu0 0
        %1735 = vmatpush1.bf16.msra.mxu0 0
        %1736 = vmatprep.subr.bf16.mxu0 0
        %1737 = vmatpush1.bf16.msra.mxu0 0
        %1738 = vmatprep.subr.bf16.mxu0 0
        %1739 = vmatpush1.bf16.msra.mxu0 0
        %1740 = vmatprep.mubr.bf16.mxu0 0
        %1741 = vmatmul.mubr.bf16.gmra.mrb[0].mxu0 %v1706
        %v1742 = vpop.f32.mrb[0].mxu0
        %v1743 = vadd.f32 0.0, %v1742
        %v1744 = vpop.f32.mrb[0].mxu0
        %v1745 = vpop.f32.mrb[0].mxu0
        %v1746 = vpop.f32.mrb[0].mxu0
        %1747 = vdwg.mxu0
        %v1750 = vunpack.c.l.b16 %v398
        %v1751 = vunpack.c.l.b16 %v399
        %v1752 = vpack.c.b16 %v1751, %v1750
        %v1755 = vsel %vm1030, %v1400, 0
        %1757 = vmatprep.subr.bf16.mxu0 0
        %1758 = vmatpush1.bf16.msra.mxu0 %v1752
        %1759 = vmatprep.subr.bf16.mxu0 0
        %1760 = vmatpush1.bf16.msra.mxu0 0
        %1761 = vmatprep.subr.bf16.mxu0 0
        %1762 = vmatpush1.bf16.msra.mxu0 0
        %1763 = vmatprep.subr.bf16.mxu0 0
        %1764 = vmatpush1.bf16.msra.mxu0 0
        %1765 = vmatprep.subr.bf16.mxu0 0
        %1766 = vmatpush1.bf16.msra.mxu0 0
        %1767 = vmatprep.subr.bf16.mxu0 0
        %1768 = vmatpush1.bf16.msra.mxu0 0
        %1769 = vmatprep.subr.bf16.mxu0 0
        %1770 = vmatpush1.bf16.msra.mxu0 0
        %1771 = vmatprep.subr.bf16.mxu0 0
        %1772 = vmatpush1.bf16.msra.mxu0 0
        %1773 = vmatprep.subr.bf16.mxu0 0
        %1774 = vmatpush1.bf16.msra.mxu0 0
        %1775 = vmatprep.subr.bf16.mxu0 0
        %1776 = vmatpush1.bf16.msra.mxu0 0
        %1777 = vmatprep.subr.bf16.mxu0 0
        %1778 = vmatpush1.bf16.msra.mxu0 0
        %1779 = vmatprep.subr.bf16.mxu0 0
        %1780 = vmatpush1.bf16.msra.mxu0 0
        %1781 = vmatprep.subr.bf16.mxu0 0
        %1782 = vmatpush1.bf16.msra.mxu0 0
        %1783 = vmatprep.subr.bf16.mxu0 0
        %1784 = vmatpush1.bf16.msra.mxu0 0
        %1785 = vmatprep.subr.bf16.mxu0 0
        %1786 = vmatpush1.bf16.msra.mxu0 0
        %1787 = vmatprep.subr.bf16.mxu0 0
        %1788 = vmatpush1.bf16.msra.mxu0 0
        %1789 = vmatprep.mubr.bf16.mxu0 0
        %1790 = vmatmul.mubr.bf16.gmra.mrb[0].mxu0 %v1755
        %v1791 = vpop.f32.mrb[0].mxu0
        %v1792 = vadd.f32 0.0, %v1791
        %v1793 = vpop.f32.mrb[0].mxu0
        %v1794 = vpop.f32.mrb[0].mxu0
        %v1795 = vpop.f32.mrb[0].mxu0
        %1796 = vdwg.mxu0
        %v1799 = vunpack.c.l.b16 %v400
        %v1800 = vunpack.c.l.b16 %v401
        %v1801 = vpack.c.b16 %v1800, %v1799
        %v1804 = vsel %vm1030, %v1401, 0
        %1806 = vmatprep.subr.bf16.mxu0 0
        %1807 = vmatpush1.bf16.msra.mxu0 %v1801
        %1808 = vmatprep.subr.bf16.mxu0 0
        %1809 = vmatpush1.bf16.msra.mxu0 0
        %1810 = vmatprep.subr.bf16.mxu0 0
        %1811 = vmatpush1.bf16.msra.mxu0 0
        %1812 = vmatprep.subr.bf16.mxu0 0
        %1813 = vmatpush1.bf16.msra.mxu0 0
        %1814 = vmatprep.subr.bf16.mxu0 0
        %1815 = vmatpush1.bf16.msra.mxu0 0
        %1816 = vmatprep.subr.bf16.mxu0 0
        %1817 = vmatpush1.bf16.msra.mxu0 0
        %1818 = vmatprep.subr.bf16.mxu0 0
        %1819 = vmatpush1.bf16.msra.mxu0 0
        %1820 = vmatprep.subr.bf16.mxu0 0
        %1821 = vmatpush1.bf16.msra.mxu0 0
        %1822 = vmatprep.subr.bf16.mxu0 0
        %1823 = vmatpush1.bf16.msra.mxu0 0
        %1824 = vmatprep.subr.bf16.mxu0 0
        %1825 = vmatpush1.bf16.msra.mxu0 0
        %1826 = vmatprep.subr.bf16.mxu0 0
        %1827 = vmatpush1.bf16.msra.mxu0 0
        %1828 = vmatprep.subr.bf16.mxu0 0
        %1829 = vmatpush1.bf16.msra.mxu0 0
        %1830 = vmatprep.subr.bf16.mxu0 0
        %1831 = vmatpush1.bf16.msra.mxu0 0
        %1832 = vmatprep.subr.bf16.mxu0 0
        %1833 = vmatpush1.bf16.msra.mxu0 0
        %1834 = vmatprep.subr.bf16.mxu0 0
        %1835 = vmatpush1.bf16.msra.mxu0 0
        %1836 = vmatprep.subr.bf16.mxu0 0
        %1837 = vmatpush1.bf16.msra.mxu0 0
        %1838 = vmatprep.mubr.bf16.mxu0 0
        %1839 = vmatmul.mubr.bf16.gmra.mrb[0].mxu0 %v1804
        %v1840 = vpop.f32.mrb[0].mxu0
        %v1841 = vadd.f32 0.0, %v1840
        %v1842 = vpop.f32.mrb[0].mxu0
        %v1843 = vpop.f32.mrb[0].mxu0
        %v1844 = vpop.f32.mrb[0].mxu0
        %1845 = vdwg.mxu0
        %v1848 = vunpack.c.l.b16 %v402
        %v1849 = vunpack.c.l.b16 %v403
        %v1850 = vpack.c.b16 %v1849, %v1848
        %v1853 = vsel %vm1030, %v1402, 0
        %1855 = vmatprep.subr.bf16.mxu0 0
        %1856 = vmatpush1.bf16.msra.mxu0 %v1850
        %1857 = vmatprep.subr.bf16.mxu0 0
        %1858 = vmatpush1.bf16.msra.mxu0 0
        %1859 = vmatprep.subr.bf16.mxu0 0
        %1860 = vmatpush1.bf16.msra.mxu0 0
        %1861 = vmatprep.subr.bf16.mxu0 0
        %1862 = vmatpush1.bf16.msra.mxu0 0
        %1863 = vmatprep.subr.bf16.mxu0 0
        %1864 = vmatpush1.bf16.msra.mxu0 0
        %1865 = vmatprep.subr.bf16.mxu0 0
        %1866 = vmatpush1.bf16.msra.mxu0 0
        %1867 = vmatprep.subr.bf16.mxu0 0
        %1868 = vmatpush1.bf16.msra.mxu0 0
        %1869 = vmatprep.subr.bf16.mxu0 0
        %1870 = vmatpush1.bf16.msra.mxu0 0
        %1871 = vmatprep.subr.bf16.mxu0 0
        %1872 = vmatpush1.bf16.msra.mxu0 0
        %1873 = vmatprep.subr.bf16.mxu0 0
        %1874 = vmatpush1.bf16.msra.mxu0 0
        %1875 = vmatprep.subr.bf16.mxu0 0
        %1876 = vmatpush1.bf16.msra.mxu0 0
        %1877 = vmatprep.subr.bf16.mxu0 0
        %1878 = vmatpush1.bf16.msra.mxu0 0
        %1879 = vmatprep.subr.bf16.mxu0 0
        %1880 = vmatpush1.bf16.msra.mxu0 0
        %1881 = vmatprep.subr.bf16.mxu0 0
        %1882 = vmatpush1.bf16.msra.mxu0 0
        %1883 = vmatprep.subr.bf16.mxu0 0
        %1884 = vmatpush1.bf16.msra.mxu0 0
        %1885 = vmatprep.subr.bf16.mxu0 0
        %1886 = vmatpush1.bf16.msra.mxu0 0
        %1887 = vmatprep.mubr.bf16.mxu0 0
        %1888 = vmatmul.mubr.bf16.gmra.mrb[0].mxu0 %v1853
        %v1889 = vpop.f32.mrb[0].mxu0
        %v1890 = vadd.f32 0.0, %v1889
        %v1891 = vpop.f32.mrb[0].mxu0
        %v1892 = vpop.f32.mrb[0].mxu0
        %v1893 = vpop.f32.mrb[0].mxu0
        %1894 = vdwg.mxu0
        %v1897 = vunpack.c.l.b16 %v404
        %v1898 = vunpack.c.l.b16 %v405
        %v1899 = vpack.c.b16 %v1898, %v1897
        %v1902 = vsel %vm1030, %v1403, 0
        %1904 = vmatprep.subr.bf16.mxu0 0
        %1905 = vmatpush1.bf16.msra.mxu0 %v1899
        %1906 = vmatprep.subr.bf16.mxu0 0
        %1907 = vmatpush1.bf16.msra.mxu0 0
        %1908 = vmatprep.subr.bf16.mxu0 0
        %1909 = vmatpush1.bf16.msra.mxu0 0
        %1910 = vmatprep.subr.bf16.mxu0 0
        %1911 = vmatpush1.bf16.msra.mxu0 0
        %1912 = vmatprep.subr.bf16.mxu0 0
        %1913 = vmatpush1.bf16.msra.mxu0 0
        %1914 = vmatprep.subr.bf16.mxu0 0
        %1915 = vmatpush1.bf16.msra.mxu0 0
        %1916 = vmatprep.subr.bf16.mxu0 0
        %1917 = vmatpush1.bf16.msra.mxu0 0
        %1918 = vmatprep.subr.bf16.mxu0 0
        %1919 = vmatpush1.bf16.msra.mxu0 0
        %1920 = vmatprep.subr.bf16.mxu0 0
        %1921 = vmatpush1.bf16.msra.mxu0 0
        %1922 = vmatprep.subr.bf16.mxu0 0
        %1923 = vmatpush1.bf16.msra.mxu0 0
        %1924 = vmatprep.subr.bf16.mxu0 0
        %1925 = vmatpush1.bf16.msra.mxu0 0
        %1926 = vmatprep.subr.bf16.mxu0 0
        %1927 = vmatpush1.bf16.msra.mxu0 0
        %1928 = vmatprep.subr.bf16.mxu0 0
        %1929 = vmatpush1.bf16.msra.mxu0 0
        %1930 = vmatprep.subr.bf16.mxu0 0
        %1931 = vmatpush1.bf16.msra.mxu0 0
        %1932 = vmatprep.subr.bf16.mxu0 0
        %1933 = vmatpush1.bf16.msra.mxu0 0
        %1934 = vmatprep.subr.bf16.mxu0 0
        %1935 = vmatpush1.bf16.msra.mxu0 0
        %1936 = vmatprep.mubr.bf16.mxu0 0
        %1937 = vmatmul.mubr.bf16.gmra.mrb[0].mxu0 %v1902
        %v1938 = vpop.f32.mrb[0].mxu0
        %v1939 = vadd.f32 0.0, %v1938
        %v1940 = vpop.f32.mrb[0].mxu0
        %v1941 = vpop.f32.mrb[0].mxu0
        %v1942 = vpop.f32.mrb[0].mxu0
        %1943 = vdwg.mxu0
        %v1946 = vunpack.c.l.b16 %v406
        %v1947 = vunpack.c.l.b16 %v407
        %v1948 = vpack.c.b16 %v1947, %v1946
        %v1951 = vsel %vm1030, %v1404, 0
        %1953 = vmatprep.subr.bf16.mxu0 0
        %1954 = vmatpush1.bf16.msra.mxu0 %v1948
        %1955 = vmatprep.subr.bf16.mxu0 0
        %1956 = vmatpush1.bf16.msra.mxu0 0
        %1957 = vmatprep.subr.bf16.mxu0 0
        %1958 = vmatpush1.bf16.msra.mxu0 0
        %1959 = vmatprep.subr.bf16.mxu0 0
        %1960 = vmatpush1.bf16.msra.mxu0 0
        %1961 = vmatprep.subr.bf16.mxu0 0
        %1962 = vmatpush1.bf16.msra.mxu0 0
        %1963 = vmatprep.subr.bf16.mxu0 0
        %1964 = vmatpush1.bf16.msra.mxu0 0
        %1965 = vmatprep.subr.bf16.mxu0 0
        %1966 = vmatpush1.bf16.msra.mxu0 0
        %1967 = vmatprep.subr.bf16.mxu0 0
        %1968 = vmatpush1.bf16.msra.mxu0 0
        %1969 = vmatprep.subr.bf16.mxu0 0
        %1970 = vmatpush1.bf16.msra.mxu0 0
        %1971 = vmatprep.subr.bf16.mxu0 0
        %1972 = vmatpush1.bf16.msra.mxu0 0
        %1973 = vmatprep.subr.bf16.mxu0 0
        %1974 = vmatpush1.bf16.msra.mxu0 0
        %1975 = vmatprep.subr.bf16.mxu0 0
        %1976 = vmatpush1.bf16.msra.mxu0 0
        %1977 = vmatprep.subr.bf16.mxu0 0
        %1978 = vmatpush1.bf16.msra.mxu0 0
        %1979 = vmatprep.subr.bf16.mxu0 0
        %1980 = vmatpush1.bf16.msra.mxu0 0
        %1981 = vmatprep.subr.bf16.mxu0 0
        %1982 = vmatpush1.bf16.msra.mxu0 0
        %1983 = vmatprep.subr.bf16.mxu0 0
        %1984 = vmatpush1.bf16.msra.mxu0 0
        %1985 = vmatprep.mubr.bf16.mxu0 0
        %1986 = vmatmul.mubr.bf16.gmra.mrb[0].mxu0 %v1951
        %v1987 = vpop.f32.mrb[0].mxu0
        %v1988 = vadd.f32 0.0, %v1987
        %v1989 = vpop.f32.mrb[0].mxu0
        %v1990 = vpop.f32.mrb[0].mxu0
        %v1991 = vpop.f32.mrb[0].mxu0
        %1992 = vdwg.mxu0
        %v1993 = vlaneseq
        %v1994 = vshrl.u32 %v1993, 7
        %v1995 = vsub.s32 0, %v1994
        %v1996 = vrot.slane %v1153, %v1995
        %1998 = vbcast.lane.b32.xlu0 %v1996, 256
        %v1999 = vpop.permute.xlu0 %1998
        %v2000 = vlaneseq
        %v2001 = vshrl.u32 %v2000, 7
        %v2002 = vsub.s32 1, %v2001
        %v2003 = vrot.slane %v1153, %v2002
        %2005 = vbcast.lane.b32.xlu0 %v2003, 256
        %v2006 = vpop.permute.xlu0 %2005
        %v2007 = vlaneseq
        %v2008 = vshrl.u32 %v2007, 7
        %v2009 = vsub.s32 2, %v2008
        %v2010 = vrot.slane %v1153, %v2009
        %2012 = vbcast.lane.b32.xlu0 %v2010, 256
        %v2013 = vpop.permute.xlu0 %2012
        %v2014 = vlaneseq
        %v2015 = vshrl.u32 %v2014, 7
        %v2016 = vsub.s32 3, %v2015
        %v2017 = vrot.slane %v1153, %v2016
        %2019 = vbcast.lane.b32.xlu0 %v2017, 256
        %v2020 = vpop.permute.xlu0 %2019
        %v2021 = vlaneseq
        %v2022 = vshrl.u32 %v2021, 7
        %v2023 = vsub.s32 4, %v2022
        %v2024 = vrot.slane %v1153, %v2023
        %2026 = vbcast.lane.b32.xlu0 %v2024, 256
        %v2027 = vpop.permute.xlu0 %2026
        %v2028 = vlaneseq
        %v2029 = vshrl.u32 %v2028, 7
        %v2030 = vsub.s32 5, %v2029
        %v2031 = vrot.slane %v1153, %v2030
        %2033 = vbcast.lane.b32.xlu0 %v2031, 256
        %v2034 = vpop.permute.xlu0 %2033
        %v2035 = vlaneseq
        %v2036 = vshrl.u32 %v2035, 7
        %v2037 = vsub.s32 6, %v2036
        %v2038 = vrot.slane %v1153, %v2037
        %2040 = vbcast.lane.b32.xlu0 %v2038, 256
        %v2041 = vpop.permute.xlu0 %2040
        %v2042 = vlaneseq
        %v2043 = vshrl.u32 %v2042, 7
        %v2044 = vsub.s32 7, %v2043
        %v2045 = vrot.slane %v1153, %v2044
        %2047 = vbcast.lane.b32.xlu0 %v2045, 256
        %v2048 = vpop.permute.xlu0 %2047
        %v2049 = vlaneseq
        %v2050 = vshrl.u32 %v2049, 7
        %v2051 = vsub.s32 0, %v2050
        %v2052 = vrot.slane %v1155, %v2051
        %2054 = vbcast.lane.b32.xlu0 %v2052, 256
        %v2055 = vpop.permute.xlu0 %2054
        %v2056 = vlaneseq
        %v2057 = vshrl.u32 %v2056, 7
        %v2058 = vsub.s32 1, %v2057
        %v2059 = vrot.slane %v1155, %v2058
        %2061 = vbcast.lane.b32.xlu0 %v2059, 256
        %v2062 = vpop.permute.xlu0 %2061
        %v2063 = vlaneseq
        %v2064 = vshrl.u32 %v2063, 7
        %v2065 = vsub.s32 2, %v2064
        %v2066 = vrot.slane %v1155, %v2065
        %2068 = vbcast.lane.b32.xlu0 %v2066, 256
        %v2069 = vpop.permute.xlu0 %2068
        %v2070 = vlaneseq
        %v2071 = vshrl.u32 %v2070, 7
        %v2072 = vsub.s32 3, %v2071
        %v2073 = vrot.slane %v1155, %v2072
        %2075 = vbcast.lane.b32.xlu0 %v2073, 256
        %v2076 = vpop.permute.xlu0 %2075
        %v2077 = vld [vmem:[#allocation4] sm:$0xff]
        %v2078 = vld [vmem:[#allocation4 + $0x8] sm:$0xff]
        %v2079 = vld [vmem:[#allocation4 + $0x10] sm:$0xff]
        %v2080 = vld [vmem:[#allocation4 + $0x18] sm:$0xff]
        %v2081 = vld [vmem:[#allocation4 + $0x20] sm:$0xff]
        %v2082 = vld [vmem:[#allocation4 + $0x28] sm:$0xff]
        %v2083 = vld [vmem:[#allocation4 + $0x30] sm:$0xff]
        %v2084 = vld [vmem:[#allocation4 + $0x38] sm:$0xff]
        %v2085 = vld [vmem:[#allocation4 + $0x40] sm:$0xff]
        %v2086 = vld [vmem:[#allocation4 + $0x48] sm:$0xff]
        %v2087 = vld [vmem:[#allocation4 + $0x50] sm:$0xff]
        %v2088 = vld [vmem:[#allocation4 + $0x58] sm:$0xff]
        %v2089 = vmul.f32 %v1999, %v2077
        %v2090 = vmul.f32 %v2006, %v2078
        %v2091 = vmul.f32 %v2013, %v2079
        %v2092 = vmul.f32 %v2020, %v2080
        %v2093 = vmul.f32 %v2027, %v2081
        %v2094 = vmul.f32 %v2034, %v2082
        %v2095 = vmul.f32 %v2041, %v2083
        %v2096 = vmul.f32 %v2048, %v2084
        %v2097 = vmul.f32 %v2055, %v2085
        %v2098 = vmul.f32 %v2062, %v2086
        %v2099 = vmul.f32 %v2069, %v2087
        %v2100 = vmul.f32 %v2076, %v2088
        %v2101 = vadd.f32 %v2089, %v1449
        %v2102 = vadd.f32 %v2090, %v1498
        %v2103 = vadd.f32 %v2091, %v1547
        %v2104 = vadd.f32 %v2092, %v1596
        %v2105 = vadd.f32 %v2093, %v1645
        %v2106 = vadd.f32 %v2094, %v1694
        %v2107 = vadd.f32 %v2095, %v1743
        %v2108 = vadd.f32 %v2096, %v1792
        %v2109 = vadd.f32 %v2097, %v1841
        %v2110 = vadd.f32 %v2098, %v1890
        %v2111 = vadd.f32 %v2099, %v1939
        %v2112 = vadd.f32 %v2100, %v1988
        %2113 = vst.msk [vmem:[#allocation4] sm:$0xff] %vm420, %v2101
        %2114 = vst.msk [vmem:[#allocation4 + $0x8] sm:$0xff] %vm420, %v2102
        %2115 = vst.msk [vmem:[#allocation4 + $0x10] sm:$0xff] %vm420, %v2103
        %2116 = vst.msk [vmem:[#allocation4 + $0x18] sm:$0xff] %vm420, %v2104
        %2117 = vst.msk [vmem:[#allocation4 + $0x20] sm:$0xff] %vm420, %v2105
        %2118 = vst.msk [vmem:[#allocation4 + $0x28] sm:$0xff] %vm420, %v2106
        %2119 = vst.msk [vmem:[#allocation4 + $0x30] sm:$0xff] %vm420, %v2107
        %2120 = vst.msk [vmem:[#allocation4 + $0x38] sm:$0xff] %vm420, %v2108
        %2121 = vst.msk [vmem:[#allocation4 + $0x40] sm:$0xff] %vm420, %v2109
        %2122 = vst.msk [vmem:[#allocation4 + $0x48] sm:$0xff] %vm420, %v2110
        %2123 = vst.msk [vmem:[#allocation4 + $0x50] sm:$0xff] %vm420, %v2111
        %2124 = vst.msk [vmem:[#allocation4 + $0x58] sm:$0xff] %vm420, %v2112
        %2125 = vst.msk [vmem:[#allocation2] sm:$0xff] %vm420, %v1148
        %2126 = vst.msk [vmem:[#allocation2 + $0x8] sm:$0xf] %vm1391, %v1149
        // Predicated region
        $region41: #{bert_out_attention.5} parent=35 // pred_check
          %p2127 = pneg %p326
        $region42: #{bert_out_attention.5} parent=35 // pred_check_branch
          %2129 = sbr.rel (%p2127) target = $region44
        $region43: #{bert_out_attention.5} parent=35 // pred_region
          %v2130 = vld [vmem:[#allocation3] sm:$0xff]
          %v2131 = vld [vmem:[#allocation3 + $0x8] sm:$0xf]
          %v2132 = vrcp.pop %v2130
          %v2133 = vrcp.pop %v2131
          %v2134 = vld [vmem:[#allocation4] sm:$0xff]
          %v2135 = vld [vmem:[#allocation4 + $0x8] sm:$0xff]
          %v2136 = vld [vmem:[#allocation4 + $0x10] sm:$0xff]
          %v2137 = vld [vmem:[#allocation4 + $0x18] sm:$0xff]
          %v2138 = vld [vmem:[#allocation4 + $0x20] sm:$0xff]
          %v2139 = vld [vmem:[#allocation4 + $0x28] sm:$0xff]
          %v2140 = vld [vmem:[#allocation4 + $0x30] sm:$0xff]
          %v2141 = vld [vmem:[#allocation4 + $0x38] sm:$0xff]
          %v2142 = vld [vmem:[#allocation4 + $0x40] sm:$0xff]
          %v2143 = vld [vmem:[#allocation4 + $0x48] sm:$0xff]
          %v2144 = vld [vmem:[#allocation4 + $0x50] sm:$0xff]
          %v2145 = vld [vmem:[#allocation4 + $0x58] sm:$0xff]
          %v2146 = vlaneseq
          %v2147 = vshrl.u32 %v2146, 7
          %v2148 = vsub.s32 0, %v2147
          %v2149 = vrot.slane %v2132, %v2148
          %2151 = vbcast.lane.b32.xlu0 %v2149, 256
          %v2152 = vpop.permute.xlu0 %2151
          %v2153 = vlaneseq
          %v2154 = vshrl.u32 %v2153, 7
          %v2155 = vsub.s32 1, %v2154
          %v2156 = vrot.slane %v2132, %v2155
          %2158 = vbcast.lane.b32.xlu0 %v2156, 256
          %v2159 = vpop.permute.xlu0 %2158
          %v2160 = vlaneseq
          %v2161 = vshrl.u32 %v2160, 7
          %v2162 = vsub.s32 2, %v2161
          %v2163 = vrot.slane %v2132, %v2162
          %2165 = vbcast.lane.b32.xlu0 %v2163, 256
          %v2166 = vpop.permute.xlu0 %2165
          %v2167 = vlaneseq
          %v2168 = vshrl.u32 %v2167, 7
          %v2169 = vsub.s32 3, %v2168
          %v2170 = vrot.slane %v2132, %v2169
          %2172 = vbcast.lane.b32.xlu0 %v2170, 256
          %v2173 = vpop.permute.xlu0 %2172
          %v2174 = vlaneseq
          %v2175 = vshrl.u32 %v2174, 7
          %v2176 = vsub.s32 4, %v2175
          %v2177 = vrot.slane %v2132, %v2176
          %2179 = vbcast.lane.b32.xlu0 %v2177, 256
          %v2180 = vpop.permute.xlu0 %2179
          %v2181 = vlaneseq
          %v2182 = vshrl.u32 %v2181, 7
          %v2183 = vsub.s32 5, %v2182
          %v2184 = vrot.slane %v2132, %v2183
          %2186 = vbcast.lane.b32.xlu0 %v2184, 256
          %v2187 = vpop.permute.xlu0 %2186
          %v2188 = vlaneseq
          %v2189 = vshrl.u32 %v2188, 7
          %v2190 = vsub.s32 6, %v2189
          %v2191 = vrot.slane %v2132, %v2190
          %2193 = vbcast.lane.b32.xlu0 %v2191, 256
          %v2194 = vpop.permute.xlu0 %2193
          %v2195 = vlaneseq
          %v2196 = vshrl.u32 %v2195, 7
          %v2197 = vsub.s32 7, %v2196
          %v2198 = vrot.slane %v2132, %v2197
          %2200 = vbcast.lane.b32.xlu0 %v2198, 256
          %v2201 = vpop.permute.xlu0 %2200
          %v2202 = vlaneseq
          %v2203 = vshrl.u32 %v2202, 7
          %v2204 = vsub.s32 0, %v2203
          %v2205 = vrot.slane %v2133, %v2204
          %2207 = vbcast.lane.b32.xlu0 %v2205, 256
          %v2208 = vpop.permute.xlu0 %2207
          %v2209 = vlaneseq
          %v2210 = vshrl.u32 %v2209, 7
          %v2211 = vsub.s32 1, %v2210
          %v2212 = vrot.slane %v2133, %v2211
          %2214 = vbcast.lane.b32.xlu0 %v2212, 256
          %v2215 = vpop.permute.xlu0 %2214
          %v2216 = vlaneseq
          %v2217 = vshrl.u32 %v2216, 7
          %v2218 = vsub.s32 2, %v2217
          %v2219 = vrot.slane %v2133, %v2218
          %2221 = vbcast.lane.b32.xlu0 %v2219, 256
          %v2222 = vpop.permute.xlu0 %2221
          %v2223 = vlaneseq
          %v2224 = vshrl.u32 %v2223, 7
          %v2225 = vsub.s32 3, %v2224
          %v2226 = vrot.slane %v2133, %v2225
          %2228 = vbcast.lane.b32.xlu0 %v2226, 256
          %v2229 = vpop.permute.xlu0 %2228
          %v2230 = vmul.f32 %v2134, %v2152
          %v2231 = vmul.f32 %v2135, %v2159
          %v2232 = vmul.f32 %v2136, %v2166
          %v2233 = vmul.f32 %v2137, %v2173
          %v2234 = vmul.f32 %v2138, %v2180
          %v2235 = vmul.f32 %v2139, %v2187
          %v2236 = vmul.f32 %v2140, %v2194
          %v2237 = vmul.f32 %v2141, %v2201
          %v2238 = vmul.f32 %v2142, %v2208
          %v2239 = vmul.f32 %v2143, %v2215
          %v2240 = vmul.f32 %v2144, %v2222
          %v2241 = vmul.f32 %v2145, %v2229
          %2243 = vrot.lane.b32.xlu0 %v2231, 8
          %v2244 = vpop.permute.xlu0 %2243
          %2247 = vrot.lane.b32.xlu0 %v2232, 16
          %v2248 = vpop.permute.xlu0 %2247
          %2251 = vrot.lane.b32.xlu0 %v2233, 24
          %v2252 = vpop.permute.xlu0 %2251
          %2255 = vrot.lane.b32.xlu0 %v2234, 32
          %v2256 = vpop.permute.xlu0 %2255
          %2259 = vrot.lane.b32.xlu0 %v2235, 40
          %v2260 = vpop.permute.xlu0 %2259
          %2263 = vrot.lane.b32.xlu0 %v2236, 48
          %v2264 = vpop.permute.xlu0 %2263
          %2267 = vrot.lane.b32.xlu0 %v2237, 56
          %v2268 = vpop.permute.xlu0 %2267
          %2271 = vrot.lane.b32.xlu0 %v2238, 64
          %v2272 = vpop.permute.xlu0 %2271
          %2275 = vrot.lane.b32.xlu0 %v2239, 72
          %v2276 = vpop.permute.xlu0 %2275
          %2279 = vrot.lane.b32.xlu0 %v2240, 80
          %v2280 = vpop.permute.xlu0 %2279
          %2283 = vrot.lane.b32.xlu0 %v2241, 88
          %v2284 = vpop.permute.xlu0 %2283
          %v2286 = vsel %vm420, %v2230, %v2244
          %v2287 = vsel %vm1030, %v2286, %v2248
          %vm2288 = vcmask 195584
          %v2289 = vsel %vm2288, %v2287, %v2252
          %vm2290 = vcmask 261120
          %v2291 = vsel %vm2290, %v2289, %v2256
          %vm2292 = vcmask 326656
          %v2293 = vsel %vm2292, %v2291, %v2260
          %vm2294 = vcmask 392192
          %v2295 = vsel %vm2294, %v2293, %v2264
          %vm2296 = vcmask 457728
          %v2297 = vsel %vm2296, %v2295, %v2268
          %vm2298 = vcmask 523264
          %v2299 = vsel %vm2298, %v2297, %v2272
          %vm2300 = vcmask 588800
          %v2301 = vsel %vm2300, %v2299, %v2276
          %vm2302 = vcmask 654336
          %v2303 = vsel %vm2302, %v2301, %v2280
          %vm2304 = vcmask 719872
          %v2305 = vsel %vm2304, %v2303, %v2284
          %vm2306 = vcmask 785408
          %2307 = vst.msk [vmem:[%s290] sm:$0xff] %vm2306, %v2305
        $region44: #{bert_out_attention.5} parent=35 // pred_fallthru
          _
        %s2308 = sand.u32 %s159, 1
        %s2309 = scalar_lea.sflag [#allocation6], %s2308
        %s2310 = sand.u32 %s159, 1
        %s2311 = smul.addr %s2310, 8
        %s2312 = scalar_lea.vmem [#allocation5], %s2311
        // Predicated region
        $region45: #{bert_out_attention.5} parent=35 // pred_check
          %p2313 = pneg %p169
        $region46: #{bert_out_attention.5} parent=35 // pred_check_branch
          %2315 = sbr.rel (%p2313) target = $region48
        $region47: #{bert_out_attention.5} parent=35 // pred_region
          %s2317 = ssub.s32 128, 128
          %2318 = vsyncadd %s2309, %s2317
          %s2319 = sadd.s32 %s24, %s23
          %s2320 = smul.addr %s2319, 128
          %s2321 = scalar_lea.hbm %s4, %s2320
          %s2323 = sshll.u32 %s2312, 4
          %s2324 = int_to_ptr.vmem [resolvable:$true] %s2323
          %2326 = dma.vmem_to_hbm [thread:$0]  %s2324, 128, %s2321, %s2309
        $region48: #{bert_out_attention.5} parent=35 // pred_fallthru
          _
      $region36: #{bert_out_attention.5} parent=5 // pred_fallthru
        _
      %p2327 = scmp.le.s32.totalorder 2, %s13
      // Predicated region
      $region49: #{bert_out_attention.5} parent=5 // pred_check
        %p2328 = pneg %p2327
      $region50: #{bert_out_attention.5} parent=5 // pred_check_branch
        %2330 = sbr.rel (%p2328) target = $region52
      $region51: #{bert_out_attention.5} parent=5 // pred_region
        %s2331 = ssub.s32 %s13, 2
        // Predicated region
        $region53: #{bert_out_attention.5} parent=51 // pred_check
          %p2332 = pneg %p175
        $region54: #{bert_out_attention.5} parent=51 // pred_check_branch
          %2334 = sbr.rel (%p2332) target = $region56
        $region55: #{bert_out_attention.5} parent=51 // pred_region
          %s2335 = sand.u32 %s160, 1
          %s2336 = scalar_lea.sflag [#allocation6], %s2335
          %s2337 = sand.u32 %s160, 1
          %s2338 = smul.addr %s2337, 8
          %s2339 = scalar_lea.vmem [#allocation5], %s2338
          %2340 = dma.done %s2336, 128
        $region56: #{bert_out_attention.5} parent=51 // pred_fallthru
          _
      $region52: #{bert_out_attention.5} parent=5 // pred_fallthru
        _
    $region6: #{bert_out_attention.5} parent=1 // loop_footer
      %s17 = sadd.s32 1, %s13
    $region7: #{bert_out_attention.5} parent=1 // loop_footer_branch
      %12 = sbr.rel target = $region3
    $region8: #{bert_out_attention.5} parent=1 // loop_exit
      _
    %2341 = vsyncpa [#allocation6], 1
    %s2342 = scalar_lea.sflag [#allocation6], 1
    %2343 = vsyncpa %s2342, 1

</llo_original>
